<compile_context>
chip_gen: v6e
topology: v6e:2x2x1
jax: 0.10.0
libtpu: 0.0.40
codegen_flags: <defaults>
</compile_context>

<pallas_src>
import functools

import jax
import jax.numpy as jnp
from jax.experimental import pallas as pl
from jax.experimental.pallas import tpu as pltpu

N_ACTIONS = 11
N_ACTION_HISTORY = 10
ACTION_HISTORY_SIZE = N_ACTIONS * N_ACTION_HISTORY  # 110
FEAT_DIM = 1280
HIDDEN = 512
FUSED_OUT = N_ACTIONS + 2  # fused fc6|fc7 output width = 13


def _round_up(x, m):
    return (x + m - 1) // m * m


def adnet_head_kernel(feats_ref, actions_ref,
                      w4_ref, b4_ref, w5_ref, b5_ref,
                      w67f_ref, w67a_ref, b67_ref,
                      out_ref, *, log_softmax):
    cdt = w4_ref.dtype  # MXU operand dtype (bf16); accumulation stays f32

    x = feats_ref[...].astype(cdt)

    # fc4: Linear(1280, 512) + ReLU  (Dropout == identity at inference)
    h = jnp.dot(x, w4_ref[...], preferred_element_type=jnp.float32) + b4_ref[...]
    h = jnp.maximum(h, 0.0)

    # fc5: Linear(512, 512) + ReLU
    h = jnp.dot(h.astype(cdt), w5_ref[...], preferred_element_type=jnp.float32) + b5_ref[...]
    h = jnp.maximum(h, 0.0)

    a = actions_ref[...].astype(cdt)

    # Fused fc6|fc7:  cat([h, a]) @ [W6 | W7]  ==  h @ W67[:512] + a @ W67[512:]
    logits = (jnp.dot(h.astype(cdt), w67f_ref[...], preferred_element_type=jnp.float32)
              + jnp.dot(a, w67a_ref[...], preferred_element_type=jnp.float32)
              + b67_ref[...])

    # Two independent softmaxes over disjoint lane ranges of the fused (tm, 13)
    # tile: lanes [0, 11) -> fc6 head, lanes [11, 13) -> fc7 head.
    lane = jax.lax.broadcasted_iota(jnp.int32, logits.shape, dimension=1)
    is_h1 = lane < N_ACTIONS

    m1 = jnp.max(jnp.where(is_h1, logits, -jnp.inf), axis=-1, keepdims=True)
    m2 = jnp.max(jnp.where(is_h1, -jnp.inf, logits), axis=-1, keepdims=True)
    shifted = logits - jnp.where(is_h1, m1, m2)
    e = jnp.exp(shifted)
    s1 = jnp.sum(jnp.where(is_h1, e, 0.0), axis=-1, keepdims=True)
    s2 = jnp.sum(jnp.where(is_h1, 0.0, e), axis=-1, keepdims=True)
    denom = jnp.where(is_h1, s1, s2)

    if log_softmax:
        out_ref[...] = shifted - jnp.log(denom)
    else:
        out_ref[...] = e * pl.reciprocal(denom, approx=True)


def init_params(key):
    """Matches ADNetEnhanced.__init__: weights ~ N(0, 0.01), fc4/fc5 bias = 0.1, fc6/fc7 bias = 0.

    Weights stored as (in_features, out_features) so x @ W + b == PyTorch x @ W_torch.T + b.
    """
    k4, k5, k6, k7 = jax.random.split(key, 4)
    return dict(
        w4=(jax.random.normal(k4, (FEAT_DIM, HIDDEN), jnp.float32) * 0.01),
        b4=jnp.full((1, HIDDEN), 0.1, jnp.float32),
        w5=(jax.random.normal(k5, (HIDDEN, HIDDEN), jnp.float32) * 0.01),
        b5=jnp.full((1, HIDDEN), 0.1, jnp.float32),
        w6=(jax.random.normal(k6, (HIDDEN + ACTION_HISTORY_SIZE, N_ACTIONS), jnp.float32) * 0.01),
        b6=jnp.zeros((1, N_ACTIONS), jnp.float32),
        w7=(jax.random.normal(k7, (HIDDEN + ACTION_HISTORY_SIZE, 2), jnp.float32) * 0.01),
        b7=jnp.zeros((1, 2), jnp.float32),
    )


def prepare_params(params, weight_dtype=jnp.bfloat16):
    """One-time prep outside the per-call path: fuse fc6|fc7, split by [h | action],
    and cast weights to the MXU compute dtype (biases stay f32)."""
    w67 = jnp.concatenate([params["w6"], params["w7"]], axis=1)  # (622, 13)
    b67 = jnp.concatenate([params["b6"], params["b7"]], axis=1)  # (1, 13)
    return dict(
        w4=params["w4"].astype(weight_dtype),
        b4=params["b4"].astype(jnp.float32),
        w5=params["w5"].astype(weight_dtype),
        b5=params["b5"].astype(jnp.float32),
        w67f=w67[:HIDDEN].astype(weight_dtype),          # (512, 13)
        w67a=w67[HIDDEN:].astype(weight_dtype),          # (110, 13)
        b67=b67.astype(jnp.float32),                     # (1, 13)
    )


@functools.partial(jax.jit, static_argnames=("log_softmax", "block_m"))
def adnet_enhanced_forward(feats, prepared, actions=None, *, log_softmax=False, block_m=1024):
    """Pallas implementation of ADNetEnhanced.forward(feats, actions, skip_backbone=True).

    feats: (B, 1280) pooled backbone features, ideally already bf16 (f32 also OK).
    Returns (out1 (B, 11), out2 (B, 2)) in float32.
    """
    B = feats.shape[0]
    if actions is None:
        actions = jnp.zeros((B, ACTION_HISTORY_SIZE), feats.dtype)

    # Batch tile: multiple of 8 sublanes, capped by block_m. No host-side pad:
    # Pallas masks the partial last block (out-of-range rows never written back).
    tm = min(block_m, _round_up(B, 8))
    if B >= 16:
        # Guarantee >= 2 grid steps so the "parallel" batch axis can land work
        # on both TensorCores of megacore parts (v7x).
        tm = min(tm, _round_up(pl.cdiv(B, 2), 8))
    grid = (pl.cdiv(B, tm),)

    def batch_spec(n):
        return pl.BlockSpec((tm, n), lambda i: (i, 0))

    def const_spec(shape):
        # Weights/biases: constant index_map -> VMEM-resident across grid steps;
        # single-buffered (no point double-buffering an invariant block).
        return pl.BlockSpec(shape, lambda i: (0, 0), pipeline_mode=pl.Buffered(1))

    kernel = functools.partial(adnet_head_kernel, log_softmax=log_softmax)

    def nbytes(a):
        return int(a.size) * a.dtype.itemsize

    weight_bytes = sum(nbytes(v) for v in prepared.values())
    cost = pl.CostEstimate(
        flops=2 * B * (FEAT_DIM * HIDDEN + HIDDEN * HIDDEN
                       + (HIDDEN + ACTION_HISTORY_SIZE) * FUSED_OUT),
        transcendentals=B * (FUSED_OUT + 2),
        bytes_accessed=nbytes(feats) + nbytes(actions) + weight_bytes + B * FUSED_OUT * 4,
    )

    fused = pl.pallas_call(
        kernel,
        out_shape=jax.ShapeDtypeStruct((B, FUSED_OUT), jnp.float32),
        grid=grid,
        in_specs=[
            batch_spec(FEAT_DIM),                         # feats        (tm, 1280)
            batch_spec(ACTION_HISTORY_SIZE),              # actions      (tm, 110)
            const_spec((FEAT_DIM, HIDDEN)),               # w4  bf16
            const_spec((1, HIDDEN)),                      # b4  f32
            const_spec((HIDDEN, HIDDEN)),                 # w5  bf16
            const_spec((1, HIDDEN)),                      # b5  f32
            const_spec((HIDDEN, FUSED_OUT)),              # w67f bf16
            const_spec((ACTION_HISTORY_SIZE, FUSED_OUT)), # w67a bf16
            const_spec((1, FUSED_OUT)),                   # b67 f32
        ],
        out_specs=batch_spec(FUSED_OUT),                  # fused out    (tm, 13)
        compiler_params=pltpu.CompilerParams(
            dimension_semantics=("parallel",),
            vmem_limit_bytes=48 * 1024 * 1024,
        ),
        cost_estimate=cost,
    )(feats, actions,
      prepared["w4"], prepared["b4"], prepared["w5"], prepared["b5"],
      prepared["w67f"], prepared["w67a"], prepared["b67"])

    # Cheap wrapper-side split of the fused lane-dense output.
    return fused[:, :N_ACTIONS], fused[:, N_ACTIONS:FUSED_OUT]


def _reference_forward(feats, prepared, actions, log_softmax=False):
    """Pure-JAX reference mirroring PyTorch eval-mode semantics, using the same
    (quantized) prepared weights and the same operand-dtype rounding as the kernel."""
    cdt = prepared["w4"].dtype
    f32 = jnp.float32
    x = feats.astype(cdt).astype(f32)
    a = actions.astype(cdt).astype(f32)
    w4 = prepared["w4"].astype(f32)
    w5 = prepared["w5"].astype(f32)
    w67f = prepared["w67f"].astype(f32)
    w67a = prepared["w67a"].astype(f32)

    h = jnp.maximum(x @ w4 + prepared["b4"], 0.0)
    h = jnp.maximum(h.astype(cdt).astype(f32) @ w5 + prepared["b5"], 0.0)
    logits = h.astype(cdt).astype(f32) @ w67f + a @ w67a + prepared["b67"]
    l1, l2 = logits[:, :N_ACTIONS], logits[:, N_ACTIONS:]
    if log_softmax:
        return jax.nn.log_softmax(l1, axis=-1), jax.nn.log_softmax(l2, axis=-1)
    return jax.nn.softmax(l1, axis=-1), jax.nn.softmax(l2, axis=-1)


if __name__ == "__main__":
    key = jax.random.PRNGKey(0)
    kp, kf, ka = jax.random.split(key, 3)

    params = init_params(kp)
    prepared = prepare_params(params)   # bf16 weights, fused fc6|fc7 — done once

    B = 2
    # feats: pooled EfficientNet-b0 features (skip_backbone=True input), (B, 1280).
    # Upstream backbone should emit bf16 directly (halves the dominant HBM stream).
    feats = jax.random.normal(kf, (B, FEAT_DIM), jnp.float32).astype(jnp.bfloat16)
    actions = jax.random.uniform(ka, (B, ACTION_HISTORY_SIZE), jnp.float32)

    out1, out2 = adnet_enhanced_forward(feats, prepared, actions, log_softmax=False)
    out1 = jax.block_until_ready(out1)
    out2 = jax.block_until_ready(out2)

    ref1, ref2 = _reference_forward(feats, prepared, actions, log_softmax=False)
    assert out1.shape == (B, N_ACTIONS) and out2.shape == (B, 2)
    assert jnp.allclose(out1, ref1, atol=2e-3, rtol=2e-3)
    assert jnp.allclose(out2, ref2, atol=2e-3, rtol=2e-3)

    # actions=None default (zeros action history) + log_softmax path
    o1d, o2d = adnet_enhanced_forward(feats, prepared, actions=None, log_softmax=True)
    jax.block_until_ready(o1d)
    jax.block_until_ready(o2d)
    r1d, r2d = _reference_forward(feats, prepared,
                                  jnp.zeros((B, ACTION_HISTORY_SIZE), jnp.float32),
                                  log_softmax=True)
    assert jnp.allclose(o1d, r1d, atol=2e-3, rtol=2e-3)
    assert jnp.allclose(o2d, r2d, atol=2e-3, rtol=2e-3)

    # Multi-step grid with a partial (masked) last tile + f32 feats path:
    # B=20, block_m=8 -> 3 grid steps, last block has 4 valid rows.
    kf2, ka2 = jax.random.split(jax.random.PRNGKey(1))
    B2 = 20
    feats2 = jax.random.normal(kf2, (B2, FEAT_DIM), jnp.float32)
    actions2 = jax.random.uniform(ka2, (B2, ACTION_HISTORY_SIZE), jnp.float32)
    o1b, o2b = adnet_enhanced_forward(feats2, prepared, actions2,
                                      log_softmax=False, block_m=8)
    jax.block_until_ready(o1b)
    jax.block_until_ready(o2b)
    r1b, r2b = _reference_forward(feats2, prepared, actions2, log_softmax=False)
    assert o1b.shape == (B2, N_ACTIONS) and o2b.shape == (B2, 2)
    assert jnp.allclose(o1b, r1b, atol=2e-3, rtol=2e-3)
    assert jnp.allclose(o2b, r2b, atol=2e-3, rtol=2e-3)

    print("KERNEL_OK")
</pallas_src>

<mosaic_0001>
module attributes {stable_mosaic.version = 11 : i64} {
  func.func @adnet_head_kernel(%arg0: i32, %arg1: memref<8x1280xbf16, #tpu.memory_space<vmem>>, %arg2: memref<8x110xf32, #tpu.memory_space<vmem>>, %arg3: memref<1280x512xbf16, #tpu.memory_space<vmem>>, %arg4: memref<1x512xf32, #tpu.memory_space<vmem>>, %arg5: memref<512x512xbf16, #tpu.memory_space<vmem>>, %arg6: memref<1x512xf32, #tpu.memory_space<vmem>>, %arg7: memref<512x13xbf16, #tpu.memory_space<vmem>>, %arg8: memref<110x13xbf16, #tpu.memory_space<vmem>>, %arg9: memref<1x13xf32, #tpu.memory_space<vmem>>, %arg10: memref<8x13xf32, #tpu.memory_space<vmem>>) attributes {dimension_semantics = [#tpu.dimension_semantics<parallel>], iteration_bounds = array<i64: 1>, scalar_prefetch = 0 : i64, scratch_operands = 0 : i64, tpu.core_type = #tpu.core_type<tc>, window_params = [{transform_indices = @transform_0, window_bounds = array<i64: 8, 1280>}, {transform_indices = @transform_1, window_bounds = array<i64: 8, 110>}, {pipeline_mode = #tpu.pipeline_mode<synchronous>, transform_indices = @transform_2, window_bounds = array<i64: 1280, 512>}, {pipeline_mode = #tpu.pipeline_mode<synchronous>, transform_indices = @transform_3, window_bounds = array<i64: 1, 512>}, {pipeline_mode = #tpu.pipeline_mode<synchronous>, transform_indices = @transform_4, window_bounds = array<i64: 512, 512>}, {pipeline_mode = #tpu.pipeline_mode<synchronous>, transform_indices = @transform_5, window_bounds = array<i64: 1, 512>}, {pipeline_mode = #tpu.pipeline_mode<synchronous>, transform_indices = @transform_6, window_bounds = array<i64: 512, 13>}, {pipeline_mode = #tpu.pipeline_mode<synchronous>, transform_indices = @transform_7, window_bounds = array<i64: 110, 13>}, {pipeline_mode = #tpu.pipeline_mode<synchronous>, transform_indices = @transform_8, window_bounds = array<i64: 1, 13>}, {transform_indices = @transform_9, window_bounds = array<i64: 8, 13>}]} {
    %c0 = arith.constant 0 : index
    %c0_0 = arith.constant 0 : index
    %0 = vector.load %arg1[%c0, %c0_0] : memref<8x1280xbf16, #tpu.memory_space<vmem>>, vector<8x1280xbf16>
    %c0_1 = arith.constant 0 : index
    %c0_2 = arith.constant 0 : index
    %1 = vector.load %arg3[%c0_1, %c0_2] : memref<1280x512xbf16, #tpu.memory_space<vmem>>, vector<1280x512xbf16>
    %cst = arith.constant dense<0.000000e+00> : vector<8x512xf32>
    %2 = tpu.matmul %0, %1, %cst {dimension_numbers = #tpu.dot_dimension_numbers<[1], [0], [0], [1], [0, 0, 1, 1], [], []>} : vector<8x1280xbf16>, vector<1280x512xbf16>, vector<8x512xf32> -> vector<8x512xf32>
    %c0_3 = arith.constant 0 : index
    %c0_4 = arith.constant 0 : index
    %3 = vector.load %arg4[%c0_3, %c0_4] : memref<1x512xf32, #tpu.memory_space<vmem>>, vector<1x512xf32>
    %4 = vector.broadcast %3 : vector<1x512xf32> to vector<8x512xf32>
    %5 = arith.addf %2, %4 : vector<8x512xf32>
    %cst_5 = arith.constant 0.000000e+00 : f32
    %6 = vector.broadcast %cst_5 : f32 to vector<8x512xf32>
    %7 = arith.maximumf %5, %6 : vector<8x512xf32>
    %8 = arith.truncf %7 : vector<8x512xf32> to vector<8x512xbf16>
    %c0_6 = arith.constant 0 : index
    %c0_7 = arith.constant 0 : index
    %9 = vector.load %arg5[%c0_6, %c0_7] : memref<512x512xbf16, #tpu.memory_space<vmem>>, vector<512x512xbf16>
    %cst_8 = arith.constant dense<0.000000e+00> : vector<8x512xf32>
    %10 = tpu.matmul %8, %9, %cst_8 {dimension_numbers = #tpu.dot_dimension_numbers<[1], [0], [0], [1], [0, 0, 1, 1], [], []>} : vector<8x512xbf16>, vector<512x512xbf16>, vector<8x512xf32> -> vector<8x512xf32>
    %c0_9 = arith.constant 0 : index
    %c0_10 = arith.constant 0 : index
    %11 = vector.load %arg6[%c0_9, %c0_10] : memref<1x512xf32, #tpu.memory_space<vmem>>, vector<1x512xf32>
    %12 = vector.broadcast %11 : vector<1x512xf32> to vector<8x512xf32>
    %13 = arith.addf %10, %12 : vector<8x512xf32>
    %cst_11 = arith.constant 0.000000e+00 : f32
    %14 = vector.broadcast %cst_11 : f32 to vector<8x512xf32>
    %15 = arith.maximumf %13, %14 : vector<8x512xf32>
    %c0_12 = arith.constant 0 : index
    %c0_13 = arith.constant 0 : index
    %16 = vector.load %arg2[%c0_12, %c0_13] : memref<8x110xf32, #tpu.memory_space<vmem>>, vector<8x110xf32>
    %17 = arith.truncf %16 : vector<8x110xf32> to vector<8x110xbf16>
    %18 = arith.truncf %15 : vector<8x512xf32> to vector<8x512xbf16>
    %c0_14 = arith.constant 0 : index
    %c0_15 = arith.constant 0 : index
    %19 = vector.load %arg7[%c0_14, %c0_15] : memref<512x13xbf16, #tpu.memory_space<vmem>>, vector<512x13xbf16>
    %cst_16 = arith.constant dense<0.000000e+00> : vector<8x13xf32>
    %20 = tpu.matmul %18, %19, %cst_16 {dimension_numbers = #tpu.dot_dimension_numbers<[1], [0], [0], [1], [0, 0, 1, 1], [], []>} : vector<8x512xbf16>, vector<512x13xbf16>, vector<8x13xf32> -> vector<8x13xf32>
    %c0_17 = arith.constant 0 : index
    %c0_18 = arith.constant 0 : index
    %21 = vector.load %arg8[%c0_17, %c0_18] : memref<110x13xbf16, #tpu.memory_space<vmem>>, vector<110x13xbf16>
    %cst_19 = arith.constant dense<0.000000e+00> : vector<8x13xf32>
    %22 = tpu.matmul %17, %21, %cst_19 {dimension_numbers = #tpu.dot_dimension_numbers<[1], [0], [0], [1], [0, 0, 1, 1], [], []>} : vector<8x110xbf16>, vector<110x13xbf16>, vector<8x13xf32> -> vector<8x13xf32>
    %23 = arith.addf %20, %22 : vector<8x13xf32>
    %c0_20 = arith.constant 0 : index
    %c0_21 = arith.constant 0 : index
    %24 = vector.load %arg9[%c0_20, %c0_21] : memref<1x13xf32, #tpu.memory_space<vmem>>, vector<1x13xf32>
    %25 = vector.broadcast %24 : vector<1x13xf32> to vector<8x13xf32>
    %26 = arith.addf %23, %25 : vector<8x13xf32>
    %27 = tpu.iota {dimensions = array<i32: 1>} : vector<8x13xi32>
    %c11_i32 = arith.constant 11 : i32
    %28 = vector.broadcast %c11_i32 : i32 to vector<8x13xi32>
    %29 = arith.cmpi slt, %27, %28 : vector<8x13xi32>
    %cst_22 = arith.constant 0xFF800000 : f32
    %30 = vector.broadcast %cst_22 : f32 to vector<8x13xf32>
    %31 = arith.select %29, %26, %30 : vector<8x13xi1>, vector<8x13xf32>
    %cst_23 = arith.constant dense<0xFF800000> : vector<8xf32>
    %32 = vector.multi_reduction <maximumf>, %31, %cst_23 [1] : vector<8x13xf32> to vector<8xf32>
    %33 = vector.shape_cast %32 : vector<8xf32> to vector<8x1xf32>
    %cst_24 = arith.constant 0xFF800000 : f32
    %34 = vector.broadcast %cst_24 : f32 to vector<8x13xf32>
    %35 = arith.select %29, %34, %26 : vector<8x13xi1>, vector<8x13xf32>
    %cst_25 = arith.constant dense<0xFF800000> : vector<8xf32>
    %36 = vector.multi_reduction <maximumf>, %35, %cst_25 [1] : vector<8x13xf32> to vector<8xf32>
    %37 = vector.shape_cast %36 : vector<8xf32> to vector<8x1xf32>
    %38 = vector.shape_cast %33 : vector<8x1xf32> to vector<8x1xf32>
    %39 = vector.broadcast %38 : vector<8x1xf32> to vector<8x13xf32>
    %40 = vector.shape_cast %37 : vector<8x1xf32> to vector<8x1xf32>
    %41 = vector.broadcast %40 : vector<8x1xf32> to vector<8x13xf32>
    %42 = arith.select %29, %39, %41 : vector<8x13xi1>, vector<8x13xf32>
    %43 = arith.subf %26, %42 : vector<8x13xf32>
    %44 = math.exp %43 : vector<8x13xf32>
    %cst_26 = arith.constant 0.000000e+00 : f32
    %45 = vector.broadcast %cst_26 : f32 to vector<8x13xf32>
    %46 = arith.select %29, %44, %45 : vector<8x13xi1>, vector<8x13xf32>
    %cst_27 = arith.constant dense<0.000000e+00> : vector<8xf32>
    %47 = vector.multi_reduction <add>, %46, %cst_27 [1] : vector<8x13xf32> to vector<8xf32>
    %48 = vector.shape_cast %47 : vector<8xf32> to vector<8x1xf32>
    %cst_28 = arith.constant 0.000000e+00 : f32
    %49 = vector.broadcast %cst_28 : f32 to vector<8x13xf32>
    %50 = arith.select %29, %49, %44 : vector<8x13xi1>, vector<8x13xf32>
    %cst_29 = arith.constant dense<0.000000e+00> : vector<8xf32>
    %51 = vector.multi_reduction <add>, %50, %cst_29 [1] : vector<8x13xf32> to vector<8xf32>
    %52 = vector.shape_cast %51 : vector<8xf32> to vector<8x1xf32>
    %53 = vector.shape_cast %48 : vector<8x1xf32> to vector<8x1xf32>
    %54 = vector.broadcast %53 : vector<8x1xf32> to vector<8x13xf32>
    %55 = vector.shape_cast %52 : vector<8x1xf32> to vector<8x1xf32>
    %56 = vector.broadcast %55 : vector<8x1xf32> to vector<8x13xf32>
    %57 = arith.select %29, %54, %56 : vector<8x13xi1>, vector<8x13xf32>
    %58 = tpu.reciprocal %57 {approx = true} : vector<8x13xf32> -> vector<8x13xf32>
    %59 = arith.mulf %44, %58 : vector<8x13xf32>
    %c0_30 = arith.constant 0 : index
    %c0_31 = arith.constant 0 : index
    %60 = vector.load %arg10[%c0_30, %c0_31] : memref<8x13xf32, #tpu.memory_space<vmem>>, vector<8x13xf32>
    tpu.vector_store %arg10[%c0_30, %c0_31], %59 {strides = array<i32>} : memref<8x13xf32, #tpu.memory_space<vmem>>, vector<8x13xf32>,
    return
  }
  func.func @transform_0(%arg0: i32) -> (i32, i32) {
    %c0_i32 = arith.constant 0 : i32
    %c0_i32_0 = arith.constant 0 : i32
    return %arg0, %c0_i32 : i32, i32
  }
  func.func @transform_1(%arg0: i32) -> (i32, i32) {
    %c0_i32 = arith.constant 0 : i32
    %c0_i32_0 = arith.constant 0 : i32
    return %arg0, %c0_i32 : i32, i32
  }
  func.func @transform_2(%arg0: i32) -> (i32, i32) {
    %c0_i32 = arith.constant 0 : i32
    %c0_i32_0 = arith.constant 0 : i32
    %c0_i32_1 = arith.constant 0 : i32
    return %c0_i32, %c0_i32_0 : i32, i32
  }
  func.func @transform_3(%arg0: i32) -> (i32, i32) {
    %c0_i32 = arith.constant 0 : i32
    %c0_i32_0 = arith.constant 0 : i32
    %c0_i32_1 = arith.constant 0 : i32
    return %c0_i32, %c0_i32_0 : i32, i32
  }
  func.func @transform_4(%arg0: i32) -> (i32, i32) {
    %c0_i32 = arith.constant 0 : i32
    %c0_i32_0 = arith.constant 0 : i32
    %c0_i32_1 = arith.constant 0 : i32
    return %c0_i32, %c0_i32_0 : i32, i32
  }
  func.func @transform_5(%arg0: i32) -> (i32, i32) {
    %c0_i32 = arith.constant 0 : i32
    %c0_i32_0 = arith.constant 0 : i32
    %c0_i32_1 = arith.constant 0 : i32
    return %c0_i32, %c0_i32_0 : i32, i32
  }
  func.func @transform_6(%arg0: i32) -> (i32, i32) {
    %c0_i32 = arith.constant 0 : i32
    %c0_i32_0 = arith.constant 0 : i32
    %c0_i32_1 = arith.constant 0 : i32
    return %c0_i32, %c0_i32_0 : i32, i32
  }
  func.func @transform_7(%arg0: i32) -> (i32, i32) {
    %c0_i32 = arith.constant 0 : i32
    %c0_i32_0 = arith.constant 0 : i32
    %c0_i32_1 = arith.constant 0 : i32
    return %c0_i32, %c0_i32_0 : i32, i32
  }
  func.func @transform_8(%arg0: i32) -> (i32, i32) {
    %c0_i32 = arith.constant 0 : i32
    %c0_i32_0 = arith.constant 0 : i32
    %c0_i32_1 = arith.constant 0 : i32
    return %c0_i32, %c0_i32_0 : i32, i32
  }
  func.func @transform_9(%arg0: i32) -> (i32, i32) {
    %c0_i32 = arith.constant 0 : i32
    %c0_i32_0 = arith.constant 0 : i32
    return %arg0, %c0_i32 : i32, i32
  }
}

</mosaic_0001>

<llo_original>
// kernel: adnet_enhanced_forward.1
$region0: #{adnet_enhanced_forward.1}
  #allocation0 [shape = 'u32[]', space=smem, size = 0x4, offset = 0x4, fixed_abs, tag = 'smem constant byte address 0x4 - core index']
  #allocation1 [shape = 'u32[144,128]{1,0:T(1,128)}', space=vmem, size = 0x12000, scoped, tag = 'internal scratch']
  %s0 = inlined_call_operand.hbm [shape: bf16[2,1280], index: 0, kind: input, shape index: {}]
  %s1 = inlined_call_operand.hbm [shape: f32[2,110], index: 1, kind: input, shape index: {}]
  %s2 = inlined_call_operand.hbm [shape: bf16[1280,512], index: 2, kind: input, shape index: {}]
  %s3 = inlined_call_operand.hbm [shape: f32[1,512], index: 3, kind: input, shape index: {}]
  %s4 = inlined_call_operand.hbm [shape: bf16[512,512], index: 4, kind: input, shape index: {}]
  %s5 = inlined_call_operand.hbm [shape: f32[1,512], index: 5, kind: input, shape index: {}]
  %s6 = inlined_call_operand.vmem [shape: bf16[512,13], index: 6, kind: input, shape index: {}]
  %s7 = inlined_call_operand.vmem [shape: bf16[110,13], index: 7, kind: input, shape index: {}]
  %s8 = inlined_call_operand.hbm [shape: f32[1,13], index: 8, kind: input, shape index: {}]
  %s9 = inlined_call_operand.vmem [shape: f32[2,13], index: 9, kind: output, shape index: {}]
  %s10 = sld [smem:[#allocation0]]
  $region104: #{adnet_enhanced_forward.1} parent=0
    _
  %s12 = ssub.s32 1, %s10
  %s13 = scalar_select 0, %s12, %s10
  $region1: #{adnet_enhanced_forward.1} parent=0
    #allocation2 [shape = 'u8[20480]{0}', space=vmem, size = 0x5000, scoped, tag = 'input window, operand 0, single buffered']
    #allocation3 [shape = 's32[1]{0}', space=sflag, size = 0x4, scoped, tag = 'scoped memory for adnet_enhanced_forward.1']
    #allocation4 [shape = 'u8[4096]{0}', space=vmem, size = 0x1000, scoped, tag = 'input window, operand 1, single buffered']
    #allocation5 [shape = 's32[1]{0}', space=sflag, size = 0x4, scoped, tag = 'scoped memory for adnet_enhanced_forward.1']
    #allocation6 [shape = 'u8[1310720]{0}', space=vmem, size = 0x140000, scoped, tag = 'input window, operand 2, single buffered']
    #allocation7 [shape = 'u8[2048]{0}', space=vmem, size = 0x800, scoped, tag = 'input window, operand 3, single buffered']
    #allocation8 [shape = 's32[1]{0}', space=sflag, size = 0x4, scoped, tag = 'scoped memory for adnet_enhanced_forward.1']
    #allocation9 [shape = 'u8[524288]{0}', space=vmem, size = 0x80000, scoped, tag = 'input window, operand 4, single buffered']
    #allocation10 [shape = 'u8[2048]{0}', space=vmem, size = 0x800, scoped, tag = 'input window, operand 5, single buffered']
    #allocation11 [shape = 's32[1]{0}', space=sflag, size = 0x4, scoped, tag = 'scoped memory for adnet_enhanced_forward.1']
    #allocation12 [shape = 'u8[512]{0}', space=vmem, size = 0x400, scoped, tag = 'input window, operand 8, single buffered']
    #allocation13 [shape = 'u8[4096]{0}', space=vmem, size = 0x1000, scoped, tag = 'output window, operand 0, single buffered']
    %14 = vsyncpa [#allocation3], 0
    %15 = vsyncpa [#allocation5], 0
    %16 = vsyncpa [#allocation8], 0
    %17 = vsyncpa [#allocation11], 0
    // Predicated region
    $region2: #{adnet_enhanced_forward.1} parent=1 // pred_check
      _
    $region3: #{adnet_enhanced_forward.1} parent=1 // pred_check_branch
      %19 = sbr.rel (0) target = $region5
    $region4: #{adnet_enhanced_forward.1} parent=1 // pred_region
      %s21 = ssub.s32 640, 160
      %22 = vsyncadd [#allocation3], %s21
      %s23 = sshll.u32 [#allocation2], 4
      %s24 = int_to_ptr.vmem [resolvable:$true] %s23
      %29 = dma.hbm_to_vmem [thread:$0]  %s0, 160, %s24, [#allocation3], 160, 160, 10
    $region5: #{adnet_enhanced_forward.1} parent=1 // pred_fallthru
      _
    // Predicated region
    $region6: #{adnet_enhanced_forward.1} parent=1 // pred_check
      _
    $region7: #{adnet_enhanced_forward.1} parent=1 // pred_check_branch
      %31 = sbr.rel (0) target = $region9
    $region8: #{adnet_enhanced_forward.1} parent=1 // pred_region
      %s33 = ssub.s32 128, 32
      %34 = vsyncadd [#allocation5], %s33
      %s35 = sshll.u32 [#allocation4], 4
      %s36 = int_to_ptr.vmem [resolvable:$true] %s35
      %41 = dma.hbm_to_vmem [thread:$0]  %s1, 32, %s36, [#allocation5], 32, 32, 2
    $region9: #{adnet_enhanced_forward.1} parent=1 // pred_fallthru
      _
    // Predicated region
    $region10: #{adnet_enhanced_forward.1} parent=1 // pred_check
      _
    $region11: #{adnet_enhanced_forward.1} parent=1 // pred_check_branch
      %43 = sbr.rel (0) target = $region13
    $region12: #{adnet_enhanced_forward.1} parent=1 // pred_region
      %s45 = ssub.s32 40960, 40960
      %46 = vsyncadd [#allocation5], %s45
      %s47 = sshll.u32 [#allocation6], 4
      %s48 = int_to_ptr.vmem [resolvable:$true] %s47
      %53 = dma.hbm_to_vmem [thread:$0]  %s2, 40960, %s48, [#allocation5], 256, 256, 16
    $region13: #{adnet_enhanced_forward.1} parent=1 // pred_fallthru
      _
    // Predicated region
    $region14: #{adnet_enhanced_forward.1} parent=1 // pred_check
      _
    $region15: #{adnet_enhanced_forward.1} parent=1 // pred_check_branch
      %55 = sbr.rel (0) target = $region17
    $region16: #{adnet_enhanced_forward.1} parent=1 // pred_region
      %s57 = ssub.s32 64, 64
      %58 = vsyncadd [#allocation8], %s57
      %s60 = sshll.u32 [#allocation7], 4
      %s61 = int_to_ptr.vmem [resolvable:$true] %s60
      %63 = dma.hbm_to_vmem [thread:$0]  %s3, 64, %s61, [#allocation8]
    $region17: #{adnet_enhanced_forward.1} parent=1 // pred_fallthru
      _
    // Predicated region
    $region18: #{adnet_enhanced_forward.1} parent=1 // pred_check
      _
    $region19: #{adnet_enhanced_forward.1} parent=1 // pred_check_branch
      %65 = sbr.rel (0) target = $region21
    $region20: #{adnet_enhanced_forward.1} parent=1 // pred_region
      %s67 = ssub.s32 16384, 16384
      %68 = vsyncadd [#allocation8], %s67
      %s69 = sshll.u32 [#allocation9], 4
      %s70 = int_to_ptr.vmem [resolvable:$true] %s69
      %75 = dma.hbm_to_vmem [thread:$0]  %s4, 16384, %s70, [#allocation8], 256, 256, 16
    $region21: #{adnet_enhanced_forward.1} parent=1 // pred_fallthru
      _
    // Predicated region
    $region22: #{adnet_enhanced_forward.1} parent=1 // pred_check
      _
    $region23: #{adnet_enhanced_forward.1} parent=1 // pred_check_branch
      %77 = sbr.rel (0) target = $region25
    $region24: #{adnet_enhanced_forward.1} parent=1 // pred_region
      %s79 = ssub.s32 64, 64
      %80 = vsyncadd [#allocation11], %s79
      %s82 = sshll.u32 [#allocation10], 4
      %s83 = int_to_ptr.vmem [resolvable:$true] %s82
      %85 = dma.hbm_to_vmem [thread:$0]  %s5, 64, %s83, [#allocation11]
    $region25: #{adnet_enhanced_forward.1} parent=1 // pred_fallthru
      _
    // Predicated region
    $region26: #{adnet_enhanced_forward.1} parent=1 // pred_check
      _
    $region27: #{adnet_enhanced_forward.1} parent=1 // pred_check_branch
      %87 = sbr.rel (0) target = $region29
    $region28: #{adnet_enhanced_forward.1} parent=1 // pred_region
      _
    $region29: #{adnet_enhanced_forward.1} parent=1 // pred_fallthru
      _
    // Predicated region
    $region30: #{adnet_enhanced_forward.1} parent=1 // pred_check
      _
    $region31: #{adnet_enhanced_forward.1} parent=1 // pred_check_branch
      %89 = sbr.rel (0) target = $region33
    $region32: #{adnet_enhanced_forward.1} parent=1 // pred_region
      _
    $region33: #{adnet_enhanced_forward.1} parent=1 // pred_fallthru
      _
    // Predicated region
    $region34: #{adnet_enhanced_forward.1} parent=1 // pred_check
      _
    $region35: #{adnet_enhanced_forward.1} parent=1 // pred_check_branch
      %91 = sbr.rel (0) target = $region37
    $region36: #{adnet_enhanced_forward.1} parent=1 // pred_region
      %s93 = ssub.s32 16, 16
      %94 = vsyncadd [#allocation11], %s93
      %s96 = sshll.u32 [#allocation12], 4
      %s97 = int_to_ptr.vmem [resolvable:$true] %s96
      %99 = dma.hbm_to_vmem [thread:$0]  %s8, 16, %s97, [#allocation11]
    $region37: #{adnet_enhanced_forward.1} parent=1 // pred_fallthru
      _
    // Predicated region
    $region38: #{adnet_enhanced_forward.1} parent=1 // pred_check
      _
    $region39: #{adnet_enhanced_forward.1} parent=1 // pred_check_branch
      %101 = sbr.rel (0) target = $region41
    $region40: #{adnet_enhanced_forward.1} parent=1 // pred_region
      %102 = dma.done [#allocation3], 640
    $region41: #{adnet_enhanced_forward.1} parent=1 // pred_fallthru
      _
    // Predicated region
    $region42: #{adnet_enhanced_forward.1} parent=1 // pred_check
      _
    $region43: #{adnet_enhanced_forward.1} parent=1 // pred_check_branch
      %104 = sbr.rel (0) target = $region45
    $region44: #{adnet_enhanced_forward.1} parent=1 // pred_region
      %105 = dma.done [#allocation5], 128
    $region45: #{adnet_enhanced_forward.1} parent=1 // pred_fallthru
      _
    // Predicated region
    $region46: #{adnet_enhanced_forward.1} parent=1 // pred_check
      _
    $region47: #{adnet_enhanced_forward.1} parent=1 // pred_check_branch
      %107 = sbr.rel (0) target = $region49
    $region48: #{adnet_enhanced_forward.1} parent=1 // pred_region
      %108 = dma.done [#allocation5], 40960
    $region49: #{adnet_enhanced_forward.1} parent=1 // pred_fallthru
      _
    // Predicated region
    $region50: #{adnet_enhanced_forward.1} parent=1 // pred_check
      _
    $region51: #{adnet_enhanced_forward.1} parent=1 // pred_check_branch
      %110 = sbr.rel (0) target = $region53
    $region52: #{adnet_enhanced_forward.1} parent=1 // pred_region
      %111 = dma.done [#allocation8], 64
    $region53: #{adnet_enhanced_forward.1} parent=1 // pred_fallthru
      _
    // Predicated region
    $region54: #{adnet_enhanced_forward.1} parent=1 // pred_check
      _
    $region55: #{adnet_enhanced_forward.1} parent=1 // pred_check_branch
      %113 = sbr.rel (0) target = $region57
    $region56: #{adnet_enhanced_forward.1} parent=1 // pred_region
      %114 = dma.done [#allocation8], 16384
    $region57: #{adnet_enhanced_forward.1} parent=1 // pred_fallthru
      _
    // Predicated region
    $region58: #{adnet_enhanced_forward.1} parent=1 // pred_check
      _
    $region59: #{adnet_enhanced_forward.1} parent=1 // pred_check_branch
      %116 = sbr.rel (0) target = $region61
    $region60: #{adnet_enhanced_forward.1} parent=1 // pred_region
      %117 = dma.done [#allocation11], 64
    $region61: #{adnet_enhanced_forward.1} parent=1 // pred_fallthru
      _
    // Predicated region
    $region62: #{adnet_enhanced_forward.1} parent=1 // pred_check
      _
    $region63: #{adnet_enhanced_forward.1} parent=1 // pred_check_branch
      %119 = sbr.rel (0) target = $region65
    $region64: #{adnet_enhanced_forward.1} parent=1 // pred_region
      %120 = dma.done [#allocation11], 16
    $region65: #{adnet_enhanced_forward.1} parent=1 // pred_fallthru
      _
    %v122 = vld [vmem:[#allocation2] sm:$0xff]
    %v123 = vld [vmem:[#allocation2 + $0x8] sm:$0x3]
    %v124 = vld [vmem:[#allocation2 + $0xa] sm:$0xff]
    %v125 = vld [vmem:[#allocation2 + $0x12] sm:$0x3]
    %v126 = vld [vmem:[#allocation2 + $0x14] sm:$0xff]
    %v127 = vld [vmem:[#allocation2 + $0x1c] sm:$0x3]
    %v128 = vld [vmem:[#allocation2 + $0x1e] sm:$0xff]
    %v129 = vld [vmem:[#allocation2 + $0x26] sm:$0x3]
    %v130 = vld [vmem:[#allocation6] sm:$0xff]
    %v131 = vld [vmem:[#allocation6 + $0x8] sm:$0xff]
    %v132 = vld [vmem:[#allocation6 + $0x10] sm:$0xff]
    %v133 = vld [vmem:[#allocation6 + $0x18] sm:$0xff]
    %v134 = vld [vmem:[#allocation6 + $0x20] sm:$0xff]
    %v135 = vld [vmem:[#allocation6 + $0x28] sm:$0xff]
    %v136 = vld [vmem:[#allocation6 + $0x30] sm:$0xff]
    %v137 = vld [vmem:[#allocation6 + $0x38] sm:$0xff]
    %v138 = vld [vmem:[#allocation6 + $0x40] sm:$0xff]
    %v139 = vld [vmem:[#allocation6 + $0x48] sm:$0xff]
    %v140 = vld [vmem:[#allocation6 + $0x50] sm:$0xff]
    %v141 = vld [vmem:[#allocation6 + $0x58] sm:$0xff]
    %v142 = vld [vmem:[#allocation6 + $0x60] sm:$0xff]
    %v143 = vld [vmem:[#allocation6 + $0x68] sm:$0xff]
    %v144 = vld [vmem:[#allocation6 + $0x70] sm:$0xff]
    %v145 = vld [vmem:[#allocation6 + $0x78] sm:$0xff]
    %v146 = vld [vmem:[#allocation6 + $0x80] sm:$0xff]
    %v147 = vld [vmem:[#allocation6 + $0x88] sm:$0xff]
    %v148 = vld [vmem:[#allocation6 + $0x90] sm:$0xff]
    %v149 = vld [vmem:[#allocation6 + $0x98] sm:$0xff]
    %v150 = vld [vmem:[#allocation6 + $0xa0] sm:$0xff]
    %v151 = vld [vmem:[#allocation6 + $0xa8] sm:$0xff]
    %v152 = vld [vmem:[#allocation6 + $0xb0] sm:$0xff]
    %v153 = vld [vmem:[#allocation6 + $0xb8] sm:$0xff]
    %v154 = vld [vmem:[#allocation6 + $0xc0] sm:$0xff]
    %v155 = vld [vmem:[#allocation6 + $0xc8] sm:$0xff]
    %v156 = vld [vmem:[#allocation6 + $0xd0] sm:$0xff]
    %v157 = vld [vmem:[#allocation6 + $0xd8] sm:$0xff]
    %v158 = vld [vmem:[#allocation6 + $0xe0] sm:$0xff]
    %v159 = vld [vmem:[#allocation6 + $0xe8] sm:$0xff]
    %v160 = vld [vmem:[#allocation6 + $0xf0] sm:$0xff]
    %v161 = vld [vmem:[#allocation6 + $0xf8] sm:$0xff]
    %v162 = vld [vmem:[#allocation6 + $0x100] sm:$0xff]
    %v163 = vld [vmem:[#allocation6 + $0x108] sm:$0xff]
    %v164 = vld [vmem:[#allocation6 + $0x110] sm:$0xff]
    %v165 = vld [vmem:[#allocation6 + $0x118] sm:$0xff]
    %v166 = vld [vmem:[#allocation6 + $0x120] sm:$0xff]
    %v167 = vld [vmem:[#allocation6 + $0x128] sm:$0xff]
    %v168 = vld [vmem:[#allocation6 + $0x130] sm:$0xff]
    %v169 = vld [vmem:[#allocation6 + $0x138] sm:$0xff]
    %v170 = vld [vmem:[#allocation6 + $0x140] sm:$0xff]
    %v171 = vld [vmem:[#allocation6 + $0x148] sm:$0xff]
    %v172 = vld [vmem:[#allocation6 + $0x150] sm:$0xff]
    %v173 = vld [vmem:[#allocation6 + $0x158] sm:$0xff]
    %v174 = vld [vmem:[#allocation6 + $0x160] sm:$0xff]
    %v175 = vld [vmem:[#allocation6 + $0x168] sm:$0xff]
    %v176 = vld [vmem:[#allocation6 + $0x170] sm:$0xff]
    %v177 = vld [vmem:[#allocation6 + $0x178] sm:$0xff]
    %v178 = vld [vmem:[#allocation6 + $0x180] sm:$0xff]
    %v179 = vld [vmem:[#allocation6 + $0x188] sm:$0xff]
    %v180 = vld [vmem:[#allocation6 + $0x190] sm:$0xff]
    %v181 = vld [vmem:[#allocation6 + $0x198] sm:$0xff]
    %v182 = vld [vmem:[#allocation6 + $0x1a0] sm:$0xff]
    %v183 = vld [vmem:[#allocation6 + $0x1a8] sm:$0xff]
    %v184 = vld [vmem:[#allocation6 + $0x1b0] sm:$0xff]
    %v185 = vld [vmem:[#allocation6 + $0x1b8] sm:$0xff]
    %v186 = vld [vmem:[#allocation6 + $0x1c0] sm:$0xff]
    %v187 = vld [vmem:[#allocation6 + $0x1c8] sm:$0xff]
    %v188 = vld [vmem:[#allocation6 + $0x1d0] sm:$0xff]
    %v189 = vld [vmem:[#allocation6 + $0x1d8] sm:$0xff]
    %v190 = vld [vmem:[#allocation6 + $0x1e0] sm:$0xff]
    %v191 = vld [vmem:[#allocation6 + $0x1e8] sm:$0xff]
    %v192 = vld [vmem:[#allocation6 + $0x1f0] sm:$0xff]
    %v193 = vld [vmem:[#allocation6 + $0x1f8] sm:$0xff]
    %v194 = vld [vmem:[#allocation6 + $0x200] sm:$0xff]
    %v195 = vld [vmem:[#allocation6 + $0x208] sm:$0xff]
    %v196 = vld [vmem:[#allocation6 + $0x210] sm:$0xff]
    %v197 = vld [vmem:[#allocation6 + $0x218] sm:$0xff]
    %v198 = vld [vmem:[#allocation6 + $0x220] sm:$0xff]
    %v199 = vld [vmem:[#allocation6 + $0x228] sm:$0xff]
    %v200 = vld [vmem:[#allocation6 + $0x230] sm:$0xff]
    %v201 = vld [vmem:[#allocation6 + $0x238] sm:$0xff]
    %v202 = vld [vmem:[#allocation6 + $0x240] sm:$0xff]
    %v203 = vld [vmem:[#allocation6 + $0x248] sm:$0xff]
    %v204 = vld [vmem:[#allocation6 + $0x250] sm:$0xff]
    %v205 = vld [vmem:[#allocation6 + $0x258] sm:$0xff]
    %v206 = vld [vmem:[#allocation6 + $0x260] sm:$0xff]
    %v207 = vld [vmem:[#allocation6 + $0x268] sm:$0xff]
    %v208 = vld [vmem:[#allocation6 + $0x270] sm:$0xff]
    %v209 = vld [vmem:[#allocation6 + $0x278] sm:$0xff]
    %v210 = vld [vmem:[#allocation6 + $0x280] sm:$0xff]
    %v211 = vld [vmem:[#allocation6 + $0x288] sm:$0xff]
    %v212 = vld [vmem:[#allocation6 + $0x290] sm:$0xff]
    %v213 = vld [vmem:[#allocation6 + $0x298] sm:$0xff]
    %v214 = vld [vmem:[#allocation6 + $0x2a0] sm:$0xff]
    %v215 = vld [vmem:[#allocation6 + $0x2a8] sm:$0xff]
    %v216 = vld [vmem:[#allocation6 + $0x2b0] sm:$0xff]
    %v217 = vld [vmem:[#allocation6 + $0x2b8] sm:$0xff]
    %v218 = vld [vmem:[#allocation6 + $0x2c0] sm:$0xff]
    %v219 = vld [vmem:[#allocation6 + $0x2c8] sm:$0xff]
    %v220 = vld [vmem:[#allocation6 + $0x2d0] sm:$0xff]
    %v221 = vld [vmem:[#allocation6 + $0x2d8] sm:$0xff]
    %v222 = vld [vmem:[#allocation6 + $0x2e0] sm:$0xff]
    %v223 = vld [vmem:[#allocation6 + $0x2e8] sm:$0xff]
    %v224 = vld [vmem:[#allocation6 + $0x2f0] sm:$0xff]
    %v225 = vld [vmem:[#allocation6 + $0x2f8] sm:$0xff]
    %v226 = vld [vmem:[#allocation6 + $0x300] sm:$0xff]
    %v227 = vld [vmem:[#allocation6 + $0x308] sm:$0xff]
    %v228 = vld [vmem:[#allocation6 + $0x310] sm:$0xff]
    %v229 = vld [vmem:[#allocation6 + $0x318] sm:$0xff]
    %v230 = vld [vmem:[#allocation6 + $0x320] sm:$0xff]
    %v231 = vld [vmem:[#allocation6 + $0x328] sm:$0xff]
    %v232 = vld [vmem:[#allocation6 + $0x330] sm:$0xff]
    %v233 = vld [vmem:[#allocation6 + $0x338] sm:$0xff]
    %v234 = vld [vmem:[#allocation6 + $0x340] sm:$0xff]
    %v235 = vld [vmem:[#allocation6 + $0x348] sm:$0xff]
    %v236 = vld [vmem:[#allocation6 + $0x350] sm:$0xff]
    %v237 = vld [vmem:[#allocation6 + $0x358] sm:$0xff]
    %v238 = vld [vmem:[#allocation6 + $0x360] sm:$0xff]
    %v239 = vld [vmem:[#allocation6 + $0x368] sm:$0xff]
    %v240 = vld [vmem:[#allocation6 + $0x370] sm:$0xff]
    %v241 = vld [vmem:[#allocation6 + $0x378] sm:$0xff]
    %v242 = vld [vmem:[#allocation6 + $0x380] sm:$0xff]
    %v243 = vld [vmem:[#allocation6 + $0x388] sm:$0xff]
    %v244 = vld [vmem:[#allocation6 + $0x390] sm:$0xff]
    %v245 = vld [vmem:[#allocation6 + $0x398] sm:$0xff]
    %v246 = vld [vmem:[#allocation6 + $0x3a0] sm:$0xff]
    %v247 = vld [vmem:[#allocation6 + $0x3a8] sm:$0xff]
    %v248 = vld [vmem:[#allocation6 + $0x3b0] sm:$0xff]
    %v249 = vld [vmem:[#allocation6 + $0x3b8] sm:$0xff]
    %v250 = vld [vmem:[#allocation6 + $0x3c0] sm:$0xff]
    %v251 = vld [vmem:[#allocation6 + $0x3c8] sm:$0xff]
    %v252 = vld [vmem:[#allocation6 + $0x3d0] sm:$0xff]
    %v253 = vld [vmem:[#allocation6 + $0x3d8] sm:$0xff]
    %v254 = vld [vmem:[#allocation6 + $0x3e0] sm:$0xff]
    %v255 = vld [vmem:[#allocation6 + $0x3e8] sm:$0xff]
    %v256 = vld [vmem:[#allocation6 + $0x3f0] sm:$0xff]
    %v257 = vld [vmem:[#allocation6 + $0x3f8] sm:$0xff]
    %v258 = vld [vmem:[#allocation6 + $0x400] sm:$0xff]
    %v259 = vld [vmem:[#allocation6 + $0x408] sm:$0xff]
    %v260 = vld [vmem:[#allocation6 + $0x410] sm:$0xff]
    %v261 = vld [vmem:[#allocation6 + $0x418] sm:$0xff]
    %v262 = vld [vmem:[#allocation6 + $0x420] sm:$0xff]
    %v263 = vld [vmem:[#allocation6 + $0x428] sm:$0xff]
    %v264 = vld [vmem:[#allocation6 + $0x430] sm:$0xff]
    %v265 = vld [vmem:[#allocation6 + $0x438] sm:$0xff]
    %v266 = vld [vmem:[#allocation6 + $0x440] sm:$0xff]
    %v267 = vld [vmem:[#allocation6 + $0x448] sm:$0xff]
    %v268 = vld [vmem:[#allocation6 + $0x450] sm:$0xff]
    %v269 = vld [vmem:[#allocation6 + $0x458] sm:$0xff]
    %v270 = vld [vmem:[#allocation6 + $0x460] sm:$0xff]
    %v271 = vld [vmem:[#allocation6 + $0x468] sm:$0xff]
    %v272 = vld [vmem:[#allocation6 + $0x470] sm:$0xff]
    %v273 = vld [vmem:[#allocation6 + $0x478] sm:$0xff]
    %v274 = vld [vmem:[#allocation6 + $0x480] sm:$0xff]
    %v275 = vld [vmem:[#allocation6 + $0x488] sm:$0xff]
    %v276 = vld [vmem:[#allocation6 + $0x490] sm:$0xff]
    %v277 = vld [vmem:[#allocation6 + $0x498] sm:$0xff]
    %v278 = vld [vmem:[#allocation6 + $0x4a0] sm:$0xff]
    %v279 = vld [vmem:[#allocation6 + $0x4a8] sm:$0xff]
    %v280 = vld [vmem:[#allocation6 + $0x4b0] sm:$0xff]
    %v281 = vld [vmem:[#allocation6 + $0x4b8] sm:$0xff]
    %v282 = vld [vmem:[#allocation6 + $0x4c0] sm:$0xff]
    %v283 = vld [vmem:[#allocation6 + $0x4c8] sm:$0xff]
    %v284 = vld [vmem:[#allocation6 + $0x4d0] sm:$0xff]
    %v285 = vld [vmem:[#allocation6 + $0x4d8] sm:$0xff]
    %v286 = vld [vmem:[#allocation6 + $0x4e0] sm:$0xff]
    %v287 = vld [vmem:[#allocation6 + $0x4e8] sm:$0xff]
    %v288 = vld [vmem:[#allocation6 + $0x4f0] sm:$0xff]
    %v289 = vld [vmem:[#allocation6 + $0x4f8] sm:$0xff]
    %v290 = vld [vmem:[#allocation6 + $0x500] sm:$0xff]
    %v291 = vld [vmem:[#allocation6 + $0x508] sm:$0xff]
    %v292 = vld [vmem:[#allocation6 + $0x510] sm:$0xff]
    %v293 = vld [vmem:[#allocation6 + $0x518] sm:$0xff]
    %v294 = vld [vmem:[#allocation6 + $0x520] sm:$0xff]
    %v295 = vld [vmem:[#allocation6 + $0x528] sm:$0xff]
    %v296 = vld [vmem:[#allocation6 + $0x530] sm:$0xff]
    %v297 = vld [vmem:[#allocation6 + $0x538] sm:$0xff]
    %v298 = vld [vmem:[#allocation6 + $0x540] sm:$0xff]
    %v299 = vld [vmem:[#allocation6 + $0x548] sm:$0xff]
    %v300 = vld [vmem:[#allocation6 + $0x550] sm:$0xff]
    %v301 = vld [vmem:[#allocation6 + $0x558] sm:$0xff]
    %v302 = vld [vmem:[#allocation6 + $0x560] sm:$0xff]
    %v303 = vld [vmem:[#allocation6 + $0x568] sm:$0xff]
    %v304 = vld [vmem:[#allocation6 + $0x570] sm:$0xff]
    %v305 = vld [vmem:[#allocation6 + $0x578] sm:$0xff]
    %v306 = vld [vmem:[#allocation6 + $0x580] sm:$0xff]
    %v307 = vld [vmem:[#allocation6 + $0x588] sm:$0xff]
    %v308 = vld [vmem:[#allocation6 + $0x590] sm:$0xff]
    %v309 = vld [vmem:[#allocation6 + $0x598] sm:$0xff]
    %v310 = vld [vmem:[#allocation6 + $0x5a0] sm:$0xff]
    %v311 = vld [vmem:[#allocation6 + $0x5a8] sm:$0xff]
    %v312 = vld [vmem:[#allocation6 + $0x5b0] sm:$0xff]
    %v313 = vld [vmem:[#allocation6 + $0x5b8] sm:$0xff]
    %v314 = vld [vmem:[#allocation6 + $0x5c0] sm:$0xff]
    %v315 = vld [vmem:[#allocation6 + $0x5c8] sm:$0xff]
    %v316 = vld [vmem:[#allocation6 + $0x5d0] sm:$0xff]
    %v317 = vld [vmem:[#allocation6 + $0x5d8] sm:$0xff]
    %v318 = vld [vmem:[#allocation6 + $0x5e0] sm:$0xff]
    %v319 = vld [vmem:[#allocation6 + $0x5e8] sm:$0xff]
    %v320 = vld [vmem:[#allocation6 + $0x5f0] sm:$0xff]
    %v321 = vld [vmem:[#allocation6 + $0x5f8] sm:$0xff]
    %v322 = vld [vmem:[#allocation6 + $0x600] sm:$0xff]
    %v323 = vld [vmem:[#allocation6 + $0x608] sm:$0xff]
    %v324 = vld [vmem:[#allocation6 + $0x610] sm:$0xff]
    %v325 = vld [vmem:[#allocation6 + $0x618] sm:$0xff]
    %v326 = vld [vmem:[#allocation6 + $0x620] sm:$0xff]
    %v327 = vld [vmem:[#allocation6 + $0x628] sm:$0xff]
    %v328 = vld [vmem:[#allocation6 + $0x630] sm:$0xff]
    %v329 = vld [vmem:[#allocation6 + $0x638] sm:$0xff]
    %v330 = vld [vmem:[#allocation6 + $0x640] sm:$0xff]
    %v331 = vld [vmem:[#allocation6 + $0x648] sm:$0xff]
    %v332 = vld [vmem:[#allocation6 + $0x650] sm:$0xff]
    %v333 = vld [vmem:[#allocation6 + $0x658] sm:$0xff]
    %v334 = vld [vmem:[#allocation6 + $0x660] sm:$0xff]
    %v335 = vld [vmem:[#allocation6 + $0x668] sm:$0xff]
    %v336 = vld [vmem:[#allocation6 + $0x670] sm:$0xff]
    %v337 = vld [vmem:[#allocation6 + $0x678] sm:$0xff]
    %v338 = vld [vmem:[#allocation6 + $0x680] sm:$0xff]
    %v339 = vld [vmem:[#allocation6 + $0x688] sm:$0xff]
    %v340 = vld [vmem:[#allocation6 + $0x690] sm:$0xff]
    %v341 = vld [vmem:[#allocation6 + $0x698] sm:$0xff]
    %v342 = vld [vmem:[#allocation6 + $0x6a0] sm:$0xff]
    %v343 = vld [vmem:[#allocation6 + $0x6a8] sm:$0xff]
    %v344 = vld [vmem:[#allocation6 + $0x6b0] sm:$0xff]
    %v345 = vld [vmem:[#allocation6 + $0x6b8] sm:$0xff]
    %v346 = vld [vmem:[#allocation6 + $0x6c0] sm:$0xff]
    %v347 = vld [vmem:[#allocation6 + $0x6c8] sm:$0xff]
    %v348 = vld [vmem:[#allocation6 + $0x6d0] sm:$0xff]
    %v349 = vld [vmem:[#allocation6 + $0x6d8] sm:$0xff]
    %v350 = vld [vmem:[#allocation6 + $0x6e0] sm:$0xff]
    %v351 = vld [vmem:[#allocation6 + $0x6e8] sm:$0xff]
    %v352 = vld [vmem:[#allocation6 + $0x6f0] sm:$0xff]
    %v353 = vld [vmem:[#allocation6 + $0x6f8] sm:$0xff]
    %v354 = vld [vmem:[#allocation6 + $0x700] sm:$0xff]
    %v355 = vld [vmem:[#allocation6 + $0x708] sm:$0xff]
    %v356 = vld [vmem:[#allocation6 + $0x710] sm:$0xff]
    %v357 = vld [vmem:[#allocation6 + $0x718] sm:$0xff]
    %v358 = vld [vmem:[#allocation6 + $0x720] sm:$0xff]
    %v359 = vld [vmem:[#allocation6 + $0x728] sm:$0xff]
    %v360 = vld [vmem:[#allocation6 + $0x730] sm:$0xff]
    %v361 = vld [vmem:[#allocation6 + $0x738] sm:$0xff]
    %v362 = vld [vmem:[#allocation6 + $0x740] sm:$0xff]
    %v363 = vld [vmem:[#allocation6 + $0x748] sm:$0xff]
    %v364 = vld [vmem:[#allocation6 + $0x750] sm:$0xff]
    %v365 = vld [vmem:[#allocation6 + $0x758] sm:$0xff]
    %v366 = vld [vmem:[#allocation6 + $0x760] sm:$0xff]
    %v367 = vld [vmem:[#allocation6 + $0x768] sm:$0xff]
    %v368 = vld [vmem:[#allocation6 + $0x770] sm:$0xff]
    %v369 = vld [vmem:[#allocation6 + $0x778] sm:$0xff]
    %v370 = vld [vmem:[#allocation6 + $0x780] sm:$0xff]
    %v371 = vld [vmem:[#allocation6 + $0x788] sm:$0xff]
    %v372 = vld [vmem:[#allocation6 + $0x790] sm:$0xff]
    %v373 = vld [vmem:[#allocation6 + $0x798] sm:$0xff]
    %v374 = vld [vmem:[#allocation6 + $0x7a0] sm:$0xff]
    %v375 = vld [vmem:[#allocation6 + $0x7a8] sm:$0xff]
    %v376 = vld [vmem:[#allocation6 + $0x7b0] sm:$0xff]
    %v377 = vld [vmem:[#allocation6 + $0x7b8] sm:$0xff]
    %v378 = vld [vmem:[#allocation6 + $0x7c0] sm:$0xff]
    %v379 = vld [vmem:[#allocation6 + $0x7c8] sm:$0xff]
    %v380 = vld [vmem:[#allocation6 + $0x7d0] sm:$0xff]
    %v381 = vld [vmem:[#allocation6 + $0x7d8] sm:$0xff]
    %v382 = vld [vmem:[#allocation6 + $0x7e0] sm:$0xff]
    %v383 = vld [vmem:[#allocation6 + $0x7e8] sm:$0xff]
    %v384 = vld [vmem:[#allocation6 + $0x7f0] sm:$0xff]
    %v385 = vld [vmem:[#allocation6 + $0x7f8] sm:$0xff]
    %v386 = vld [vmem:[#allocation6 + $0x800] sm:$0xff]
    %v387 = vld [vmem:[#allocation6 + $0x808] sm:$0xff]
    %v388 = vld [vmem:[#allocation6 + $0x810] sm:$0xff]
    %v389 = vld [vmem:[#allocation6 + $0x818] sm:$0xff]
    %v390 = vld [vmem:[#allocation6 + $0x820] sm:$0xff]
    %v391 = vld [vmem:[#allocation6 + $0x828] sm:$0xff]
    %v392 = vld [vmem:[#allocation6 + $0x830] sm:$0xff]
    %v393 = vld [vmem:[#allocation6 + $0x838] sm:$0xff]
    %v394 = vld [vmem:[#allocation6 + $0x840] sm:$0xff]
    %v395 = vld [vmem:[#allocation6 + $0x848] sm:$0xff]
    %v396 = vld [vmem:[#allocation6 + $0x850] sm:$0xff]
    %v397 = vld [vmem:[#allocation6 + $0x858] sm:$0xff]
    %v398 = vld [vmem:[#allocation6 + $0x860] sm:$0xff]
    %v399 = vld [vmem:[#allocation6 + $0x868] sm:$0xff]
    %v400 = vld [vmem:[#allocation6 + $0x870] sm:$0xff]
    %v401 = vld [vmem:[#allocation6 + $0x878] sm:$0xff]
    %v402 = vld [vmem:[#allocation6 + $0x880] sm:$0xff]
    %v403 = vld [vmem:[#allocation6 + $0x888] sm:$0xff]
    %v404 = vld [vmem:[#allocation6 + $0x890] sm:$0xff]
    %v405 = vld [vmem:[#allocation6 + $0x898] sm:$0xff]
    %v406 = vld [vmem:[#allocation6 + $0x8a0] sm:$0xff]
    %v407 = vld [vmem:[#allocation6 + $0x8a8] sm:$0xff]
    %v408 = vld [vmem:[#allocation6 + $0x8b0] sm:$0xff]
    %v409 = vld [vmem:[#allocation6 + $0x8b8] sm:$0xff]
    %v410 = vld [vmem:[#allocation6 + $0x8c0] sm:$0xff]
    %v411 = vld [vmem:[#allocation6 + $0x8c8] sm:$0xff]
    %v412 = vld [vmem:[#allocation6 + $0x8d0] sm:$0xff]
    %v413 = vld [vmem:[#allocation6 + $0x8d8] sm:$0xff]
    %v414 = vld [vmem:[#allocation6 + $0x8e0] sm:$0xff]
    %v415 = vld [vmem:[#allocation6 + $0x8e8] sm:$0xff]
    %v416 = vld [vmem:[#allocation6 + $0x8f0] sm:$0xff]
    %v417 = vld [vmem:[#allocation6 + $0x8f8] sm:$0xff]
    %v418 = vld [vmem:[#allocation6 + $0x900] sm:$0xff]
    %v419 = vld [vmem:[#allocation6 + $0x908] sm:$0xff]
    %v420 = vld [vmem:[#allocation6 + $0x910] sm:$0xff]
    %v421 = vld [vmem:[#allocation6 + $0x918] sm:$0xff]
    %v422 = vld [vmem:[#allocation6 + $0x920] sm:$0xff]
    %v423 = vld [vmem:[#allocation6 + $0x928] sm:$0xff]
    %v424 = vld [vmem:[#allocation6 + $0x930] sm:$0xff]
    %v425 = vld [vmem:[#allocation6 + $0x938] sm:$0xff]
    %v426 = vld [vmem:[#allocation6 + $0x940] sm:$0xff]
    %v427 = vld [vmem:[#allocation6 + $0x948] sm:$0xff]
    %v428 = vld [vmem:[#allocation6 + $0x950] sm:$0xff]
    %v429 = vld [vmem:[#allocation6 + $0x958] sm:$0xff]
    %v430 = vld [vmem:[#allocation6 + $0x960] sm:$0xff]
    %v431 = vld [vmem:[#allocation6 + $0x968] sm:$0xff]
    %v432 = vld [vmem:[#allocation6 + $0x970] sm:$0xff]
    %v433 = vld [vmem:[#allocation6 + $0x978] sm:$0xff]
    %v434 = vld [vmem:[#allocation6 + $0x980] sm:$0xff]
    %v435 = vld [vmem:[#allocation6 + $0x988] sm:$0xff]
    %v436 = vld [vmem:[#allocation6 + $0x990] sm:$0xff]
    %v437 = vld [vmem:[#allocation6 + $0x998] sm:$0xff]
    %v438 = vld [vmem:[#allocation6 + $0x9a0] sm:$0xff]
    %v439 = vld [vmem:[#allocation6 + $0x9a8] sm:$0xff]
    %v440 = vld [vmem:[#allocation6 + $0x9b0] sm:$0xff]
    %v441 = vld [vmem:[#allocation6 + $0x9b8] sm:$0xff]
    %v442 = vld [vmem:[#allocation6 + $0x9c0] sm:$0xff]
    %v443 = vld [vmem:[#allocation6 + $0x9c8] sm:$0xff]
    %v444 = vld [vmem:[#allocation6 + $0x9d0] sm:$0xff]
    %v445 = vld [vmem:[#allocation6 + $0x9d8] sm:$0xff]
    %v446 = vld [vmem:[#allocation6 + $0x9e0] sm:$0xff]
    %v447 = vld [vmem:[#allocation6 + $0x9e8] sm:$0xff]
    %v448 = vld [vmem:[#allocation6 + $0x9f0] sm:$0xff]
    %v449 = vld [vmem:[#allocation6 + $0x9f8] sm:$0xff]
    %v450 = vld [vmem:[#allocation7] sm:$0xf]
    %v452 = vlaneseq
    %v453 = vshrl.u32 %v452, 7
    %v454 = vsub.s32 0, %v453
    %v455 = vrot.slane %v450, %v454
    %v456 = vlaneseq
    %v457 = vshrl.u32 %v456, 7
    %v458 = vsub.s32 1, %v457
    %v459 = vrot.slane %v450, %v458
    %v460 = vlaneseq
    %v461 = vshrl.u32 %v460, 7
    %v462 = vsub.s32 2, %v461
    %v463 = vrot.slane %v450, %v462
    %v464 = vlaneseq
    %v465 = vshrl.u32 %v464, 7
    %v466 = vsub.s32 3, %v465
    %v467 = vrot.slane %v450, %v466
    %v480 = vcombine.low %v122, %v124
    %v481 = vcombine.high %v122, %v124
    %v482 = vcombine.low %v126, %v128
    %v483 = vcombine.high %v126, %v128
    %v485 = vunpack.c.l.s4 1966171168
    %v486 = vunpack.c.0.s8 %v485
    %v487 = vlaneseq
    %v488 = vshrl.u32 %v487, 7
    %v489 = vsub.s32 %v486, %v488
    %v490 = vrot.slane %v480, %v489
    %v492 = vunpack.c.l.s4 1966171168
    %v493 = vunpack.c.0.s8 %v492
    %v494 = vlaneseq
    %v495 = vshrl.u32 %v494, 7
    %v496 = vsub.s32 %v493, %v495
    %v497 = vrot.slane %v481, %v496
    %v499 = vunpack.c.l.s4 1966171168
    %v500 = vunpack.c.0.s8 %v499
    %v501 = vlaneseq
    %v502 = vshrl.u32 %v501, 7
    %v503 = vsub.s32 %v500, %v502
    %v504 = vrot.slane %v482, %v503
    %v506 = vunpack.c.l.s4 1966171168
    %v507 = vunpack.c.0.s8 %v506
    %v508 = vlaneseq
    %v509 = vshrl.u32 %v508, 7
    %v510 = vsub.s32 %v507, %v509
    %v511 = vrot.slane %v483, %v510
    %v512 = vcombine.low %v490, %v504
    %v513 = vcombine.high %v490, %v504
    %v514 = vcombine.low %v497, %v511
    %v515 = vcombine.high %v497, %v511
    %v517 = vunpack.c.l.s4 1966171168
    %v518 = vunpack.c.0.s8 %v517
    %v519 = vlaneseq
    %v520 = vshrl.u32 %v519, 7
    %v521 = vsub.s32 %v518, %v520
    %v522 = vrot.slane %v512, %v521
    %v524 = vunpack.c.l.s4 1966171168
    %v525 = vunpack.c.0.s8 %v524
    %v526 = vlaneseq
    %v527 = vshrl.u32 %v526, 7
    %v528 = vsub.s32 %v525, %v527
    %v529 = vrot.slane %v514, %v528
    %v531 = vunpack.c.l.s4 1966171168
    %v532 = vunpack.c.0.s8 %v531
    %v533 = vlaneseq
    %v534 = vshrl.u32 %v533, 7
    %v535 = vsub.s32 %v532, %v534
    %v536 = vrot.slane %v513, %v535
    %v538 = vunpack.c.l.s4 1966171168
    %v539 = vunpack.c.0.s8 %v538
    %v540 = vlaneseq
    %v541 = vshrl.u32 %v540, 7
    %v542 = vsub.s32 %v539, %v541
    %v543 = vrot.slane %v515, %v542
    %v544 = vcombine.high %v522, %v522
    %v545 = vcombine.high %v529, %v529
    %v546 = vcombine.high %v536, %v536
    %v547 = vcombine.high %v543, %v543
    %v548 = vcombine.low %v123, %v125
    %v549 = vcombine.low %v127, %v129
    %v551 = vunpack.c.l.s4 1966171168
    %v552 = vunpack.c.0.s8 %v551
    %v553 = vlaneseq
    %v554 = vshrl.u32 %v553, 7
    %v555 = vsub.s32 %v552, %v554
    %v556 = vrot.slane %v548, %v555
    %v558 = vunpack.c.l.s4 1966171168
    %v559 = vunpack.c.0.s8 %v558
    %v560 = vlaneseq
    %v561 = vshrl.u32 %v560, 7
    %v562 = vsub.s32 %v559, %v561
    %v563 = vrot.slane %v549, %v562
    %v564 = vcombine.low %v556, %v563
    %v565 = vcombine.high %v556, %v563
    %v567 = vunpack.c.l.s4 1966171168
    %v568 = vunpack.c.0.s8 %v567
    %v569 = vlaneseq
    %v570 = vshrl.u32 %v569, 7
    %v571 = vsub.s32 %v568, %v570
    %v572 = vrot.slane %v564, %v571
    %v574 = vunpack.c.l.s4 1966171168
    %v575 = vunpack.c.0.s8 %v574
    %v576 = vlaneseq
    %v577 = vshrl.u32 %v576, 7
    %v578 = vsub.s32 %v575, %v577
    %v579 = vrot.slane %v565, %v578
    %v910 = vunpack.c.l.b16 %v130
    %v911 = vunpack.c.h.b16 %v130
    %v912 = vunpack.c.l.b16 %v131
    %v913 = vunpack.c.h.b16 %v131
    %v914 = vunpack.c.l.b16 %v132
    %v915 = vunpack.c.h.b16 %v132
    %v916 = vunpack.c.l.b16 %v133
    %v917 = vunpack.c.h.b16 %v133
    %v918 = vunpack.c.l.b16 %v134
    %v919 = vunpack.c.h.b16 %v134
    %v920 = vunpack.c.l.b16 %v135
    %v921 = vunpack.c.h.b16 %v135
    %v922 = vunpack.c.l.b16 %v136
    %v923 = vunpack.c.h.b16 %v136
    %v924 = vunpack.c.l.b16 %v137
    %v925 = vunpack.c.h.b16 %v137
    %v926 = vunpack.c.l.b16 %v138
    %v927 = vunpack.c.h.b16 %v138
    %v928 = vunpack.c.l.b16 %v139
    %v929 = vunpack.c.h.b16 %v139
    %v930 = vunpack.c.l.b16 %v140
    %v931 = vunpack.c.h.b16 %v140
    %v932 = vunpack.c.l.b16 %v141
    %v933 = vunpack.c.h.b16 %v141
    %v934 = vunpack.c.l.b16 %v142
    %v935 = vunpack.c.h.b16 %v142
    %v936 = vunpack.c.l.b16 %v143
    %v937 = vunpack.c.h.b16 %v143
    %v938 = vunpack.c.l.b16 %v144
    %v939 = vunpack.c.h.b16 %v144
    %v940 = vunpack.c.l.b16 %v145
    %v941 = vunpack.c.h.b16 %v145
    %v942 = vunpack.c.l.b16 %v146
    %v943 = vunpack.c.h.b16 %v146
    %v944 = vunpack.c.l.b16 %v147
    %v945 = vunpack.c.h.b16 %v147
    %v946 = vunpack.c.l.b16 %v148
    %v947 = vunpack.c.h.b16 %v148
    %v948 = vunpack.c.l.b16 %v149
    %v949 = vunpack.c.h.b16 %v149
    %v950 = vunpack.c.l.b16 %v150
    %v951 = vunpack.c.h.b16 %v150
    %v952 = vunpack.c.l.b16 %v151
    %v953 = vunpack.c.h.b16 %v151
    %v954 = vunpack.c.l.b16 %v152
    %v955 = vunpack.c.h.b16 %v152
    %v956 = vunpack.c.l.b16 %v153
    %v957 = vunpack.c.h.b16 %v153
    %v958 = vunpack.c.l.b16 %v154
    %v959 = vunpack.c.h.b16 %v154
    %v960 = vunpack.c.l.b16 %v155
    %v961 = vunpack.c.h.b16 %v155
    %v962 = vunpack.c.l.b16 %v156
    %v963 = vunpack.c.h.b16 %v156
    %v964 = vunpack.c.l.b16 %v157
    %v965 = vunpack.c.h.b16 %v157
    %v966 = vunpack.c.l.b16 %v158
    %v967 = vunpack.c.h.b16 %v158
    %v968 = vunpack.c.l.b16 %v159
    %v969 = vunpack.c.h.b16 %v159
    %v970 = vunpack.c.l.b16 %v160
    %v971 = vunpack.c.h.b16 %v160
    %v972 = vunpack.c.l.b16 %v161
    %v973 = vunpack.c.h.b16 %v161
    %v974 = vunpack.c.l.b16 %v162
    %v975 = vunpack.c.h.b16 %v162
    %v976 = vunpack.c.l.b16 %v163
    %v977 = vunpack.c.h.b16 %v163
    %v978 = vunpack.c.l.b16 %v164
    %v979 = vunpack.c.h.b16 %v164
    %v980 = vunpack.c.l.b16 %v165
    %v981 = vunpack.c.h.b16 %v165
    %v982 = vunpack.c.l.b16 %v166
    %v983 = vunpack.c.h.b16 %v166
    %v984 = vunpack.c.l.b16 %v167
    %v985 = vunpack.c.h.b16 %v167
    %v986 = vunpack.c.l.b16 %v168
    %v987 = vunpack.c.h.b16 %v168
    %v988 = vunpack.c.l.b16 %v169
    %v989 = vunpack.c.h.b16 %v169
    %v990 = vunpack.c.l.b16 %v170
    %v991 = vunpack.c.h.b16 %v170
    %v992 = vunpack.c.l.b16 %v171
    %v993 = vunpack.c.h.b16 %v171
    %v994 = vunpack.c.l.b16 %v172
    %v995 = vunpack.c.h.b16 %v172
    %v996 = vunpack.c.l.b16 %v173
    %v997 = vunpack.c.h.b16 %v173
    %v998 = vunpack.c.l.b16 %v174
    %v999 = vunpack.c.h.b16 %v174
    %v1000 = vunpack.c.l.b16 %v175
    %v1001 = vunpack.c.h.b16 %v175
    %v1002 = vunpack.c.l.b16 %v176
    %v1003 = vunpack.c.h.b16 %v176
    %v1004 = vunpack.c.l.b16 %v177
    %v1005 = vunpack.c.h.b16 %v177
    %v1006 = vunpack.c.l.b16 %v178
    %v1007 = vunpack.c.h.b16 %v178
    %v1008 = vunpack.c.l.b16 %v179
    %v1009 = vunpack.c.h.b16 %v179
    %v1010 = vunpack.c.l.b16 %v180
    %v1011 = vunpack.c.h.b16 %v180
    %v1012 = vunpack.c.l.b16 %v181
    %v1013 = vunpack.c.h.b16 %v181
    %v1014 = vunpack.c.l.b16 %v182
    %v1015 = vunpack.c.h.b16 %v182
    %v1016 = vunpack.c.l.b16 %v183
    %v1017 = vunpack.c.h.b16 %v183
    %v1018 = vunpack.c.l.b16 %v184
    %v1019 = vunpack.c.h.b16 %v184
    %v1020 = vunpack.c.l.b16 %v185
    %v1021 = vunpack.c.h.b16 %v185
    %v1022 = vunpack.c.l.b16 %v186
    %v1023 = vunpack.c.h.b16 %v186
    %v1024 = vunpack.c.l.b16 %v187
    %v1025 = vunpack.c.h.b16 %v187
    %v1026 = vunpack.c.l.b16 %v188
    %v1027 = vunpack.c.h.b16 %v188
    %v1028 = vunpack.c.l.b16 %v189
    %v1029 = vunpack.c.h.b16 %v189
    %v1030 = vunpack.c.l.b16 %v190
    %v1031 = vunpack.c.h.b16 %v190
    %v1032 = vunpack.c.l.b16 %v191
    %v1033 = vunpack.c.h.b16 %v191
    %v1034 = vunpack.c.l.b16 %v192
    %v1035 = vunpack.c.h.b16 %v192
    %v1036 = vunpack.c.l.b16 %v193
    %v1037 = vunpack.c.h.b16 %v193
    %v1038 = vunpack.c.l.b16 %v194
    %v1039 = vunpack.c.h.b16 %v194
    %v1040 = vunpack.c.l.b16 %v195
    %v1041 = vunpack.c.h.b16 %v195
    %v1042 = vunpack.c.l.b16 %v196
    %v1043 = vunpack.c.h.b16 %v196
    %v1044 = vunpack.c.l.b16 %v197
    %v1045 = vunpack.c.h.b16 %v197
    %v1046 = vunpack.c.l.b16 %v198
    %v1047 = vunpack.c.h.b16 %v198
    %v1048 = vunpack.c.l.b16 %v199
    %v1049 = vunpack.c.h.b16 %v199
    %v1050 = vunpack.c.l.b16 %v200
    %v1051 = vunpack.c.h.b16 %v200
    %v1052 = vunpack.c.l.b16 %v201
    %v1053 = vunpack.c.h.b16 %v201
    %v1054 = vunpack.c.l.b16 %v202
    %v1055 = vunpack.c.h.b16 %v202
    %v1056 = vunpack.c.l.b16 %v203
    %v1057 = vunpack.c.h.b16 %v203
    %v1058 = vunpack.c.l.b16 %v204
    %v1059 = vunpack.c.h.b16 %v204
    %v1060 = vunpack.c.l.b16 %v205
    %v1061 = vunpack.c.h.b16 %v205
    %v1062 = vunpack.c.l.b16 %v206
    %v1063 = vunpack.c.h.b16 %v206
    %v1064 = vunpack.c.l.b16 %v207
    %v1065 = vunpack.c.h.b16 %v207
    %v1066 = vunpack.c.l.b16 %v208
    %v1067 = vunpack.c.h.b16 %v208
    %v1068 = vunpack.c.l.b16 %v209
    %v1069 = vunpack.c.h.b16 %v209
    %v1070 = vunpack.c.l.b16 %v210
    %v1071 = vunpack.c.h.b16 %v210
    %v1072 = vunpack.c.l.b16 %v211
    %v1073 = vunpack.c.h.b16 %v211
    %v1074 = vunpack.c.l.b16 %v212
    %v1075 = vunpack.c.h.b16 %v212
    %v1076 = vunpack.c.l.b16 %v213
    %v1077 = vunpack.c.h.b16 %v213
    %v1078 = vunpack.c.l.b16 %v214
    %v1079 = vunpack.c.h.b16 %v214
    %v1080 = vunpack.c.l.b16 %v215
    %v1081 = vunpack.c.h.b16 %v215
    %v1082 = vunpack.c.l.b16 %v216
    %v1083 = vunpack.c.h.b16 %v216
    %v1084 = vunpack.c.l.b16 %v217
    %v1085 = vunpack.c.h.b16 %v217
    %v1086 = vunpack.c.l.b16 %v218
    %v1087 = vunpack.c.h.b16 %v218
    %v1088 = vunpack.c.l.b16 %v219
    %v1089 = vunpack.c.h.b16 %v219
    %v1090 = vunpack.c.l.b16 %v220
    %v1091 = vunpack.c.h.b16 %v220
    %v1092 = vunpack.c.l.b16 %v221
    %v1093 = vunpack.c.h.b16 %v221
    %v1094 = vunpack.c.l.b16 %v222
    %v1095 = vunpack.c.h.b16 %v222
    %v1096 = vunpack.c.l.b16 %v223
    %v1097 = vunpack.c.h.b16 %v223
    %v1098 = vunpack.c.l.b16 %v224
    %v1099 = vunpack.c.h.b16 %v224
    %v1100 = vunpack.c.l.b16 %v225
    %v1101 = vunpack.c.h.b16 %v225
    %v1102 = vunpack.c.l.b16 %v226
    %v1103 = vunpack.c.h.b16 %v226
    %v1104 = vunpack.c.l.b16 %v227
    %v1105 = vunpack.c.h.b16 %v227
    %v1106 = vunpack.c.l.b16 %v228
    %v1107 = vunpack.c.h.b16 %v228
    %v1108 = vunpack.c.l.b16 %v229
    %v1109 = vunpack.c.h.b16 %v229
    %v1110 = vunpack.c.l.b16 %v230
    %v1111 = vunpack.c.h.b16 %v230
    %v1112 = vunpack.c.l.b16 %v231
    %v1113 = vunpack.c.h.b16 %v231
    %v1114 = vunpack.c.l.b16 %v232
    %v1115 = vunpack.c.h.b16 %v232
    %v1116 = vunpack.c.l.b16 %v233
    %v1117 = vunpack.c.h.b16 %v233
    %v1118 = vunpack.c.l.b16 %v234
    %v1119 = vunpack.c.h.b16 %v234
    %v1120 = vunpack.c.l.b16 %v235
    %v1121 = vunpack.c.h.b16 %v235
    %v1122 = vunpack.c.l.b16 %v236
    %v1123 = vunpack.c.h.b16 %v236
    %v1124 = vunpack.c.l.b16 %v237
    %v1125 = vunpack.c.h.b16 %v237
    %v1126 = vunpack.c.l.b16 %v238
    %v1127 = vunpack.c.h.b16 %v238
    %v1128 = vunpack.c.l.b16 %v239
    %v1129 = vunpack.c.h.b16 %v239
    %v1130 = vunpack.c.l.b16 %v240
    %v1131 = vunpack.c.h.b16 %v240
    %v1132 = vunpack.c.l.b16 %v241
    %v1133 = vunpack.c.h.b16 %v241
    %v1134 = vunpack.c.l.b16 %v242
    %v1135 = vunpack.c.h.b16 %v242
    %v1136 = vunpack.c.l.b16 %v243
    %v1137 = vunpack.c.h.b16 %v243
    %v1138 = vunpack.c.l.b16 %v244
    %v1139 = vunpack.c.h.b16 %v244
    %v1140 = vunpack.c.l.b16 %v245
    %v1141 = vunpack.c.h.b16 %v245
    %v1142 = vunpack.c.l.b16 %v246
    %v1143 = vunpack.c.h.b16 %v246
    %v1144 = vunpack.c.l.b16 %v247
    %v1145 = vunpack.c.h.b16 %v247
    %v1146 = vunpack.c.l.b16 %v248
    %v1147 = vunpack.c.h.b16 %v248
    %v1148 = vunpack.c.l.b16 %v249
    %v1149 = vunpack.c.h.b16 %v249
    %v1150 = vunpack.c.l.b16 %v250
    %v1151 = vunpack.c.h.b16 %v250
    %v1152 = vunpack.c.l.b16 %v251
    %v1153 = vunpack.c.h.b16 %v251
    %v1154 = vunpack.c.l.b16 %v252
    %v1155 = vunpack.c.h.b16 %v252
    %v1156 = vunpack.c.l.b16 %v253
    %v1157 = vunpack.c.h.b16 %v253
    %v1158 = vunpack.c.l.b16 %v254
    %v1159 = vunpack.c.h.b16 %v254
    %v1160 = vunpack.c.l.b16 %v255
    %v1161 = vunpack.c.h.b16 %v255
    %v1162 = vunpack.c.l.b16 %v256
    %v1163 = vunpack.c.h.b16 %v256
    %v1164 = vunpack.c.l.b16 %v257
    %v1165 = vunpack.c.h.b16 %v257
    %v1166 = vunpack.c.l.b16 %v258
    %v1167 = vunpack.c.h.b16 %v258
    %v1168 = vunpack.c.l.b16 %v259
    %v1169 = vunpack.c.h.b16 %v259
    %v1170 = vunpack.c.l.b16 %v260
    %v1171 = vunpack.c.h.b16 %v260
    %v1172 = vunpack.c.l.b16 %v261
    %v1173 = vunpack.c.h.b16 %v261
    %v1174 = vunpack.c.l.b16 %v262
    %v1175 = vunpack.c.h.b16 %v262
    %v1176 = vunpack.c.l.b16 %v263
    %v1177 = vunpack.c.h.b16 %v263
    %v1178 = vunpack.c.l.b16 %v264
    %v1179 = vunpack.c.h.b16 %v264
    %v1180 = vunpack.c.l.b16 %v265
    %v1181 = vunpack.c.h.b16 %v265
    %v1182 = vunpack.c.l.b16 %v266
    %v1183 = vunpack.c.h.b16 %v266
    %v1184 = vunpack.c.l.b16 %v267
    %v1185 = vunpack.c.h.b16 %v267
    %v1186 = vunpack.c.l.b16 %v268
    %v1187 = vunpack.c.h.b16 %v268
    %v1188 = vunpack.c.l.b16 %v269
    %v1189 = vunpack.c.h.b16 %v269
    %v1190 = vunpack.c.l.b16 %v270
    %v1191 = vunpack.c.h.b16 %v270
    %v1192 = vunpack.c.l.b16 %v271
    %v1193 = vunpack.c.h.b16 %v271
    %v1194 = vunpack.c.l.b16 %v272
    %v1195 = vunpack.c.h.b16 %v272
    %v1196 = vunpack.c.l.b16 %v273
    %v1197 = vunpack.c.h.b16 %v273
    %v1198 = vunpack.c.l.b16 %v274
    %v1199 = vunpack.c.h.b16 %v274
    %v1200 = vunpack.c.l.b16 %v275
    %v1201 = vunpack.c.h.b16 %v275
    %v1202 = vunpack.c.l.b16 %v276
    %v1203 = vunpack.c.h.b16 %v276
    %v1204 = vunpack.c.l.b16 %v277
    %v1205 = vunpack.c.h.b16 %v277
    %v1206 = vunpack.c.l.b16 %v278
    %v1207 = vunpack.c.h.b16 %v278
    %v1208 = vunpack.c.l.b16 %v279
    %v1209 = vunpack.c.h.b16 %v279
    %v1210 = vunpack.c.l.b16 %v280
    %v1211 = vunpack.c.h.b16 %v280
    %v1212 = vunpack.c.l.b16 %v281
    %v1213 = vunpack.c.h.b16 %v281
    %v1214 = vunpack.c.l.b16 %v282
    %v1215 = vunpack.c.h.b16 %v282
    %v1216 = vunpack.c.l.b16 %v283
    %v1217 = vunpack.c.h.b16 %v283
    %v1218 = vunpack.c.l.b16 %v284
    %v1219 = vunpack.c.h.b16 %v284
    %v1220 = vunpack.c.l.b16 %v285
    %v1221 = vunpack.c.h.b16 %v285
    %v1222 = vunpack.c.l.b16 %v286
    %v1223 = vunpack.c.h.b16 %v286
    %v1224 = vunpack.c.l.b16 %v287
    %v1225 = vunpack.c.h.b16 %v287
    %v1226 = vunpack.c.l.b16 %v288
    %v1227 = vunpack.c.h.b16 %v288
    %v1228 = vunpack.c.l.b16 %v289
    %v1229 = vunpack.c.h.b16 %v289
    %v1230 = vunpack.c.l.b16 %v290
    %v1231 = vunpack.c.h.b16 %v290
    %v1232 = vunpack.c.l.b16 %v291
    %v1233 = vunpack.c.h.b16 %v291
    %v1234 = vunpack.c.l.b16 %v292
    %v1235 = vunpack.c.h.b16 %v292
    %v1236 = vunpack.c.l.b16 %v293
    %v1237 = vunpack.c.h.b16 %v293
    %v1238 = vunpack.c.l.b16 %v294
    %v1239 = vunpack.c.h.b16 %v294
    %v1240 = vunpack.c.l.b16 %v295
    %v1241 = vunpack.c.h.b16 %v295
    %v1242 = vunpack.c.l.b16 %v296
    %v1243 = vunpack.c.h.b16 %v296
    %v1244 = vunpack.c.l.b16 %v297
    %v1245 = vunpack.c.h.b16 %v297
    %v1246 = vunpack.c.l.b16 %v298
    %v1247 = vunpack.c.h.b16 %v298
    %v1248 = vunpack.c.l.b16 %v299
    %v1249 = vunpack.c.h.b16 %v299
    %v1250 = vunpack.c.l.b16 %v300
    %v1251 = vunpack.c.h.b16 %v300
    %v1252 = vunpack.c.l.b16 %v301
    %v1253 = vunpack.c.h.b16 %v301
    %v1254 = vunpack.c.l.b16 %v302
    %v1255 = vunpack.c.h.b16 %v302
    %v1256 = vunpack.c.l.b16 %v303
    %v1257 = vunpack.c.h.b16 %v303
    %v1258 = vunpack.c.l.b16 %v304
    %v1259 = vunpack.c.h.b16 %v304
    %v1260 = vunpack.c.l.b16 %v305
    %v1261 = vunpack.c.h.b16 %v305
    %v1262 = vunpack.c.l.b16 %v306
    %v1263 = vunpack.c.h.b16 %v306
    %v1264 = vunpack.c.l.b16 %v307
    %v1265 = vunpack.c.h.b16 %v307
    %v1266 = vunpack.c.l.b16 %v308
    %v1267 = vunpack.c.h.b16 %v308
    %v1268 = vunpack.c.l.b16 %v309
    %v1269 = vunpack.c.h.b16 %v309
    %v1270 = vunpack.c.l.b16 %v310
    %v1271 = vunpack.c.h.b16 %v310
    %v1272 = vunpack.c.l.b16 %v311
    %v1273 = vunpack.c.h.b16 %v311
    %v1274 = vunpack.c.l.b16 %v312
    %v1275 = vunpack.c.h.b16 %v312
    %v1276 = vunpack.c.l.b16 %v313
    %v1277 = vunpack.c.h.b16 %v313
    %v1278 = vunpack.c.l.b16 %v314
    %v1279 = vunpack.c.h.b16 %v314
    %v1280 = vunpack.c.l.b16 %v315
    %v1281 = vunpack.c.h.b16 %v315
    %v1282 = vunpack.c.l.b16 %v316
    %v1283 = vunpack.c.h.b16 %v316
    %v1284 = vunpack.c.l.b16 %v317
    %v1285 = vunpack.c.h.b16 %v317
    %v1286 = vunpack.c.l.b16 %v318
    %v1287 = vunpack.c.h.b16 %v318
    %v1288 = vunpack.c.l.b16 %v319
    %v1289 = vunpack.c.h.b16 %v319
    %v1290 = vunpack.c.l.b16 %v320
    %v1291 = vunpack.c.h.b16 %v320
    %v1292 = vunpack.c.l.b16 %v321
    %v1293 = vunpack.c.h.b16 %v321
    %v1294 = vunpack.c.l.b16 %v322
    %v1295 = vunpack.c.h.b16 %v322
    %v1296 = vunpack.c.l.b16 %v323
    %v1297 = vunpack.c.h.b16 %v323
    %v1298 = vunpack.c.l.b16 %v324
    %v1299 = vunpack.c.h.b16 %v324
    %v1300 = vunpack.c.l.b16 %v325
    %v1301 = vunpack.c.h.b16 %v325
    %v1302 = vunpack.c.l.b16 %v326
    %v1303 = vunpack.c.h.b16 %v326
    %v1304 = vunpack.c.l.b16 %v327
    %v1305 = vunpack.c.h.b16 %v327
    %v1306 = vunpack.c.l.b16 %v328
    %v1307 = vunpack.c.h.b16 %v328
    %v1308 = vunpack.c.l.b16 %v329
    %v1309 = vunpack.c.h.b16 %v329
    %v1310 = vunpack.c.l.b16 %v330
    %v1311 = vunpack.c.h.b16 %v330
    %v1312 = vunpack.c.l.b16 %v331
    %v1313 = vunpack.c.h.b16 %v331
    %v1314 = vunpack.c.l.b16 %v332
    %v1315 = vunpack.c.h.b16 %v332
    %v1316 = vunpack.c.l.b16 %v333
    %v1317 = vunpack.c.h.b16 %v333
    %v1318 = vunpack.c.l.b16 %v334
    %v1319 = vunpack.c.h.b16 %v334
    %v1320 = vunpack.c.l.b16 %v335
    %v1321 = vunpack.c.h.b16 %v335
    %v1322 = vunpack.c.l.b16 %v336
    %v1323 = vunpack.c.h.b16 %v336
    %v1324 = vunpack.c.l.b16 %v337
    %v1325 = vunpack.c.h.b16 %v337
    %v1326 = vunpack.c.l.b16 %v338
    %v1327 = vunpack.c.h.b16 %v338
    %v1328 = vunpack.c.l.b16 %v339
    %v1329 = vunpack.c.h.b16 %v339
    %v1330 = vunpack.c.l.b16 %v340
    %v1331 = vunpack.c.h.b16 %v340
    %v1332 = vunpack.c.l.b16 %v341
    %v1333 = vunpack.c.h.b16 %v341
    %v1334 = vunpack.c.l.b16 %v342
    %v1335 = vunpack.c.h.b16 %v342
    %v1336 = vunpack.c.l.b16 %v343
    %v1337 = vunpack.c.h.b16 %v343
    %v1338 = vunpack.c.l.b16 %v344
    %v1339 = vunpack.c.h.b16 %v344
    %v1340 = vunpack.c.l.b16 %v345
    %v1341 = vunpack.c.h.b16 %v345
    %v1342 = vunpack.c.l.b16 %v346
    %v1343 = vunpack.c.h.b16 %v346
    %v1344 = vunpack.c.l.b16 %v347
    %v1345 = vunpack.c.h.b16 %v347
    %v1346 = vunpack.c.l.b16 %v348
    %v1347 = vunpack.c.h.b16 %v348
    %v1348 = vunpack.c.l.b16 %v349
    %v1349 = vunpack.c.h.b16 %v349
    %v1350 = vunpack.c.l.b16 %v350
    %v1351 = vunpack.c.h.b16 %v350
    %v1352 = vunpack.c.l.b16 %v351
    %v1353 = vunpack.c.h.b16 %v351
    %v1354 = vunpack.c.l.b16 %v352
    %v1355 = vunpack.c.h.b16 %v352
    %v1356 = vunpack.c.l.b16 %v353
    %v1357 = vunpack.c.h.b16 %v353
    %v1358 = vunpack.c.l.b16 %v354
    %v1359 = vunpack.c.h.b16 %v354
    %v1360 = vunpack.c.l.b16 %v355
    %v1361 = vunpack.c.h.b16 %v355
    %v1362 = vunpack.c.l.b16 %v356
    %v1363 = vunpack.c.h.b16 %v356
    %v1364 = vunpack.c.l.b16 %v357
    %v1365 = vunpack.c.h.b16 %v357
    %v1366 = vunpack.c.l.b16 %v358
    %v1367 = vunpack.c.h.b16 %v358
    %v1368 = vunpack.c.l.b16 %v359
    %v1369 = vunpack.c.h.b16 %v359
    %v1370 = vunpack.c.l.b16 %v360
    %v1371 = vunpack.c.h.b16 %v360
    %v1372 = vunpack.c.l.b16 %v361
    %v1373 = vunpack.c.h.b16 %v361
    %v1374 = vunpack.c.l.b16 %v362
    %v1375 = vunpack.c.h.b16 %v362
    %v1376 = vunpack.c.l.b16 %v363
    %v1377 = vunpack.c.h.b16 %v363
    %v1378 = vunpack.c.l.b16 %v364
    %v1379 = vunpack.c.h.b16 %v364
    %v1380 = vunpack.c.l.b16 %v365
    %v1381 = vunpack.c.h.b16 %v365
    %v1382 = vunpack.c.l.b16 %v366
    %v1383 = vunpack.c.h.b16 %v366
    %v1384 = vunpack.c.l.b16 %v367
    %v1385 = vunpack.c.h.b16 %v367
    %v1386 = vunpack.c.l.b16 %v368
    %v1387 = vunpack.c.h.b16 %v368
    %v1388 = vunpack.c.l.b16 %v369
    %v1389 = vunpack.c.h.b16 %v369
    %v1390 = vunpack.c.l.b16 %v370
    %v1391 = vunpack.c.h.b16 %v370
    %v1392 = vunpack.c.l.b16 %v371
    %v1393 = vunpack.c.h.b16 %v371
    %v1394 = vunpack.c.l.b16 %v372
    %v1395 = vunpack.c.h.b16 %v372
    %v1396 = vunpack.c.l.b16 %v373
    %v1397 = vunpack.c.h.b16 %v373
    %v1398 = vunpack.c.l.b16 %v374
    %v1399 = vunpack.c.h.b16 %v374
    %v1400 = vunpack.c.l.b16 %v375
    %v1401 = vunpack.c.h.b16 %v375
    %v1402 = vunpack.c.l.b16 %v376
    %v1403 = vunpack.c.h.b16 %v376
    %v1404 = vunpack.c.l.b16 %v377
    %v1405 = vunpack.c.h.b16 %v377
    %v1406 = vunpack.c.l.b16 %v378
    %v1407 = vunpack.c.h.b16 %v378
    %v1408 = vunpack.c.l.b16 %v379
    %v1409 = vunpack.c.h.b16 %v379
    %v1410 = vunpack.c.l.b16 %v380
    %v1411 = vunpack.c.h.b16 %v380
    %v1412 = vunpack.c.l.b16 %v381
    %v1413 = vunpack.c.h.b16 %v381
    %v1414 = vunpack.c.l.b16 %v382
    %v1415 = vunpack.c.h.b16 %v382
    %v1416 = vunpack.c.l.b16 %v383
    %v1417 = vunpack.c.h.b16 %v383
    %v1418 = vunpack.c.l.b16 %v384
    %v1419 = vunpack.c.h.b16 %v384
    %v1420 = vunpack.c.l.b16 %v385
    %v1421 = vunpack.c.h.b16 %v385
    %v1422 = vunpack.c.l.b16 %v386
    %v1423 = vunpack.c.h.b16 %v386
    %v1424 = vunpack.c.l.b16 %v387
    %v1425 = vunpack.c.h.b16 %v387
    %v1426 = vunpack.c.l.b16 %v388
    %v1427 = vunpack.c.h.b16 %v388
    %v1428 = vunpack.c.l.b16 %v389
    %v1429 = vunpack.c.h.b16 %v389
    %v1430 = vunpack.c.l.b16 %v390
    %v1431 = vunpack.c.h.b16 %v390
    %v1432 = vunpack.c.l.b16 %v391
    %v1433 = vunpack.c.h.b16 %v391
    %v1434 = vunpack.c.l.b16 %v392
    %v1435 = vunpack.c.h.b16 %v392
    %v1436 = vunpack.c.l.b16 %v393
    %v1437 = vunpack.c.h.b16 %v393
    %v1438 = vunpack.c.l.b16 %v394
    %v1439 = vunpack.c.h.b16 %v394
    %v1440 = vunpack.c.l.b16 %v395
    %v1441 = vunpack.c.h.b16 %v395
    %v1442 = vunpack.c.l.b16 %v396
    %v1443 = vunpack.c.h.b16 %v396
    %v1444 = vunpack.c.l.b16 %v397
    %v1445 = vunpack.c.h.b16 %v397
    %v1446 = vunpack.c.l.b16 %v398
    %v1447 = vunpack.c.h.b16 %v398
    %v1448 = vunpack.c.l.b16 %v399
    %v1449 = vunpack.c.h.b16 %v399
    %v1450 = vunpack.c.l.b16 %v400
    %v1451 = vunpack.c.h.b16 %v400
    %v1452 = vunpack.c.l.b16 %v401
    %v1453 = vunpack.c.h.b16 %v401
    %v1454 = vunpack.c.l.b16 %v402
    %v1455 = vunpack.c.h.b16 %v402
    %v1456 = vunpack.c.l.b16 %v403
    %v1457 = vunpack.c.h.b16 %v403
    %v1458 = vunpack.c.l.b16 %v404
    %v1459 = vunpack.c.h.b16 %v404
    %v1460 = vunpack.c.l.b16 %v405
    %v1461 = vunpack.c.h.b16 %v405
    %v1462 = vunpack.c.l.b16 %v406
    %v1463 = vunpack.c.h.b16 %v406
    %v1464 = vunpack.c.l.b16 %v407
    %v1465 = vunpack.c.h.b16 %v407
    %v1466 = vunpack.c.l.b16 %v408
    %v1467 = vunpack.c.h.b16 %v408
    %v1468 = vunpack.c.l.b16 %v409
    %v1469 = vunpack.c.h.b16 %v409
    %v1470 = vunpack.c.l.b16 %v410
    %v1471 = vunpack.c.h.b16 %v410
    %v1472 = vunpack.c.l.b16 %v411
    %v1473 = vunpack.c.h.b16 %v411
    %v1474 = vunpack.c.l.b16 %v412
    %v1475 = vunpack.c.h.b16 %v412
    %v1476 = vunpack.c.l.b16 %v413
    %v1477 = vunpack.c.h.b16 %v413
    %v1478 = vunpack.c.l.b16 %v414
    %v1479 = vunpack.c.h.b16 %v414
    %v1480 = vunpack.c.l.b16 %v415
    %v1481 = vunpack.c.h.b16 %v415
    %v1482 = vunpack.c.l.b16 %v416
    %v1483 = vunpack.c.h.b16 %v416
    %v1484 = vunpack.c.l.b16 %v417
    %v1485 = vunpack.c.h.b16 %v417
    %v1486 = vunpack.c.l.b16 %v418
    %v1487 = vunpack.c.h.b16 %v418
    %v1488 = vunpack.c.l.b16 %v419
    %v1489 = vunpack.c.h.b16 %v419
    %v1490 = vunpack.c.l.b16 %v420
    %v1491 = vunpack.c.h.b16 %v420
    %v1492 = vunpack.c.l.b16 %v421
    %v1493 = vunpack.c.h.b16 %v421
    %v1494 = vunpack.c.l.b16 %v422
    %v1495 = vunpack.c.h.b16 %v422
    %v1496 = vunpack.c.l.b16 %v423
    %v1497 = vunpack.c.h.b16 %v423
    %v1498 = vunpack.c.l.b16 %v424
    %v1499 = vunpack.c.h.b16 %v424
    %v1500 = vunpack.c.l.b16 %v425
    %v1501 = vunpack.c.h.b16 %v425
    %v1502 = vunpack.c.l.b16 %v426
    %v1503 = vunpack.c.h.b16 %v426
    %v1504 = vunpack.c.l.b16 %v427
    %v1505 = vunpack.c.h.b16 %v427
    %v1506 = vunpack.c.l.b16 %v428
    %v1507 = vunpack.c.h.b16 %v428
    %v1508 = vunpack.c.l.b16 %v429
    %v1509 = vunpack.c.h.b16 %v429
    %v1510 = vunpack.c.l.b16 %v430
    %v1511 = vunpack.c.h.b16 %v430
    %v1512 = vunpack.c.l.b16 %v431
    %v1513 = vunpack.c.h.b16 %v431
    %v1514 = vunpack.c.l.b16 %v432
    %v1515 = vunpack.c.h.b16 %v432
    %v1516 = vunpack.c.l.b16 %v433
    %v1517 = vunpack.c.h.b16 %v433
    %v1518 = vunpack.c.l.b16 %v434
    %v1519 = vunpack.c.h.b16 %v434
    %v1520 = vunpack.c.l.b16 %v435
    %v1521 = vunpack.c.h.b16 %v435
    %v1522 = vunpack.c.l.b16 %v436
    %v1523 = vunpack.c.h.b16 %v436
    %v1524 = vunpack.c.l.b16 %v437
    %v1525 = vunpack.c.h.b16 %v437
    %v1526 = vunpack.c.l.b16 %v438
    %v1527 = vunpack.c.h.b16 %v438
    %v1528 = vunpack.c.l.b16 %v439
    %v1529 = vunpack.c.h.b16 %v439
    %v1530 = vunpack.c.l.b16 %v440
    %v1531 = vunpack.c.h.b16 %v440
    %v1532 = vunpack.c.l.b16 %v441
    %v1533 = vunpack.c.h.b16 %v441
    %v1534 = vunpack.c.l.b16 %v442
    %v1535 = vunpack.c.h.b16 %v442
    %v1536 = vunpack.c.l.b16 %v443
    %v1537 = vunpack.c.h.b16 %v443
    %v1538 = vunpack.c.l.b16 %v444
    %v1539 = vunpack.c.h.b16 %v444
    %v1540 = vunpack.c.l.b16 %v445
    %v1541 = vunpack.c.h.b16 %v445
    %v1542 = vunpack.c.l.b16 %v446
    %v1543 = vunpack.c.h.b16 %v446
    %v1544 = vunpack.c.l.b16 %v447
    %v1545 = vunpack.c.h.b16 %v447
    %v1546 = vunpack.c.l.b16 %v448
    %v1547 = vunpack.c.h.b16 %v448
    %v1548 = vunpack.c.l.b16 %v449
    %v1549 = vunpack.c.h.b16 %v449
    %v1550 = vpack.c.b16 %v914, %v910
    %v1551 = vpack.c.b16 %v915, %v911
    %v1552 = vpack.c.b16 %v916, %v912
    %v1553 = vpack.c.b16 %v917, %v913
    %v1554 = vpack.c.b16 %v922, %v918
    %v1555 = vpack.c.b16 %v923, %v919
    %v1556 = vpack.c.b16 %v924, %v920
    %v1557 = vpack.c.b16 %v925, %v921
    %v1558 = vpack.c.b16 %v930, %v926
    %v1559 = vpack.c.b16 %v931, %v927
    %v1560 = vpack.c.b16 %v932, %v928
    %v1561 = vpack.c.b16 %v933, %v929
    %v1562 = vpack.c.b16 %v938, %v934
    %v1563 = vpack.c.b16 %v939, %v935
    %v1564 = vpack.c.b16 %v940, %v936
    %v1565 = vpack.c.b16 %v941, %v937
    %v1566 = vpack.c.b16 %v946, %v942
    %v1567 = vpack.c.b16 %v947, %v943
    %v1568 = vpack.c.b16 %v948, %v944
    %v1569 = vpack.c.b16 %v949, %v945
    %v1570 = vpack.c.b16 %v954, %v950
    %v1571 = vpack.c.b16 %v955, %v951
    %v1572 = vpack.c.b16 %v956, %v952
    %v1573 = vpack.c.b16 %v957, %v953
    %v1574 = vpack.c.b16 %v962, %v958
    %v1575 = vpack.c.b16 %v963, %v959
    %v1576 = vpack.c.b16 %v964, %v960
    %v1577 = vpack.c.b16 %v965, %v961
    %v1578 = vpack.c.b16 %v970, %v966
    %v1579 = vpack.c.b16 %v971, %v967
    %v1580 = vpack.c.b16 %v972, %v968
    %v1581 = vpack.c.b16 %v973, %v969
    %v1582 = vpack.c.b16 %v978, %v974
    %v1583 = vpack.c.b16 %v979, %v975
    %v1584 = vpack.c.b16 %v980, %v976
    %v1585 = vpack.c.b16 %v981, %v977
    %v1586 = vpack.c.b16 %v986, %v982
    %v1587 = vpack.c.b16 %v987, %v983
    %v1588 = vpack.c.b16 %v988, %v984
    %v1589 = vpack.c.b16 %v989, %v985
    %v1590 = vpack.c.b16 %v994, %v990
    %v1591 = vpack.c.b16 %v995, %v991
    %v1592 = vpack.c.b16 %v996, %v992
    %v1593 = vpack.c.b16 %v997, %v993
    %v1594 = vpack.c.b16 %v1002, %v998
    %v1595 = vpack.c.b16 %v1003, %v999
    %v1596 = vpack.c.b16 %v1004, %v1000
    %v1597 = vpack.c.b16 %v1005, %v1001
    %v1598 = vpack.c.b16 %v1010, %v1006
    %v1599 = vpack.c.b16 %v1011, %v1007
    %v1600 = vpack.c.b16 %v1012, %v1008
    %v1601 = vpack.c.b16 %v1013, %v1009
    %v1602 = vpack.c.b16 %v1018, %v1014
    %v1603 = vpack.c.b16 %v1019, %v1015
    %v1604 = vpack.c.b16 %v1020, %v1016
    %v1605 = vpack.c.b16 %v1021, %v1017
    %v1606 = vpack.c.b16 %v1026, %v1022
    %v1607 = vpack.c.b16 %v1027, %v1023
    %v1608 = vpack.c.b16 %v1028, %v1024
    %v1609 = vpack.c.b16 %v1029, %v1025
    %v1610 = vpack.c.b16 %v1034, %v1030
    %v1611 = vpack.c.b16 %v1035, %v1031
    %v1612 = vpack.c.b16 %v1036, %v1032
    %v1613 = vpack.c.b16 %v1037, %v1033
    %v1614 = vpack.c.b16 %v1042, %v1038
    %v1615 = vpack.c.b16 %v1043, %v1039
    %v1616 = vpack.c.b16 %v1044, %v1040
    %v1617 = vpack.c.b16 %v1045, %v1041
    %v1618 = vpack.c.b16 %v1050, %v1046
    %v1619 = vpack.c.b16 %v1051, %v1047
    %v1620 = vpack.c.b16 %v1052, %v1048
    %v1621 = vpack.c.b16 %v1053, %v1049
    %v1622 = vpack.c.b16 %v1058, %v1054
    %v1623 = vpack.c.b16 %v1059, %v1055
    %v1624 = vpack.c.b16 %v1060, %v1056
    %v1625 = vpack.c.b16 %v1061, %v1057
    %v1626 = vpack.c.b16 %v1066, %v1062
    %v1627 = vpack.c.b16 %v1067, %v1063
    %v1628 = vpack.c.b16 %v1068, %v1064
    %v1629 = vpack.c.b16 %v1069, %v1065
    %v1630 = vpack.c.b16 %v1074, %v1070
    %v1631 = vpack.c.b16 %v1075, %v1071
    %v1632 = vpack.c.b16 %v1076, %v1072
    %v1633 = vpack.c.b16 %v1077, %v1073
    %v1634 = vpack.c.b16 %v1082, %v1078
    %v1635 = vpack.c.b16 %v1083, %v1079
    %v1636 = vpack.c.b16 %v1084, %v1080
    %v1637 = vpack.c.b16 %v1085, %v1081
    %v1638 = vpack.c.b16 %v1090, %v1086
    %v1639 = vpack.c.b16 %v1091, %v1087
    %v1640 = vpack.c.b16 %v1092, %v1088
    %v1641 = vpack.c.b16 %v1093, %v1089
    %v1642 = vpack.c.b16 %v1098, %v1094
    %v1643 = vpack.c.b16 %v1099, %v1095
    %v1644 = vpack.c.b16 %v1100, %v1096
    %v1645 = vpack.c.b16 %v1101, %v1097
    %v1646 = vpack.c.b16 %v1106, %v1102
    %v1647 = vpack.c.b16 %v1107, %v1103
    %v1648 = vpack.c.b16 %v1108, %v1104
    %v1649 = vpack.c.b16 %v1109, %v1105
    %v1650 = vpack.c.b16 %v1114, %v1110
    %v1651 = vpack.c.b16 %v1115, %v1111
    %v1652 = vpack.c.b16 %v1116, %v1112
    %v1653 = vpack.c.b16 %v1117, %v1113
    %v1654 = vpack.c.b16 %v1122, %v1118
    %v1655 = vpack.c.b16 %v1123, %v1119
    %v1656 = vpack.c.b16 %v1124, %v1120
    %v1657 = vpack.c.b16 %v1125, %v1121
    %v1658 = vpack.c.b16 %v1130, %v1126
    %v1659 = vpack.c.b16 %v1131, %v1127
    %v1660 = vpack.c.b16 %v1132, %v1128
    %v1661 = vpack.c.b16 %v1133, %v1129
    %v1662 = vpack.c.b16 %v1138, %v1134
    %v1663 = vpack.c.b16 %v1139, %v1135
    %v1664 = vpack.c.b16 %v1140, %v1136
    %v1665 = vpack.c.b16 %v1141, %v1137
    %v1666 = vpack.c.b16 %v1146, %v1142
    %v1667 = vpack.c.b16 %v1147, %v1143
    %v1668 = vpack.c.b16 %v1148, %v1144
    %v1669 = vpack.c.b16 %v1149, %v1145
    %v1670 = vpack.c.b16 %v1154, %v1150
    %v1671 = vpack.c.b16 %v1155, %v1151
    %v1672 = vpack.c.b16 %v1156, %v1152
    %v1673 = vpack.c.b16 %v1157, %v1153
    %v1674 = vpack.c.b16 %v1162, %v1158
    %v1675 = vpack.c.b16 %v1163, %v1159
    %v1676 = vpack.c.b16 %v1164, %v1160
    %v1677 = vpack.c.b16 %v1165, %v1161
    %v1678 = vpack.c.b16 %v1170, %v1166
    %v1679 = vpack.c.b16 %v1171, %v1167
    %v1680 = vpack.c.b16 %v1172, %v1168
    %v1681 = vpack.c.b16 %v1173, %v1169
    %v1682 = vpack.c.b16 %v1178, %v1174
    %v1683 = vpack.c.b16 %v1179, %v1175
    %v1684 = vpack.c.b16 %v1180, %v1176
    %v1685 = vpack.c.b16 %v1181, %v1177
    %v1686 = vpack.c.b16 %v1186, %v1182
    %v1687 = vpack.c.b16 %v1187, %v1183
    %v1688 = vpack.c.b16 %v1188, %v1184
    %v1689 = vpack.c.b16 %v1189, %v1185
    %v1690 = vpack.c.b16 %v1194, %v1190
    %v1691 = vpack.c.b16 %v1195, %v1191
    %v1692 = vpack.c.b16 %v1196, %v1192
    %v1693 = vpack.c.b16 %v1197, %v1193
    %v1694 = vpack.c.b16 %v1202, %v1198
    %v1695 = vpack.c.b16 %v1203, %v1199
    %v1696 = vpack.c.b16 %v1204, %v1200
    %v1697 = vpack.c.b16 %v1205, %v1201
    %v1698 = vpack.c.b16 %v1210, %v1206
    %v1699 = vpack.c.b16 %v1211, %v1207
    %v1700 = vpack.c.b16 %v1212, %v1208
    %v1701 = vpack.c.b16 %v1213, %v1209
    %v1702 = vpack.c.b16 %v1218, %v1214
    %v1703 = vpack.c.b16 %v1219, %v1215
    %v1704 = vpack.c.b16 %v1220, %v1216
    %v1705 = vpack.c.b16 %v1221, %v1217
    %v1706 = vpack.c.b16 %v1226, %v1222
    %v1707 = vpack.c.b16 %v1227, %v1223
    %v1708 = vpack.c.b16 %v1228, %v1224
    %v1709 = vpack.c.b16 %v1229, %v1225
    %v1710 = vpack.c.b16 %v1234, %v1230
    %v1711 = vpack.c.b16 %v1235, %v1231
    %v1712 = vpack.c.b16 %v1236, %v1232
    %v1713 = vpack.c.b16 %v1237, %v1233
    %v1714 = vpack.c.b16 %v1242, %v1238
    %v1715 = vpack.c.b16 %v1243, %v1239
    %v1716 = vpack.c.b16 %v1244, %v1240
    %v1717 = vpack.c.b16 %v1245, %v1241
    %v1718 = vpack.c.b16 %v1250, %v1246
    %v1719 = vpack.c.b16 %v1251, %v1247
    %v1720 = vpack.c.b16 %v1252, %v1248
    %v1721 = vpack.c.b16 %v1253, %v1249
    %v1722 = vpack.c.b16 %v1258, %v1254
    %v1723 = vpack.c.b16 %v1259, %v1255
    %v1724 = vpack.c.b16 %v1260, %v1256
    %v1725 = vpack.c.b16 %v1261, %v1257
    %v1726 = vpack.c.b16 %v1266, %v1262
    %v1727 = vpack.c.b16 %v1267, %v1263
    %v1728 = vpack.c.b16 %v1268, %v1264
    %v1729 = vpack.c.b16 %v1269, %v1265
    %v1730 = vpack.c.b16 %v1274, %v1270
    %v1731 = vpack.c.b16 %v1275, %v1271
    %v1732 = vpack.c.b16 %v1276, %v1272
    %v1733 = vpack.c.b16 %v1277, %v1273
    %v1734 = vpack.c.b16 %v1282, %v1278
    %v1735 = vpack.c.b16 %v1283, %v1279
    %v1736 = vpack.c.b16 %v1284, %v1280
    %v1737 = vpack.c.b16 %v1285, %v1281
    %v1738 = vpack.c.b16 %v1290, %v1286
    %v1739 = vpack.c.b16 %v1291, %v1287
    %v1740 = vpack.c.b16 %v1292, %v1288
    %v1741 = vpack.c.b16 %v1293, %v1289
    %v1742 = vpack.c.b16 %v1298, %v1294
    %v1743 = vpack.c.b16 %v1299, %v1295
    %v1744 = vpack.c.b16 %v1300, %v1296
    %v1745 = vpack.c.b16 %v1301, %v1297
    %v1746 = vpack.c.b16 %v1306, %v1302
    %v1747 = vpack.c.b16 %v1307, %v1303
    %v1748 = vpack.c.b16 %v1308, %v1304
    %v1749 = vpack.c.b16 %v1309, %v1305
    %v1750 = vpack.c.b16 %v1314, %v1310
    %v1751 = vpack.c.b16 %v1315, %v1311
    %v1752 = vpack.c.b16 %v1316, %v1312
    %v1753 = vpack.c.b16 %v1317, %v1313
    %v1754 = vpack.c.b16 %v1322, %v1318
    %v1755 = vpack.c.b16 %v1323, %v1319
    %v1756 = vpack.c.b16 %v1324, %v1320
    %v1757 = vpack.c.b16 %v1325, %v1321
    %v1758 = vpack.c.b16 %v1330, %v1326
    %v1759 = vpack.c.b16 %v1331, %v1327
    %v1760 = vpack.c.b16 %v1332, %v1328
    %v1761 = vpack.c.b16 %v1333, %v1329
    %v1762 = vpack.c.b16 %v1338, %v1334
    %v1763 = vpack.c.b16 %v1339, %v1335
    %v1764 = vpack.c.b16 %v1340, %v1336
    %v1765 = vpack.c.b16 %v1341, %v1337
    %v1766 = vpack.c.b16 %v1346, %v1342
    %v1767 = vpack.c.b16 %v1347, %v1343
    %v1768 = vpack.c.b16 %v1348, %v1344
    %v1769 = vpack.c.b16 %v1349, %v1345
    %v1770 = vpack.c.b16 %v1354, %v1350
    %v1771 = vpack.c.b16 %v1355, %v1351
    %v1772 = vpack.c.b16 %v1356, %v1352
    %v1773 = vpack.c.b16 %v1357, %v1353
    %v1774 = vpack.c.b16 %v1362, %v1358
    %v1775 = vpack.c.b16 %v1363, %v1359
    %v1776 = vpack.c.b16 %v1364, %v1360
    %v1777 = vpack.c.b16 %v1365, %v1361
    %v1778 = vpack.c.b16 %v1370, %v1366
    %v1779 = vpack.c.b16 %v1371, %v1367
    %v1780 = vpack.c.b16 %v1372, %v1368
    %v1781 = vpack.c.b16 %v1373, %v1369
    %v1782 = vpack.c.b16 %v1378, %v1374
    %v1783 = vpack.c.b16 %v1379, %v1375
    %v1784 = vpack.c.b16 %v1380, %v1376
    %v1785 = vpack.c.b16 %v1381, %v1377
    %v1786 = vpack.c.b16 %v1386, %v1382
    %v1787 = vpack.c.b16 %v1387, %v1383
    %v1788 = vpack.c.b16 %v1388, %v1384
    %v1789 = vpack.c.b16 %v1389, %v1385
    %v1790 = vpack.c.b16 %v1394, %v1390
    %v1791 = vpack.c.b16 %v1395, %v1391
    %v1792 = vpack.c.b16 %v1396, %v1392
    %v1793 = vpack.c.b16 %v1397, %v1393
    %v1794 = vpack.c.b16 %v1402, %v1398
    %v1795 = vpack.c.b16 %v1403, %v1399
    %v1796 = vpack.c.b16 %v1404, %v1400
    %v1797 = vpack.c.b16 %v1405, %v1401
    %v1798 = vpack.c.b16 %v1410, %v1406
    %v1799 = vpack.c.b16 %v1411, %v1407
    %v1800 = vpack.c.b16 %v1412, %v1408
    %v1801 = vpack.c.b16 %v1413, %v1409
    %v1802 = vpack.c.b16 %v1418, %v1414
    %v1803 = vpack.c.b16 %v1419, %v1415
    %v1804 = vpack.c.b16 %v1420, %v1416
    %v1805 = vpack.c.b16 %v1421, %v1417
    %v1806 = vpack.c.b16 %v1426, %v1422
    %v1807 = vpack.c.b16 %v1427, %v1423
    %v1808 = vpack.c.b16 %v1428, %v1424
    %v1809 = vpack.c.b16 %v1429, %v1425
    %v1810 = vpack.c.b16 %v1434, %v1430
    %v1811 = vpack.c.b16 %v1435, %v1431
    %v1812 = vpack.c.b16 %v1436, %v1432
    %v1813 = vpack.c.b16 %v1437, %v1433
    %v1814 = vpack.c.b16 %v1442, %v1438
    %v1815 = vpack.c.b16 %v1443, %v1439
    %v1816 = vpack.c.b16 %v1444, %v1440
    %v1817 = vpack.c.b16 %v1445, %v1441
    %v1818 = vpack.c.b16 %v1450, %v1446
    %v1819 = vpack.c.b16 %v1451, %v1447
    %v1820 = vpack.c.b16 %v1452, %v1448
    %v1821 = vpack.c.b16 %v1453, %v1449
    %v1822 = vpack.c.b16 %v1458, %v1454
    %v1823 = vpack.c.b16 %v1459, %v1455
    %v1824 = vpack.c.b16 %v1460, %v1456
    %v1825 = vpack.c.b16 %v1461, %v1457
    %v1826 = vpack.c.b16 %v1466, %v1462
    %v1827 = vpack.c.b16 %v1467, %v1463
    %v1828 = vpack.c.b16 %v1468, %v1464
    %v1829 = vpack.c.b16 %v1469, %v1465
    %v1830 = vpack.c.b16 %v1474, %v1470
    %v1831 = vpack.c.b16 %v1475, %v1471
    %v1832 = vpack.c.b16 %v1476, %v1472
    %v1833 = vpack.c.b16 %v1477, %v1473
    %v1834 = vpack.c.b16 %v1482, %v1478
    %v1835 = vpack.c.b16 %v1483, %v1479
    %v1836 = vpack.c.b16 %v1484, %v1480
    %v1837 = vpack.c.b16 %v1485, %v1481
    %v1838 = vpack.c.b16 %v1490, %v1486
    %v1839 = vpack.c.b16 %v1491, %v1487
    %v1840 = vpack.c.b16 %v1492, %v1488
    %v1841 = vpack.c.b16 %v1493, %v1489
    %v1842 = vpack.c.b16 %v1498, %v1494
    %v1843 = vpack.c.b16 %v1499, %v1495
    %v1844 = vpack.c.b16 %v1500, %v1496
    %v1845 = vpack.c.b16 %v1501, %v1497
    %v1846 = vpack.c.b16 %v1506, %v1502
    %v1847 = vpack.c.b16 %v1507, %v1503
    %v1848 = vpack.c.b16 %v1508, %v1504
    %v1849 = vpack.c.b16 %v1509, %v1505
    %v1850 = vpack.c.b16 %v1514, %v1510
    %v1851 = vpack.c.b16 %v1515, %v1511
    %v1852 = vpack.c.b16 %v1516, %v1512
    %v1853 = vpack.c.b16 %v1517, %v1513
    %v1854 = vpack.c.b16 %v1522, %v1518
    %v1855 = vpack.c.b16 %v1523, %v1519
    %v1856 = vpack.c.b16 %v1524, %v1520
    %v1857 = vpack.c.b16 %v1525, %v1521
    %v1858 = vpack.c.b16 %v1530, %v1526
    %v1859 = vpack.c.b16 %v1531, %v1527
    %v1860 = vpack.c.b16 %v1532, %v1528
    %v1861 = vpack.c.b16 %v1533, %v1529
    %v1862 = vpack.c.b16 %v1538, %v1534
    %v1863 = vpack.c.b16 %v1539, %v1535
    %v1864 = vpack.c.b16 %v1540, %v1536
    %v1865 = vpack.c.b16 %v1541, %v1537
    %v1866 = vpack.c.b16 %v1546, %v1542
    %v1867 = vpack.c.b16 %v1547, %v1543
    %v1868 = vpack.c.b16 %v1548, %v1544
    %v1869 = vpack.c.b16 %v1549, %v1545
    %2190 = vmatprep.subr.bf16.mxu0 %v1579
    %2191 = vmatpush1.bf16.msra.mxu0 %v1578
    %2192 = vmatprep.subr.bf16.mxu0 %v1575
    %2193 = vmatpush1.bf16.msra.mxu0 %v1574
    %2194 = vmatprep.subr.bf16.mxu0 %v1571
    %2195 = vmatpush1.bf16.msra.mxu0 %v1570
    %2196 = vmatprep.subr.bf16.mxu0 %v1567
    %2197 = vmatpush1.bf16.msra.mxu0 %v1566
    %2198 = vmatprep.subr.bf16.mxu0 %v1563
    %2199 = vmatpush1.bf16.msra.mxu0 %v1562
    %2200 = vmatprep.subr.bf16.mxu0 %v1559
    %2201 = vmatpush1.bf16.msra.mxu0 %v1558
    %2202 = vmatprep.subr.bf16.mxu0 %v1555
    %2203 = vmatpush1.bf16.msra.mxu0 %v1554
    %2204 = vmatprep.subr.bf16.mxu0 %v1551
    %2205 = vmatpush1.bf16.msra.mxu0 %v1550
    %2206 = vmatprep.subr.bf16.mxu0 %v1611
    %2207 = vmatpush2.bf16.msra.mxu0 %v1610
    %2208 = vmatprep.subr.bf16.mxu0 %v1607
    %2209 = vmatpush2.bf16.msra.mxu0 %v1606
    %2210 = vmatprep.subr.bf16.mxu0 %v1603
    %2211 = vmatpush2.bf16.msra.mxu0 %v1602
    %2212 = vmatprep.subr.bf16.mxu0 %v1599
    %2213 = vmatpush2.bf16.msra.mxu0 %v1598
    %2214 = vmatprep.subr.bf16.mxu0 %v1595
    %2215 = vmatpush2.bf16.msra.mxu0 %v1594
    %2216 = vmatprep.subr.bf16.mxu0 %v1591
    %2217 = vmatpush2.bf16.msra.mxu0 %v1590
    %2218 = vmatprep.subr.bf16.mxu0 %v1587
    %2219 = vmatpush2.bf16.msra.mxu0 %v1586
    %2220 = vmatprep.subr.bf16.mxu0 %v1583
    %2221 = vmatpush2.bf16.msra.mxu0 %v1582
    %2222 = vmatprep.mubr.bf16.mxu0 %v536
    %2223 = vmatmul.mubr.bf16.gmra.mxu0 %v522
    %v2224 = vpop.f32.mrf.mxu0
    %v2225 = vadd.f32 %v455, %v2224
    %v2226 = vpop.f32.mrf.mxu0
    %v2227 = vadd.f32 %v459, %v2226
    %v2228 = vpop.f32.mrf.mxu0
    %v2229 = vpop.f32.mrf.mxu0
    %2230 = vdwg.mxu0
    %2231 = vmatprep.subr.bf16.mxu0 %v1643
    %2232 = vmatpush1.bf16.msra.mxu0 %v1642
    %2233 = vmatprep.subr.bf16.mxu0 %v1639
    %2234 = vmatpush1.bf16.msra.mxu0 %v1638
    %2235 = vmatprep.subr.bf16.mxu0 %v1635
    %2236 = vmatpush1.bf16.msra.mxu0 %v1634
    %2237 = vmatprep.subr.bf16.mxu0 %v1631
    %2238 = vmatpush1.bf16.msra.mxu0 %v1630
    %2239 = vmatprep.subr.bf16.mxu0 %v1627
    %2240 = vmatpush1.bf16.msra.mxu0 %v1626
    %2241 = vmatprep.subr.bf16.mxu0 %v1623
    %2242 = vmatpush1.bf16.msra.mxu0 %v1622
    %2243 = vmatprep.subr.bf16.mxu0 %v1619
    %2244 = vmatpush1.bf16.msra.mxu0 %v1618
    %2245 = vmatprep.subr.bf16.mxu0 %v1615
    %2246 = vmatpush1.bf16.msra.mxu0 %v1614
    %2247 = vmatprep.subr.bf16.mxu0 %v1675
    %2248 = vmatpush2.bf16.msra.mxu0 %v1674
    %2249 = vmatprep.subr.bf16.mxu0 %v1671
    %2250 = vmatpush2.bf16.msra.mxu0 %v1670
    %2251 = vmatprep.subr.bf16.mxu0 %v1667
    %2252 = vmatpush2.bf16.msra.mxu0 %v1666
    %2253 = vmatprep.subr.bf16.mxu0 %v1663
    %2254 = vmatpush2.bf16.msra.mxu0 %v1662
    %2255 = vmatprep.subr.bf16.mxu0 %v1659
    %2256 = vmatpush2.bf16.msra.mxu0 %v1658
    %2257 = vmatprep.subr.bf16.mxu0 %v1655
    %2258 = vmatpush2.bf16.msra.mxu0 %v1654
    %2259 = vmatprep.subr.bf16.mxu0 %v1651
    %2260 = vmatpush2.bf16.msra.mxu0 %v1650
    %2261 = vmatprep.subr.bf16.mxu0 %v1647
    %2262 = vmatpush2.bf16.msra.mxu0 %v1646
    %2263 = vmatprep.mubr.bf16.mxu0 %v546
    %2264 = vmatmul.mubr.bf16.gmra.mxu0 %v544
    %v2265 = vpop.f32.mrf.mxu0
    %v2266 = vadd.f32 %v2225, %v2265
    %v2267 = vpop.f32.mrf.mxu0
    %v2268 = vadd.f32 %v2227, %v2267
    %v2269 = vpop.f32.mrf.mxu0
    %v2270 = vpop.f32.mrf.mxu0
    %2271 = vdwg.mxu0
    %2272 = vmatprep.subr.bf16.mxu0 %v1707
    %2273 = vmatpush1.bf16.msra.mxu0 %v1706
    %2274 = vmatprep.subr.bf16.mxu0 %v1703
    %2275 = vmatpush1.bf16.msra.mxu0 %v1702
    %2276 = vmatprep.subr.bf16.mxu0 %v1699
    %2277 = vmatpush1.bf16.msra.mxu0 %v1698
    %2278 = vmatprep.subr.bf16.mxu0 %v1695
    %2279 = vmatpush1.bf16.msra.mxu0 %v1694
    %2280 = vmatprep.subr.bf16.mxu0 %v1691
    %2281 = vmatpush1.bf16.msra.mxu0 %v1690
    %2282 = vmatprep.subr.bf16.mxu0 %v1687
    %2283 = vmatpush1.bf16.msra.mxu0 %v1686
    %2284 = vmatprep.subr.bf16.mxu0 %v1683
    %2285 = vmatpush1.bf16.msra.mxu0 %v1682
    %2286 = vmatprep.subr.bf16.mxu0 %v1679
    %2287 = vmatpush1.bf16.msra.mxu0 %v1678
    %2288 = vmatprep.subr.bf16.mxu0 %v1739
    %2289 = vmatpush2.bf16.msra.mxu0 %v1738
    %2290 = vmatprep.subr.bf16.mxu0 %v1735
    %2291 = vmatpush2.bf16.msra.mxu0 %v1734
    %2292 = vmatprep.subr.bf16.mxu0 %v1731
    %2293 = vmatpush2.bf16.msra.mxu0 %v1730
    %2294 = vmatprep.subr.bf16.mxu0 %v1727
    %2295 = vmatpush2.bf16.msra.mxu0 %v1726
    %2296 = vmatprep.subr.bf16.mxu0 %v1723
    %2297 = vmatpush2.bf16.msra.mxu0 %v1722
    %2298 = vmatprep.subr.bf16.mxu0 %v1719
    %2299 = vmatpush2.bf16.msra.mxu0 %v1718
    %2300 = vmatprep.subr.bf16.mxu0 %v1715
    %2301 = vmatpush2.bf16.msra.mxu0 %v1714
    %2302 = vmatprep.subr.bf16.mxu0 %v1711
    %2303 = vmatpush2.bf16.msra.mxu0 %v1710
    %2304 = vmatprep.mubr.bf16.mxu0 %v543
    %2305 = vmatmul.mubr.bf16.gmra.mxu0 %v529
    %v2306 = vpop.f32.mrf.mxu0
    %v2307 = vadd.f32 %v2266, %v2306
    %v2308 = vpop.f32.mrf.mxu0
    %v2309 = vadd.f32 %v2268, %v2308
    %v2310 = vpop.f32.mrf.mxu0
    %v2311 = vpop.f32.mrf.mxu0
    %2312 = vdwg.mxu0
    %2313 = vmatprep.subr.bf16.mxu0 %v1771
    %2314 = vmatpush1.bf16.msra.mxu0 %v1770
    %2315 = vmatprep.subr.bf16.mxu0 %v1767
    %2316 = vmatpush1.bf16.msra.mxu0 %v1766
    %2317 = vmatprep.subr.bf16.mxu0 %v1763
    %2318 = vmatpush1.bf16.msra.mxu0 %v1762
    %2319 = vmatprep.subr.bf16.mxu0 %v1759
    %2320 = vmatpush1.bf16.msra.mxu0 %v1758
    %2321 = vmatprep.subr.bf16.mxu0 %v1755
    %2322 = vmatpush1.bf16.msra.mxu0 %v1754
    %2323 = vmatprep.subr.bf16.mxu0 %v1751
    %2324 = vmatpush1.bf16.msra.mxu0 %v1750
    %2325 = vmatprep.subr.bf16.mxu0 %v1747
    %2326 = vmatpush1.bf16.msra.mxu0 %v1746
    %2327 = vmatprep.subr.bf16.mxu0 %v1743
    %2328 = vmatpush1.bf16.msra.mxu0 %v1742
    %2329 = vmatprep.subr.bf16.mxu0 %v1803
    %2330 = vmatpush2.bf16.msra.mxu0 %v1802
    %2331 = vmatprep.subr.bf16.mxu0 %v1799
    %2332 = vmatpush2.bf16.msra.mxu0 %v1798
    %2333 = vmatprep.subr.bf16.mxu0 %v1795
    %2334 = vmatpush2.bf16.msra.mxu0 %v1794
    %2335 = vmatprep.subr.bf16.mxu0 %v1791
    %2336 = vmatpush2.bf16.msra.mxu0 %v1790
    %2337 = vmatprep.subr.bf16.mxu0 %v1787
    %2338 = vmatpush2.bf16.msra.mxu0 %v1786
    %2339 = vmatprep.subr.bf16.mxu0 %v1783
    %2340 = vmatpush2.bf16.msra.mxu0 %v1782
    %2341 = vmatprep.subr.bf16.mxu0 %v1779
    %2342 = vmatpush2.bf16.msra.mxu0 %v1778
    %2343 = vmatprep.subr.bf16.mxu0 %v1775
    %2344 = vmatpush2.bf16.msra.mxu0 %v1774
    %2345 = vmatprep.mubr.bf16.mxu0 %v547
    %2346 = vmatmul.mubr.bf16.gmra.mxu0 %v545
    %v2347 = vpop.f32.mrf.mxu0
    %v2348 = vadd.f32 %v2307, %v2347
    %v2349 = vpop.f32.mrf.mxu0
    %v2350 = vadd.f32 %v2309, %v2349
    %v2351 = vpop.f32.mrf.mxu0
    %v2352 = vpop.f32.mrf.mxu0
    %2353 = vdwg.mxu0
    %2354 = vmatprep.subr.bf16.mxu0 %v1835
    %2355 = vmatpush1.bf16.msra.mxu0 %v1834
    %2356 = vmatprep.subr.bf16.mxu0 %v1831
    %2357 = vmatpush1.bf16.msra.mxu0 %v1830
    %2358 = vmatprep.subr.bf16.mxu0 %v1827
    %2359 = vmatpush1.bf16.msra.mxu0 %v1826
    %2360 = vmatprep.subr.bf16.mxu0 %v1823
    %2361 = vmatpush1.bf16.msra.mxu0 %v1822
    %2362 = vmatprep.subr.bf16.mxu0 %v1819
    %2363 = vmatpush1.bf16.msra.mxu0 %v1818
    %2364 = vmatprep.subr.bf16.mxu0 %v1815
    %2365 = vmatpush1.bf16.msra.mxu0 %v1814
    %2366 = vmatprep.subr.bf16.mxu0 %v1811
    %2367 = vmatpush1.bf16.msra.mxu0 %v1810
    %2368 = vmatprep.subr.bf16.mxu0 %v1807
    %2369 = vmatpush1.bf16.msra.mxu0 %v1806
    %2370 = vmatprep.subr.bf16.mxu0 %v1867
    %2371 = vmatpush2.bf16.msra.mxu0 %v1866
    %2372 = vmatprep.subr.bf16.mxu0 %v1863
    %2373 = vmatpush2.bf16.msra.mxu0 %v1862
    %2374 = vmatprep.subr.bf16.mxu0 %v1859
    %2375 = vmatpush2.bf16.msra.mxu0 %v1858
    %2376 = vmatprep.subr.bf16.mxu0 %v1855
    %2377 = vmatpush2.bf16.msra.mxu0 %v1854
    %2378 = vmatprep.subr.bf16.mxu0 %v1851
    %2379 = vmatpush2.bf16.msra.mxu0 %v1850
    %2380 = vmatprep.subr.bf16.mxu0 %v1847
    %2381 = vmatpush2.bf16.msra.mxu0 %v1846
    %2382 = vmatprep.subr.bf16.mxu0 %v1843
    %2383 = vmatpush2.bf16.msra.mxu0 %v1842
    %2384 = vmatprep.subr.bf16.mxu0 %v1839
    %2385 = vmatpush2.bf16.msra.mxu0 %v1838
    %2386 = vmatprep.mubr.bf16.mxu0 %v579
    %2387 = vmatmul.mubr.bf16.gmra.mxu0 %v572
    %v2388 = vpop.f32.mrf.mxu0
    %v2389 = vadd.f32 %v2348, %v2388
    %v2390 = vpop.f32.mrf.mxu0
    %v2391 = vadd.f32 %v2350, %v2390
    %v2392 = vpop.f32.mrf.mxu0
    %v2393 = vpop.f32.mrf.mxu0
    %2394 = vdwg.mxu0
    %2395 = vmatprep.subr.bf16.mxu0 %v1581
    %2396 = vmatpush1.bf16.msra.mxu0 %v1580
    %2397 = vmatprep.subr.bf16.mxu0 %v1577
    %2398 = vmatpush1.bf16.msra.mxu0 %v1576
    %2399 = vmatprep.subr.bf16.mxu0 %v1573
    %2400 = vmatpush1.bf16.msra.mxu0 %v1572
    %2401 = vmatprep.subr.bf16.mxu0 %v1569
    %2402 = vmatpush1.bf16.msra.mxu0 %v1568
    %2403 = vmatprep.subr.bf16.mxu0 %v1565
    %2404 = vmatpush1.bf16.msra.mxu0 %v1564
    %2405 = vmatprep.subr.bf16.mxu0 %v1561
    %2406 = vmatpush1.bf16.msra.mxu0 %v1560
    %2407 = vmatprep.subr.bf16.mxu0 %v1557
    %2408 = vmatpush1.bf16.msra.mxu0 %v1556
    %2409 = vmatprep.subr.bf16.mxu0 %v1553
    %2410 = vmatpush1.bf16.msra.mxu0 %v1552
    %2411 = vmatprep.subr.bf16.mxu0 %v1613
    %2412 = vmatpush2.bf16.msra.mxu0 %v1612
    %2413 = vmatprep.subr.bf16.mxu0 %v1609
    %2414 = vmatpush2.bf16.msra.mxu0 %v1608
    %2415 = vmatprep.subr.bf16.mxu0 %v1605
    %2416 = vmatpush2.bf16.msra.mxu0 %v1604
    %2417 = vmatprep.subr.bf16.mxu0 %v1601
    %2418 = vmatpush2.bf16.msra.mxu0 %v1600
    %2419 = vmatprep.subr.bf16.mxu0 %v1597
    %2420 = vmatpush2.bf16.msra.mxu0 %v1596
    %2421 = vmatprep.subr.bf16.mxu0 %v1593
    %2422 = vmatpush2.bf16.msra.mxu0 %v1592
    %2423 = vmatprep.subr.bf16.mxu0 %v1589
    %2424 = vmatpush2.bf16.msra.mxu0 %v1588
    %2425 = vmatprep.subr.bf16.mxu0 %v1585
    %2426 = vmatpush2.bf16.msra.mxu0 %v1584
    %2427 = vmatprep.mubr.bf16.mxu0 %v536
    %2428 = vmatmul.mubr.bf16.gmra.mxu0 %v522
    %v2429 = vpop.f32.mrf.mxu0
    %v2430 = vadd.f32 %v463, %v2429
    %v2431 = vpop.f32.mrf.mxu0
    %v2432 = vadd.f32 %v467, %v2431
    %v2433 = vpop.f32.mrf.mxu0
    %v2434 = vpop.f32.mrf.mxu0
    %2435 = vdwg.mxu0
    %2436 = vmatprep.subr.bf16.mxu0 %v1645
    %2437 = vmatpush1.bf16.msra.mxu0 %v1644
    %2438 = vmatprep.subr.bf16.mxu0 %v1641
    %2439 = vmatpush1.bf16.msra.mxu0 %v1640
    %2440 = vmatprep.subr.bf16.mxu0 %v1637
    %2441 = vmatpush1.bf16.msra.mxu0 %v1636
    %2442 = vmatprep.subr.bf16.mxu0 %v1633
    %2443 = vmatpush1.bf16.msra.mxu0 %v1632
    %2444 = vmatprep.subr.bf16.mxu0 %v1629
    %2445 = vmatpush1.bf16.msra.mxu0 %v1628
    %2446 = vmatprep.subr.bf16.mxu0 %v1625
    %2447 = vmatpush1.bf16.msra.mxu0 %v1624
    %2448 = vmatprep.subr.bf16.mxu0 %v1621
    %2449 = vmatpush1.bf16.msra.mxu0 %v1620
    %2450 = vmatprep.subr.bf16.mxu0 %v1617
    %2451 = vmatpush1.bf16.msra.mxu0 %v1616
    %2452 = vmatprep.subr.bf16.mxu0 %v1677
    %2453 = vmatpush2.bf16.msra.mxu0 %v1676
    %2454 = vmatprep.subr.bf16.mxu0 %v1673
    %2455 = vmatpush2.bf16.msra.mxu0 %v1672
    %2456 = vmatprep.subr.bf16.mxu0 %v1669
    %2457 = vmatpush2.bf16.msra.mxu0 %v1668
    %2458 = vmatprep.subr.bf16.mxu0 %v1665
    %2459 = vmatpush2.bf16.msra.mxu0 %v1664
    %2460 = vmatprep.subr.bf16.mxu0 %v1661
    %2461 = vmatpush2.bf16.msra.mxu0 %v1660
    %2462 = vmatprep.subr.bf16.mxu0 %v1657
    %2463 = vmatpush2.bf16.msra.mxu0 %v1656
    %2464 = vmatprep.subr.bf16.mxu0 %v1653
    %2465 = vmatpush2.bf16.msra.mxu0 %v1652
    %2466 = vmatprep.subr.bf16.mxu0 %v1649
    %2467 = vmatpush2.bf16.msra.mxu0 %v1648
    %2468 = vmatprep.mubr.bf16.mxu0 %v546
    %2469 = vmatmul.mubr.bf16.gmra.mxu0 %v544
    %v2470 = vpop.f32.mrf.mxu0
    %v2471 = vadd.f32 %v2430, %v2470
    %v2472 = vpop.f32.mrf.mxu0
    %v2473 = vadd.f32 %v2432, %v2472
    %v2474 = vpop.f32.mrf.mxu0
    %v2475 = vpop.f32.mrf.mxu0
    %2476 = vdwg.mxu0
    %2477 = vmatprep.subr.bf16.mxu0 %v1709
    %2478 = vmatpush1.bf16.msra.mxu0 %v1708
    %2479 = vmatprep.subr.bf16.mxu0 %v1705
    %2480 = vmatpush1.bf16.msra.mxu0 %v1704
    %2481 = vmatprep.subr.bf16.mxu0 %v1701
    %2482 = vmatpush1.bf16.msra.mxu0 %v1700
    %2483 = vmatprep.subr.bf16.mxu0 %v1697
    %2484 = vmatpush1.bf16.msra.mxu0 %v1696
    %2485 = vmatprep.subr.bf16.mxu0 %v1693
    %2486 = vmatpush1.bf16.msra.mxu0 %v1692
    %2487 = vmatprep.subr.bf16.mxu0 %v1689
    %2488 = vmatpush1.bf16.msra.mxu0 %v1688
    %2489 = vmatprep.subr.bf16.mxu0 %v1685
    %2490 = vmatpush1.bf16.msra.mxu0 %v1684
    %2491 = vmatprep.subr.bf16.mxu0 %v1681
    %2492 = vmatpush1.bf16.msra.mxu0 %v1680
    %2493 = vmatprep.subr.bf16.mxu0 %v1741
    %2494 = vmatpush2.bf16.msra.mxu0 %v1740
    %2495 = vmatprep.subr.bf16.mxu0 %v1737
    %2496 = vmatpush2.bf16.msra.mxu0 %v1736
    %2497 = vmatprep.subr.bf16.mxu0 %v1733
    %2498 = vmatpush2.bf16.msra.mxu0 %v1732
    %2499 = vmatprep.subr.bf16.mxu0 %v1729
    %2500 = vmatpush2.bf16.msra.mxu0 %v1728
    %2501 = vmatprep.subr.bf16.mxu0 %v1725
    %2502 = vmatpush2.bf16.msra.mxu0 %v1724
    %2503 = vmatprep.subr.bf16.mxu0 %v1721
    %2504 = vmatpush2.bf16.msra.mxu0 %v1720
    %2505 = vmatprep.subr.bf16.mxu0 %v1717
    %2506 = vmatpush2.bf16.msra.mxu0 %v1716
    %2507 = vmatprep.subr.bf16.mxu0 %v1713
    %2508 = vmatpush2.bf16.msra.mxu0 %v1712
    %2509 = vmatprep.mubr.bf16.mxu0 %v543
    %2510 = vmatmul.mubr.bf16.gmra.mxu0 %v529
    %v2511 = vpop.f32.mrf.mxu0
    %v2512 = vadd.f32 %v2471, %v2511
    %v2513 = vpop.f32.mrf.mxu0
    %v2514 = vadd.f32 %v2473, %v2513
    %v2515 = vpop.f32.mrf.mxu0
    %v2516 = vpop.f32.mrf.mxu0
    %2517 = vdwg.mxu0
    %2518 = vmatprep.subr.bf16.mxu0 %v1773
    %2519 = vmatpush1.bf16.msra.mxu0 %v1772
    %2520 = vmatprep.subr.bf16.mxu0 %v1769
    %2521 = vmatpush1.bf16.msra.mxu0 %v1768
    %2522 = vmatprep.subr.bf16.mxu0 %v1765
    %2523 = vmatpush1.bf16.msra.mxu0 %v1764
    %2524 = vmatprep.subr.bf16.mxu0 %v1761
    %2525 = vmatpush1.bf16.msra.mxu0 %v1760
    %2526 = vmatprep.subr.bf16.mxu0 %v1757
    %2527 = vmatpush1.bf16.msra.mxu0 %v1756
    %2528 = vmatprep.subr.bf16.mxu0 %v1753
    %2529 = vmatpush1.bf16.msra.mxu0 %v1752
    %2530 = vmatprep.subr.bf16.mxu0 %v1749
    %2531 = vmatpush1.bf16.msra.mxu0 %v1748
    %2532 = vmatprep.subr.bf16.mxu0 %v1745
    %2533 = vmatpush1.bf16.msra.mxu0 %v1744
    %2534 = vmatprep.subr.bf16.mxu0 %v1805
    %2535 = vmatpush2.bf16.msra.mxu0 %v1804
    %2536 = vmatprep.subr.bf16.mxu0 %v1801
    %2537 = vmatpush2.bf16.msra.mxu0 %v1800
    %2538 = vmatprep.subr.bf16.mxu0 %v1797
    %2539 = vmatpush2.bf16.msra.mxu0 %v1796
    %2540 = vmatprep.subr.bf16.mxu0 %v1793
    %2541 = vmatpush2.bf16.msra.mxu0 %v1792
    %2542 = vmatprep.subr.bf16.mxu0 %v1789
    %2543 = vmatpush2.bf16.msra.mxu0 %v1788
    %2544 = vmatprep.subr.bf16.mxu0 %v1785
    %2545 = vmatpush2.bf16.msra.mxu0 %v1784
    %2546 = vmatprep.subr.bf16.mxu0 %v1781
    %2547 = vmatpush2.bf16.msra.mxu0 %v1780
    %2548 = vmatprep.subr.bf16.mxu0 %v1777
    %2549 = vmatpush2.bf16.msra.mxu0 %v1776
    %2550 = vmatprep.mubr.bf16.mxu0 %v547
    %2551 = vmatmul.mubr.bf16.gmra.mxu0 %v545
    %v2552 = vpop.f32.mrf.mxu0
    %v2553 = vadd.f32 %v2512, %v2552
    %v2554 = vpop.f32.mrf.mxu0
    %v2555 = vadd.f32 %v2514, %v2554
    %v2556 = vpop.f32.mrf.mxu0
    %v2557 = vpop.f32.mrf.mxu0
    %2558 = vdwg.mxu0
    %2559 = vmatprep.subr.bf16.mxu0 %v1837
    %2560 = vmatpush1.bf16.msra.mxu0 %v1836
    %2561 = vmatprep.subr.bf16.mxu0 %v1833
    %2562 = vmatpush1.bf16.msra.mxu0 %v1832
    %2563 = vmatprep.subr.bf16.mxu0 %v1829
    %2564 = vmatpush1.bf16.msra.mxu0 %v1828
    %2565 = vmatprep.subr.bf16.mxu0 %v1825
    %2566 = vmatpush1.bf16.msra.mxu0 %v1824
    %2567 = vmatprep.subr.bf16.mxu0 %v1821
    %2568 = vmatpush1.bf16.msra.mxu0 %v1820
    %2569 = vmatprep.subr.bf16.mxu0 %v1817
    %2570 = vmatpush1.bf16.msra.mxu0 %v1816
    %2571 = vmatprep.subr.bf16.mxu0 %v1813
    %2572 = vmatpush1.bf16.msra.mxu0 %v1812
    %2573 = vmatprep.subr.bf16.mxu0 %v1809
    %2574 = vmatpush1.bf16.msra.mxu0 %v1808
    %2575 = vmatprep.subr.bf16.mxu0 %v1869
    %2576 = vmatpush2.bf16.msra.mxu0 %v1868
    %2577 = vmatprep.subr.bf16.mxu0 %v1865
    %2578 = vmatpush2.bf16.msra.mxu0 %v1864
    %2579 = vmatprep.subr.bf16.mxu0 %v1861
    %2580 = vmatpush2.bf16.msra.mxu0 %v1860
    %2581 = vmatprep.subr.bf16.mxu0 %v1857
    %2582 = vmatpush2.bf16.msra.mxu0 %v1856
    %2583 = vmatprep.subr.bf16.mxu0 %v1853
    %2584 = vmatpush2.bf16.msra.mxu0 %v1852
    %2585 = vmatprep.subr.bf16.mxu0 %v1849
    %2586 = vmatpush2.bf16.msra.mxu0 %v1848
    %2587 = vmatprep.subr.bf16.mxu0 %v1845
    %2588 = vmatpush2.bf16.msra.mxu0 %v1844
    %2589 = vmatprep.subr.bf16.mxu0 %v1841
    %2590 = vmatpush2.bf16.msra.mxu0 %v1840
    %2591 = vmatprep.mubr.bf16.mxu0 %v579
    %2592 = vmatmul.mubr.bf16.gmra.mxu0 %v572
    %v2593 = vpop.f32.mrf.mxu0
    %v2594 = vadd.f32 %v2553, %v2593
    %v2595 = vpop.f32.mrf.mxu0
    %v2596 = vadd.f32 %v2555, %v2595
    %v2597 = vpop.f32.mrf.mxu0
    %v2598 = vpop.f32.mrf.mxu0
    %2599 = vdwg.mxu0
    %v2600 = vmax.f32 %v2389, 0.0
    %v2601 = vmax.f32 %v2391, 0.0
    %v2602 = vmax.f32 %v2594, 0.0
    %v2603 = vmax.f32 %v2596, 0.0
    %v2604 = vpack.c.bf16 %v2600, %v2600
    %v2605 = vpack.c.bf16 %v2601, %v2601
    %v2606 = vpack.c.bf16 %v2602, %v2602
    %v2607 = vpack.c.bf16 %v2603, %v2603
    %v2608 = vld [vmem:[#allocation9] sm:$0xff]
    %v2609 = vld [vmem:[#allocation9 + $0x8] sm:$0xff]
    %v2610 = vld [vmem:[#allocation9 + $0x10] sm:$0xff]
    %v2611 = vld [vmem:[#allocation9 + $0x18] sm:$0xff]
    %v2612 = vld [vmem:[#allocation9 + $0x20] sm:$0xff]
    %v2613 = vld [vmem:[#allocation9 + $0x28] sm:$0xff]
    %v2614 = vld [vmem:[#allocation9 + $0x30] sm:$0xff]
    %v2615 = vld [vmem:[#allocation9 + $0x38] sm:$0xff]
    %v2616 = vld [vmem:[#allocation9 + $0x40] sm:$0xff]
    %v2617 = vld [vmem:[#allocation9 + $0x48] sm:$0xff]
    %v2618 = vld [vmem:[#allocation9 + $0x50] sm:$0xff]
    %v2619 = vld [vmem:[#allocation9 + $0x58] sm:$0xff]
    %v2620 = vld [vmem:[#allocation9 + $0x60] sm:$0xff]
    %v2621 = vld [vmem:[#allocation9 + $0x68] sm:$0xff]
    %v2622 = vld [vmem:[#allocation9 + $0x70] sm:$0xff]
    %v2623 = vld [vmem:[#allocation9 + $0x78] sm:$0xff]
    %v2624 = vld [vmem:[#allocation9 + $0x80] sm:$0xff]
    %v2625 = vld [vmem:[#allocation9 + $0x88] sm:$0xff]
    %v2626 = vld [vmem:[#allocation9 + $0x90] sm:$0xff]
    %v2627 = vld [vmem:[#allocation9 + $0x98] sm:$0xff]
    %v2628 = vld [vmem:[#allocation9 + $0xa0] sm:$0xff]
    %v2629 = vld [vmem:[#allocation9 + $0xa8] sm:$0xff]
    %v2630 = vld [vmem:[#allocation9 + $0xb0] sm:$0xff]
    %v2631 = vld [vmem:[#allocation9 + $0xb8] sm:$0xff]
    %v2632 = vld [vmem:[#allocation9 + $0xc0] sm:$0xff]
    %v2633 = vld [vmem:[#allocation9 + $0xc8] sm:$0xff]
    %v2634 = vld [vmem:[#allocation9 + $0xd0] sm:$0xff]
    %v2635 = vld [vmem:[#allocation9 + $0xd8] sm:$0xff]
    %v2636 = vld [vmem:[#allocation9 + $0xe0] sm:$0xff]
    %v2637 = vld [vmem:[#allocation9 + $0xe8] sm:$0xff]
    %v2638 = vld [vmem:[#allocation9 + $0xf0] sm:$0xff]
    %v2639 = vld [vmem:[#allocation9 + $0xf8] sm:$0xff]
    %v2640 = vld [vmem:[#allocation9 + $0x100] sm:$0xff]
    %v2641 = vld [vmem:[#allocation9 + $0x108] sm:$0xff]
    %v2642 = vld [vmem:[#allocation9 + $0x110] sm:$0xff]
    %v2643 = vld [vmem:[#allocation9 + $0x118] sm:$0xff]
    %v2644 = vld [vmem:[#allocation9 + $0x120] sm:$0xff]
    %v2645 = vld [vmem:[#allocation9 + $0x128] sm:$0xff]
    %v2646 = vld [vmem:[#allocation9 + $0x130] sm:$0xff]
    %v2647 = vld [vmem:[#allocation9 + $0x138] sm:$0xff]
    %v2648 = vld [vmem:[#allocation9 + $0x140] sm:$0xff]
    %v2649 = vld [vmem:[#allocation9 + $0x148] sm:$0xff]
    %v2650 = vld [vmem:[#allocation9 + $0x150] sm:$0xff]
    %v2651 = vld [vmem:[#allocation9 + $0x158] sm:$0xff]
    %v2652 = vld [vmem:[#allocation9 + $0x160] sm:$0xff]
    %v2653 = vld [vmem:[#allocation9 + $0x168] sm:$0xff]
    %v2654 = vld [vmem:[#allocation9 + $0x170] sm:$0xff]
    %v2655 = vld [vmem:[#allocation9 + $0x178] sm:$0xff]
    %v2656 = vld [vmem:[#allocation9 + $0x180] sm:$0xff]
    %v2657 = vld [vmem:[#allocation9 + $0x188] sm:$0xff]
    %v2658 = vld [vmem:[#allocation9 + $0x190] sm:$0xff]
    %v2659 = vld [vmem:[#allocation9 + $0x198] sm:$0xff]
    %v2660 = vld [vmem:[#allocation9 + $0x1a0] sm:$0xff]
    %v2661 = vld [vmem:[#allocation9 + $0x1a8] sm:$0xff]
    %v2662 = vld [vmem:[#allocation9 + $0x1b0] sm:$0xff]
    %v2663 = vld [vmem:[#allocation9 + $0x1b8] sm:$0xff]
    %v2664 = vld [vmem:[#allocation9 + $0x1c0] sm:$0xff]
    %v2665 = vld [vmem:[#allocation9 + $0x1c8] sm:$0xff]
    %v2666 = vld [vmem:[#allocation9 + $0x1d0] sm:$0xff]
    %v2667 = vld [vmem:[#allocation9 + $0x1d8] sm:$0xff]
    %v2668 = vld [vmem:[#allocation9 + $0x1e0] sm:$0xff]
    %v2669 = vld [vmem:[#allocation9 + $0x1e8] sm:$0xff]
    %v2670 = vld [vmem:[#allocation9 + $0x1f0] sm:$0xff]
    %v2671 = vld [vmem:[#allocation9 + $0x1f8] sm:$0xff]
    %v2672 = vld [vmem:[#allocation9 + $0x200] sm:$0xff]
    %v2673 = vld [vmem:[#allocation9 + $0x208] sm:$0xff]
    %v2674 = vld [vmem:[#allocation9 + $0x210] sm:$0xff]
    %v2675 = vld [vmem:[#allocation9 + $0x218] sm:$0xff]
    %v2676 = vld [vmem:[#allocation9 + $0x220] sm:$0xff]
    %v2677 = vld [vmem:[#allocation9 + $0x228] sm:$0xff]
    %v2678 = vld [vmem:[#allocation9 + $0x230] sm:$0xff]
    %v2679 = vld [vmem:[#allocation9 + $0x238] sm:$0xff]
    %v2680 = vld [vmem:[#allocation9 + $0x240] sm:$0xff]
    %v2681 = vld [vmem:[#allocation9 + $0x248] sm:$0xff]
    %v2682 = vld [vmem:[#allocation9 + $0x250] sm:$0xff]
    %v2683 = vld [vmem:[#allocation9 + $0x258] sm:$0xff]
    %v2684 = vld [vmem:[#allocation9 + $0x260] sm:$0xff]
    %v2685 = vld [vmem:[#allocation9 + $0x268] sm:$0xff]
    %v2686 = vld [vmem:[#allocation9 + $0x270] sm:$0xff]
    %v2687 = vld [vmem:[#allocation9 + $0x278] sm:$0xff]
    %v2688 = vld [vmem:[#allocation9 + $0x280] sm:$0xff]
    %v2689 = vld [vmem:[#allocation9 + $0x288] sm:$0xff]
    %v2690 = vld [vmem:[#allocation9 + $0x290] sm:$0xff]
    %v2691 = vld [vmem:[#allocation9 + $0x298] sm:$0xff]
    %v2692 = vld [vmem:[#allocation9 + $0x2a0] sm:$0xff]
    %v2693 = vld [vmem:[#allocation9 + $0x2a8] sm:$0xff]
    %v2694 = vld [vmem:[#allocation9 + $0x2b0] sm:$0xff]
    %v2695 = vld [vmem:[#allocation9 + $0x2b8] sm:$0xff]
    %v2696 = vld [vmem:[#allocation9 + $0x2c0] sm:$0xff]
    %v2697 = vld [vmem:[#allocation9 + $0x2c8] sm:$0xff]
    %v2698 = vld [vmem:[#allocation9 + $0x2d0] sm:$0xff]
    %v2699 = vld [vmem:[#allocation9 + $0x2d8] sm:$0xff]
    %v2700 = vld [vmem:[#allocation9 + $0x2e0] sm:$0xff]
    %v2701 = vld [vmem:[#allocation9 + $0x2e8] sm:$0xff]
    %v2702 = vld [vmem:[#allocation9 + $0x2f0] sm:$0xff]
    %v2703 = vld [vmem:[#allocation9 + $0x2f8] sm:$0xff]
    %v2704 = vld [vmem:[#allocation9 + $0x300] sm:$0xff]
    %v2705 = vld [vmem:[#allocation9 + $0x308] sm:$0xff]
    %v2706 = vld [vmem:[#allocation9 + $0x310] sm:$0xff]
    %v2707 = vld [vmem:[#allocation9 + $0x318] sm:$0xff]
    %v2708 = vld [vmem:[#allocation9 + $0x320] sm:$0xff]
    %v2709 = vld [vmem:[#allocation9 + $0x328] sm:$0xff]
    %v2710 = vld [vmem:[#allocation9 + $0x330] sm:$0xff]
    %v2711 = vld [vmem:[#allocation9 + $0x338] sm:$0xff]
    %v2712 = vld [vmem:[#allocation9 + $0x340] sm:$0xff]
    %v2713 = vld [vmem:[#allocation9 + $0x348] sm:$0xff]
    %v2714 = vld [vmem:[#allocation9 + $0x350] sm:$0xff]
    %v2715 = vld [vmem:[#allocation9 + $0x358] sm:$0xff]
    %v2716 = vld [vmem:[#allocation9 + $0x360] sm:$0xff]
    %v2717 = vld [vmem:[#allocation9 + $0x368] sm:$0xff]
    %v2718 = vld [vmem:[#allocation9 + $0x370] sm:$0xff]
    %v2719 = vld [vmem:[#allocation9 + $0x378] sm:$0xff]
    %v2720 = vld [vmem:[#allocation9 + $0x380] sm:$0xff]
    %v2721 = vld [vmem:[#allocation9 + $0x388] sm:$0xff]
    %v2722 = vld [vmem:[#allocation9 + $0x390] sm:$0xff]
    %v2723 = vld [vmem:[#allocation9 + $0x398] sm:$0xff]
    %v2724 = vld [vmem:[#allocation9 + $0x3a0] sm:$0xff]
    %v2725 = vld [vmem:[#allocation9 + $0x3a8] sm:$0xff]
    %v2726 = vld [vmem:[#allocation9 + $0x3b0] sm:$0xff]
    %v2727 = vld [vmem:[#allocation9 + $0x3b8] sm:$0xff]
    %v2728 = vld [vmem:[#allocation9 + $0x3c0] sm:$0xff]
    %v2729 = vld [vmem:[#allocation9 + $0x3c8] sm:$0xff]
    %v2730 = vld [vmem:[#allocation9 + $0x3d0] sm:$0xff]
    %v2731 = vld [vmem:[#allocation9 + $0x3d8] sm:$0xff]
    %v2732 = vld [vmem:[#allocation9 + $0x3e0] sm:$0xff]
    %v2733 = vld [vmem:[#allocation9 + $0x3e8] sm:$0xff]
    %v2734 = vld [vmem:[#allocation9 + $0x3f0] sm:$0xff]
    %v2735 = vld [vmem:[#allocation9 + $0x3f8] sm:$0xff]
    %v2736 = vld [vmem:[#allocation10] sm:$0xf]
    %v2738 = vlaneseq
    %v2739 = vshrl.u32 %v2738, 7
    %v2740 = vsub.s32 0, %v2739
    %v2741 = vrot.slane %v2736, %v2740
    %v2742 = vlaneseq
    %v2743 = vshrl.u32 %v2742, 7
    %v2744 = vsub.s32 1, %v2743
    %v2745 = vrot.slane %v2736, %v2744
    %v2746 = vlaneseq
    %v2747 = vshrl.u32 %v2746, 7
    %v2748 = vsub.s32 2, %v2747
    %v2749 = vrot.slane %v2736, %v2748
    %v2750 = vlaneseq
    %v2751 = vshrl.u32 %v2750, 7
    %v2752 = vsub.s32 3, %v2751
    %v2753 = vrot.slane %v2736, %v2752
    %v2886 = vunpack.c.l.b16 %v2608
    %v2887 = vunpack.c.h.b16 %v2608
    %v2888 = vunpack.c.l.b16 %v2609
    %v2889 = vunpack.c.h.b16 %v2609
    %v2890 = vunpack.c.l.b16 %v2610
    %v2891 = vunpack.c.h.b16 %v2610
    %v2892 = vunpack.c.l.b16 %v2611
    %v2893 = vunpack.c.h.b16 %v2611
    %v2894 = vunpack.c.l.b16 %v2612
    %v2895 = vunpack.c.h.b16 %v2612
    %v2896 = vunpack.c.l.b16 %v2613
    %v2897 = vunpack.c.h.b16 %v2613
    %v2898 = vunpack.c.l.b16 %v2614
    %v2899 = vunpack.c.h.b16 %v2614
    %v2900 = vunpack.c.l.b16 %v2615
    %v2901 = vunpack.c.h.b16 %v2615
    %v2902 = vunpack.c.l.b16 %v2616
    %v2903 = vunpack.c.h.b16 %v2616
    %v2904 = vunpack.c.l.b16 %v2617
    %v2905 = vunpack.c.h.b16 %v2617
    %v2906 = vunpack.c.l.b16 %v2618
    %v2907 = vunpack.c.h.b16 %v2618
    %v2908 = vunpack.c.l.b16 %v2619
    %v2909 = vunpack.c.h.b16 %v2619
    %v2910 = vunpack.c.l.b16 %v2620
    %v2911 = vunpack.c.h.b16 %v2620
    %v2912 = vunpack.c.l.b16 %v2621
    %v2913 = vunpack.c.h.b16 %v2621
    %v2914 = vunpack.c.l.b16 %v2622
    %v2915 = vunpack.c.h.b16 %v2622
    %v2916 = vunpack.c.l.b16 %v2623
    %v2917 = vunpack.c.h.b16 %v2623
    %v2918 = vunpack.c.l.b16 %v2624
    %v2919 = vunpack.c.h.b16 %v2624
    %v2920 = vunpack.c.l.b16 %v2625
    %v2921 = vunpack.c.h.b16 %v2625
    %v2922 = vunpack.c.l.b16 %v2626
    %v2923 = vunpack.c.h.b16 %v2626
    %v2924 = vunpack.c.l.b16 %v2627
    %v2925 = vunpack.c.h.b16 %v2627
    %v2926 = vunpack.c.l.b16 %v2628
    %v2927 = vunpack.c.h.b16 %v2628
    %v2928 = vunpack.c.l.b16 %v2629
    %v2929 = vunpack.c.h.b16 %v2629
    %v2930 = vunpack.c.l.b16 %v2630
    %v2931 = vunpack.c.h.b16 %v2630
    %v2932 = vunpack.c.l.b16 %v2631
    %v2933 = vunpack.c.h.b16 %v2631
    %v2934 = vunpack.c.l.b16 %v2632
    %v2935 = vunpack.c.h.b16 %v2632
    %v2936 = vunpack.c.l.b16 %v2633
    %v2937 = vunpack.c.h.b16 %v2633
    %v2938 = vunpack.c.l.b16 %v2634
    %v2939 = vunpack.c.h.b16 %v2634
    %v2940 = vunpack.c.l.b16 %v2635
    %v2941 = vunpack.c.h.b16 %v2635
    %v2942 = vunpack.c.l.b16 %v2636
    %v2943 = vunpack.c.h.b16 %v2636
    %v2944 = vunpack.c.l.b16 %v2637
    %v2945 = vunpack.c.h.b16 %v2637
    %v2946 = vunpack.c.l.b16 %v2638
    %v2947 = vunpack.c.h.b16 %v2638
    %v2948 = vunpack.c.l.b16 %v2639
    %v2949 = vunpack.c.h.b16 %v2639
    %v2950 = vunpack.c.l.b16 %v2640
    %v2951 = vunpack.c.h.b16 %v2640
    %v2952 = vunpack.c.l.b16 %v2641
    %v2953 = vunpack.c.h.b16 %v2641
    %v2954 = vunpack.c.l.b16 %v2642
    %v2955 = vunpack.c.h.b16 %v2642
    %v2956 = vunpack.c.l.b16 %v2643
    %v2957 = vunpack.c.h.b16 %v2643
    %v2958 = vunpack.c.l.b16 %v2644
    %v2959 = vunpack.c.h.b16 %v2644
    %v2960 = vunpack.c.l.b16 %v2645
    %v2961 = vunpack.c.h.b16 %v2645
    %v2962 = vunpack.c.l.b16 %v2646
    %v2963 = vunpack.c.h.b16 %v2646
    %v2964 = vunpack.c.l.b16 %v2647
    %v2965 = vunpack.c.h.b16 %v2647
    %v2966 = vunpack.c.l.b16 %v2648
    %v2967 = vunpack.c.h.b16 %v2648
    %v2968 = vunpack.c.l.b16 %v2649
    %v2969 = vunpack.c.h.b16 %v2649
    %v2970 = vunpack.c.l.b16 %v2650
    %v2971 = vunpack.c.h.b16 %v2650
    %v2972 = vunpack.c.l.b16 %v2651
    %v2973 = vunpack.c.h.b16 %v2651
    %v2974 = vunpack.c.l.b16 %v2652
    %v2975 = vunpack.c.h.b16 %v2652
    %v2976 = vunpack.c.l.b16 %v2653
    %v2977 = vunpack.c.h.b16 %v2653
    %v2978 = vunpack.c.l.b16 %v2654
    %v2979 = vunpack.c.h.b16 %v2654
    %v2980 = vunpack.c.l.b16 %v2655
    %v2981 = vunpack.c.h.b16 %v2655
    %v2982 = vunpack.c.l.b16 %v2656
    %v2983 = vunpack.c.h.b16 %v2656
    %v2984 = vunpack.c.l.b16 %v2657
    %v2985 = vunpack.c.h.b16 %v2657
    %v2986 = vunpack.c.l.b16 %v2658
    %v2987 = vunpack.c.h.b16 %v2658
    %v2988 = vunpack.c.l.b16 %v2659
    %v2989 = vunpack.c.h.b16 %v2659
    %v2990 = vunpack.c.l.b16 %v2660
    %v2991 = vunpack.c.h.b16 %v2660
    %v2992 = vunpack.c.l.b16 %v2661
    %v2993 = vunpack.c.h.b16 %v2661
    %v2994 = vunpack.c.l.b16 %v2662
    %v2995 = vunpack.c.h.b16 %v2662
    %v2996 = vunpack.c.l.b16 %v2663
    %v2997 = vunpack.c.h.b16 %v2663
    %v2998 = vunpack.c.l.b16 %v2664
    %v2999 = vunpack.c.h.b16 %v2664
    %v3000 = vunpack.c.l.b16 %v2665
    %v3001 = vunpack.c.h.b16 %v2665
    %v3002 = vunpack.c.l.b16 %v2666
    %v3003 = vunpack.c.h.b16 %v2666
    %v3004 = vunpack.c.l.b16 %v2667
    %v3005 = vunpack.c.h.b16 %v2667
    %v3006 = vunpack.c.l.b16 %v2668
    %v3007 = vunpack.c.h.b16 %v2668
    %v3008 = vunpack.c.l.b16 %v2669
    %v3009 = vunpack.c.h.b16 %v2669
    %v3010 = vunpack.c.l.b16 %v2670
    %v3011 = vunpack.c.h.b16 %v2670
    %v3012 = vunpack.c.l.b16 %v2671
    %v3013 = vunpack.c.h.b16 %v2671
    %v3014 = vunpack.c.l.b16 %v2672
    %v3015 = vunpack.c.h.b16 %v2672
    %v3016 = vunpack.c.l.b16 %v2673
    %v3017 = vunpack.c.h.b16 %v2673
    %v3018 = vunpack.c.l.b16 %v2674
    %v3019 = vunpack.c.h.b16 %v2674
    %v3020 = vunpack.c.l.b16 %v2675
    %v3021 = vunpack.c.h.b16 %v2675
    %v3022 = vunpack.c.l.b16 %v2676
    %v3023 = vunpack.c.h.b16 %v2676
    %v3024 = vunpack.c.l.b16 %v2677
    %v3025 = vunpack.c.h.b16 %v2677
    %v3026 = vunpack.c.l.b16 %v2678
    %v3027 = vunpack.c.h.b16 %v2678
    %v3028 = vunpack.c.l.b16 %v2679
    %v3029 = vunpack.c.h.b16 %v2679
    %v3030 = vunpack.c.l.b16 %v2680
    %v3031 = vunpack.c.h.b16 %v2680
    %v3032 = vunpack.c.l.b16 %v2681
    %v3033 = vunpack.c.h.b16 %v2681
    %v3034 = vunpack.c.l.b16 %v2682
    %v3035 = vunpack.c.h.b16 %v2682
    %v3036 = vunpack.c.l.b16 %v2683
    %v3037 = vunpack.c.h.b16 %v2683
    %v3038 = vunpack.c.l.b16 %v2684
    %v3039 = vunpack.c.h.b16 %v2684
    %v3040 = vunpack.c.l.b16 %v2685
    %v3041 = vunpack.c.h.b16 %v2685
    %v3042 = vunpack.c.l.b16 %v2686
    %v3043 = vunpack.c.h.b16 %v2686
    %v3044 = vunpack.c.l.b16 %v2687
    %v3045 = vunpack.c.h.b16 %v2687
    %v3046 = vunpack.c.l.b16 %v2688
    %v3047 = vunpack.c.h.b16 %v2688
    %v3048 = vunpack.c.l.b16 %v2689
    %v3049 = vunpack.c.h.b16 %v2689
    %v3050 = vunpack.c.l.b16 %v2690
    %v3051 = vunpack.c.h.b16 %v2690
    %v3052 = vunpack.c.l.b16 %v2691
    %v3053 = vunpack.c.h.b16 %v2691
    %v3054 = vunpack.c.l.b16 %v2692
    %v3055 = vunpack.c.h.b16 %v2692
    %v3056 = vunpack.c.l.b16 %v2693
    %v3057 = vunpack.c.h.b16 %v2693
    %v3058 = vunpack.c.l.b16 %v2694
    %v3059 = vunpack.c.h.b16 %v2694
    %v3060 = vunpack.c.l.b16 %v2695
    %v3061 = vunpack.c.h.b16 %v2695
    %v3062 = vunpack.c.l.b16 %v2696
    %v3063 = vunpack.c.h.b16 %v2696
    %v3064 = vunpack.c.l.b16 %v2697
    %v3065 = vunpack.c.h.b16 %v2697
    %v3066 = vunpack.c.l.b16 %v2698
    %v3067 = vunpack.c.h.b16 %v2698
    %v3068 = vunpack.c.l.b16 %v2699
    %v3069 = vunpack.c.h.b16 %v2699
    %v3070 = vunpack.c.l.b16 %v2700
    %v3071 = vunpack.c.h.b16 %v2700
    %v3072 = vunpack.c.l.b16 %v2701
    %v3073 = vunpack.c.h.b16 %v2701
    %v3074 = vunpack.c.l.b16 %v2702
    %v3075 = vunpack.c.h.b16 %v2702
    %v3076 = vunpack.c.l.b16 %v2703
    %v3077 = vunpack.c.h.b16 %v2703
    %v3078 = vunpack.c.l.b16 %v2704
    %v3079 = vunpack.c.h.b16 %v2704
    %v3080 = vunpack.c.l.b16 %v2705
    %v3081 = vunpack.c.h.b16 %v2705
    %v3082 = vunpack.c.l.b16 %v2706
    %v3083 = vunpack.c.h.b16 %v2706
    %v3084 = vunpack.c.l.b16 %v2707
    %v3085 = vunpack.c.h.b16 %v2707
    %v3086 = vunpack.c.l.b16 %v2708
    %v3087 = vunpack.c.h.b16 %v2708
    %v3088 = vunpack.c.l.b16 %v2709
    %v3089 = vunpack.c.h.b16 %v2709
    %v3090 = vunpack.c.l.b16 %v2710
    %v3091 = vunpack.c.h.b16 %v2710
    %v3092 = vunpack.c.l.b16 %v2711
    %v3093 = vunpack.c.h.b16 %v2711
    %v3094 = vunpack.c.l.b16 %v2712
    %v3095 = vunpack.c.h.b16 %v2712
    %v3096 = vunpack.c.l.b16 %v2713
    %v3097 = vunpack.c.h.b16 %v2713
    %v3098 = vunpack.c.l.b16 %v2714
    %v3099 = vunpack.c.h.b16 %v2714
    %v3100 = vunpack.c.l.b16 %v2715
    %v3101 = vunpack.c.h.b16 %v2715
    %v3102 = vunpack.c.l.b16 %v2716
    %v3103 = vunpack.c.h.b16 %v2716
    %v3104 = vunpack.c.l.b16 %v2717
    %v3105 = vunpack.c.h.b16 %v2717
    %v3106 = vunpack.c.l.b16 %v2718
    %v3107 = vunpack.c.h.b16 %v2718
    %v3108 = vunpack.c.l.b16 %v2719
    %v3109 = vunpack.c.h.b16 %v2719
    %v3110 = vunpack.c.l.b16 %v2720
    %v3111 = vunpack.c.h.b16 %v2720
    %v3112 = vunpack.c.l.b16 %v2721
    %v3113 = vunpack.c.h.b16 %v2721
    %v3114 = vunpack.c.l.b16 %v2722
    %v3115 = vunpack.c.h.b16 %v2722
    %v3116 = vunpack.c.l.b16 %v2723
    %v3117 = vunpack.c.h.b16 %v2723
    %v3118 = vunpack.c.l.b16 %v2724
    %v3119 = vunpack.c.h.b16 %v2724
    %v3120 = vunpack.c.l.b16 %v2725
    %v3121 = vunpack.c.h.b16 %v2725
    %v3122 = vunpack.c.l.b16 %v2726
    %v3123 = vunpack.c.h.b16 %v2726
    %v3124 = vunpack.c.l.b16 %v2727
    %v3125 = vunpack.c.h.b16 %v2727
    %v3126 = vunpack.c.l.b16 %v2728
    %v3127 = vunpack.c.h.b16 %v2728
    %v3128 = vunpack.c.l.b16 %v2729
    %v3129 = vunpack.c.h.b16 %v2729
    %v3130 = vunpack.c.l.b16 %v2730
    %v3131 = vunpack.c.h.b16 %v2730
    %v3132 = vunpack.c.l.b16 %v2731
    %v3133 = vunpack.c.h.b16 %v2731
    %v3134 = vunpack.c.l.b16 %v2732
    %v3135 = vunpack.c.h.b16 %v2732
    %v3136 = vunpack.c.l.b16 %v2733
    %v3137 = vunpack.c.h.b16 %v2733
    %v3138 = vunpack.c.l.b16 %v2734
    %v3139 = vunpack.c.h.b16 %v2734
    %v3140 = vunpack.c.l.b16 %v2735
    %v3141 = vunpack.c.h.b16 %v2735
    %v3142 = vpack.c.b16 %v2890, %v2886
    %v3143 = vpack.c.b16 %v2891, %v2887
    %v3144 = vpack.c.b16 %v2892, %v2888
    %v3145 = vpack.c.b16 %v2893, %v2889
    %v3146 = vpack.c.b16 %v2898, %v2894
    %v3147 = vpack.c.b16 %v2899, %v2895
    %v3148 = vpack.c.b16 %v2900, %v2896
    %v3149 = vpack.c.b16 %v2901, %v2897
    %v3150 = vpack.c.b16 %v2906, %v2902
    %v3151 = vpack.c.b16 %v2907, %v2903
    %v3152 = vpack.c.b16 %v2908, %v2904
    %v3153 = vpack.c.b16 %v2909, %v2905
    %v3154 = vpack.c.b16 %v2914, %v2910
    %v3155 = vpack.c.b16 %v2915, %v2911
    %v3156 = vpack.c.b16 %v2916, %v2912
    %v3157 = vpack.c.b16 %v2917, %v2913
    %v3158 = vpack.c.b16 %v2922, %v2918
    %v3159 = vpack.c.b16 %v2923, %v2919
    %v3160 = vpack.c.b16 %v2924, %v2920
    %v3161 = vpack.c.b16 %v2925, %v2921
    %v3162 = vpack.c.b16 %v2930, %v2926
    %v3163 = vpack.c.b16 %v2931, %v2927
    %v3164 = vpack.c.b16 %v2932, %v2928
    %v3165 = vpack.c.b16 %v2933, %v2929
    %v3166 = vpack.c.b16 %v2938, %v2934
    %v3167 = vpack.c.b16 %v2939, %v2935
    %v3168 = vpack.c.b16 %v2940, %v2936
    %v3169 = vpack.c.b16 %v2941, %v2937
    %v3170 = vpack.c.b16 %v2946, %v2942
    %v3171 = vpack.c.b16 %v2947, %v2943
    %v3172 = vpack.c.b16 %v2948, %v2944
    %v3173 = vpack.c.b16 %v2949, %v2945
    %v3174 = vpack.c.b16 %v2954, %v2950
    %v3175 = vpack.c.b16 %v2955, %v2951
    %v3176 = vpack.c.b16 %v2956, %v2952
    %v3177 = vpack.c.b16 %v2957, %v2953
    %v3178 = vpack.c.b16 %v2962, %v2958
    %v3179 = vpack.c.b16 %v2963, %v2959
    %v3180 = vpack.c.b16 %v2964, %v2960
    %v3181 = vpack.c.b16 %v2965, %v2961
    %v3182 = vpack.c.b16 %v2970, %v2966
    %v3183 = vpack.c.b16 %v2971, %v2967
    %v3184 = vpack.c.b16 %v2972, %v2968
    %v3185 = vpack.c.b16 %v2973, %v2969
    %v3186 = vpack.c.b16 %v2978, %v2974
    %v3187 = vpack.c.b16 %v2979, %v2975
    %v3188 = vpack.c.b16 %v2980, %v2976
    %v3189 = vpack.c.b16 %v2981, %v2977
    %v3190 = vpack.c.b16 %v2986, %v2982
    %v3191 = vpack.c.b16 %v2987, %v2983
    %v3192 = vpack.c.b16 %v2988, %v2984
    %v3193 = vpack.c.b16 %v2989, %v2985
    %v3194 = vpack.c.b16 %v2994, %v2990
    %v3195 = vpack.c.b16 %v2995, %v2991
    %v3196 = vpack.c.b16 %v2996, %v2992
    %v3197 = vpack.c.b16 %v2997, %v2993
    %v3198 = vpack.c.b16 %v3002, %v2998
    %v3199 = vpack.c.b16 %v3003, %v2999
    %v3200 = vpack.c.b16 %v3004, %v3000
    %v3201 = vpack.c.b16 %v3005, %v3001
    %v3202 = vpack.c.b16 %v3010, %v3006
    %v3203 = vpack.c.b16 %v3011, %v3007
    %v3204 = vpack.c.b16 %v3012, %v3008
    %v3205 = vpack.c.b16 %v3013, %v3009
    %v3206 = vpack.c.b16 %v3018, %v3014
    %v3207 = vpack.c.b16 %v3019, %v3015
    %v3208 = vpack.c.b16 %v3020, %v3016
    %v3209 = vpack.c.b16 %v3021, %v3017
    %v3210 = vpack.c.b16 %v3026, %v3022
    %v3211 = vpack.c.b16 %v3027, %v3023
    %v3212 = vpack.c.b16 %v3028, %v3024
    %v3213 = vpack.c.b16 %v3029, %v3025
    %v3214 = vpack.c.b16 %v3034, %v3030
    %v3215 = vpack.c.b16 %v3035, %v3031
    %v3216 = vpack.c.b16 %v3036, %v3032
    %v3217 = vpack.c.b16 %v3037, %v3033
    %v3218 = vpack.c.b16 %v3042, %v3038
    %v3219 = vpack.c.b16 %v3043, %v3039
    %v3220 = vpack.c.b16 %v3044, %v3040
    %v3221 = vpack.c.b16 %v3045, %v3041
    %v3222 = vpack.c.b16 %v3050, %v3046
    %v3223 = vpack.c.b16 %v3051, %v3047
    %v3224 = vpack.c.b16 %v3052, %v3048
    %v3225 = vpack.c.b16 %v3053, %v3049
    %v3226 = vpack.c.b16 %v3058, %v3054
    %v3227 = vpack.c.b16 %v3059, %v3055
    %v3228 = vpack.c.b16 %v3060, %v3056
    %v3229 = vpack.c.b16 %v3061, %v3057
    %v3230 = vpack.c.b16 %v3066, %v3062
    %v3231 = vpack.c.b16 %v3067, %v3063
    %v3232 = vpack.c.b16 %v3068, %v3064
    %v3233 = vpack.c.b16 %v3069, %v3065
    %v3234 = vpack.c.b16 %v3074, %v3070
    %v3235 = vpack.c.b16 %v3075, %v3071
    %v3236 = vpack.c.b16 %v3076, %v3072
    %v3237 = vpack.c.b16 %v3077, %v3073
    %v3238 = vpack.c.b16 %v3082, %v3078
    %v3239 = vpack.c.b16 %v3083, %v3079
    %v3240 = vpack.c.b16 %v3084, %v3080
    %v3241 = vpack.c.b16 %v3085, %v3081
    %v3242 = vpack.c.b16 %v3090, %v3086
    %v3243 = vpack.c.b16 %v3091, %v3087
    %v3244 = vpack.c.b16 %v3092, %v3088
    %v3245 = vpack.c.b16 %v3093, %v3089
    %v3246 = vpack.c.b16 %v3098, %v3094
    %v3247 = vpack.c.b16 %v3099, %v3095
    %v3248 = vpack.c.b16 %v3100, %v3096
    %v3249 = vpack.c.b16 %v3101, %v3097
    %v3250 = vpack.c.b16 %v3106, %v3102
    %v3251 = vpack.c.b16 %v3107, %v3103
    %v3252 = vpack.c.b16 %v3108, %v3104
    %v3253 = vpack.c.b16 %v3109, %v3105
    %v3254 = vpack.c.b16 %v3114, %v3110
    %v3255 = vpack.c.b16 %v3115, %v3111
    %v3256 = vpack.c.b16 %v3116, %v3112
    %v3257 = vpack.c.b16 %v3117, %v3113
    %v3258 = vpack.c.b16 %v3122, %v3118
    %v3259 = vpack.c.b16 %v3123, %v3119
    %v3260 = vpack.c.b16 %v3124, %v3120
    %v3261 = vpack.c.b16 %v3125, %v3121
    %v3262 = vpack.c.b16 %v3130, %v3126
    %v3263 = vpack.c.b16 %v3131, %v3127
    %v3264 = vpack.c.b16 %v3132, %v3128
    %v3265 = vpack.c.b16 %v3133, %v3129
    %v3266 = vpack.c.b16 %v3138, %v3134
    %v3267 = vpack.c.b16 %v3139, %v3135
    %v3268 = vpack.c.b16 %v3140, %v3136
    %v3269 = vpack.c.b16 %v3141, %v3137
    %3398 = vmatprep.subr.bf16.mxu0 %v3171
    %3399 = vmatpush1.bf16.msra.mxu0 %v3170
    %3400 = vmatprep.subr.bf16.mxu0 %v3167
    %3401 = vmatpush1.bf16.msra.mxu0 %v3166
    %3402 = vmatprep.subr.bf16.mxu0 %v3163
    %3403 = vmatpush1.bf16.msra.mxu0 %v3162
    %3404 = vmatprep.subr.bf16.mxu0 %v3159
    %3405 = vmatpush1.bf16.msra.mxu0 %v3158
    %3406 = vmatprep.subr.bf16.mxu0 %v3155
    %3407 = vmatpush1.bf16.msra.mxu0 %v3154
    %3408 = vmatprep.subr.bf16.mxu0 %v3151
    %3409 = vmatpush1.bf16.msra.mxu0 %v3150
    %3410 = vmatprep.subr.bf16.mxu0 %v3147
    %3411 = vmatpush1.bf16.msra.mxu0 %v3146
    %3412 = vmatprep.subr.bf16.mxu0 %v3143
    %3413 = vmatpush1.bf16.msra.mxu0 %v3142
    %3414 = vmatprep.subr.bf16.mxu0 %v3203
    %3415 = vmatpush2.bf16.msra.mxu0 %v3202
    %3416 = vmatprep.subr.bf16.mxu0 %v3199
    %3417 = vmatpush2.bf16.msra.mxu0 %v3198
    %3418 = vmatprep.subr.bf16.mxu0 %v3195
    %3419 = vmatpush2.bf16.msra.mxu0 %v3194
    %3420 = vmatprep.subr.bf16.mxu0 %v3191
    %3421 = vmatpush2.bf16.msra.mxu0 %v3190
    %3422 = vmatprep.subr.bf16.mxu0 %v3187
    %3423 = vmatpush2.bf16.msra.mxu0 %v3186
    %3424 = vmatprep.subr.bf16.mxu0 %v3183
    %3425 = vmatpush2.bf16.msra.mxu0 %v3182
    %3426 = vmatprep.subr.bf16.mxu0 %v3179
    %3427 = vmatpush2.bf16.msra.mxu0 %v3178
    %3428 = vmatprep.subr.bf16.mxu0 %v3175
    %3429 = vmatpush2.bf16.msra.mxu0 %v3174
    %3430 = vmatprep.mubr.bf16.mxu0 %v2605
    %3431 = vmatmul.mubr.bf16.gmra.mxu0 %v2604
    %v3432 = vpop.f32.mrf.mxu0
    %v3433 = vadd.f32 %v2741, %v3432
    %v3434 = vpop.f32.mrf.mxu0
    %v3435 = vadd.f32 %v2745, %v3434
    %v3436 = vpop.f32.mrf.mxu0
    %v3437 = vpop.f32.mrf.mxu0
    %3438 = vdwg.mxu0
    %3439 = vmatprep.subr.bf16.mxu0 %v3235
    %3440 = vmatpush1.bf16.msra.mxu0 %v3234
    %3441 = vmatprep.subr.bf16.mxu0 %v3231
    %3442 = vmatpush1.bf16.msra.mxu0 %v3230
    %3443 = vmatprep.subr.bf16.mxu0 %v3227
    %3444 = vmatpush1.bf16.msra.mxu0 %v3226
    %3445 = vmatprep.subr.bf16.mxu0 %v3223
    %3446 = vmatpush1.bf16.msra.mxu0 %v3222
    %3447 = vmatprep.subr.bf16.mxu0 %v3219
    %3448 = vmatpush1.bf16.msra.mxu0 %v3218
    %3449 = vmatprep.subr.bf16.mxu0 %v3215
    %3450 = vmatpush1.bf16.msra.mxu0 %v3214
    %3451 = vmatprep.subr.bf16.mxu0 %v3211
    %3452 = vmatpush1.bf16.msra.mxu0 %v3210
    %3453 = vmatprep.subr.bf16.mxu0 %v3207
    %3454 = vmatpush1.bf16.msra.mxu0 %v3206
    %3455 = vmatprep.subr.bf16.mxu0 %v3267
    %3456 = vmatpush2.bf16.msra.mxu0 %v3266
    %3457 = vmatprep.subr.bf16.mxu0 %v3263
    %3458 = vmatpush2.bf16.msra.mxu0 %v3262
    %3459 = vmatprep.subr.bf16.mxu0 %v3259
    %3460 = vmatpush2.bf16.msra.mxu0 %v3258
    %3461 = vmatprep.subr.bf16.mxu0 %v3255
    %3462 = vmatpush2.bf16.msra.mxu0 %v3254
    %3463 = vmatprep.subr.bf16.mxu0 %v3251
    %3464 = vmatpush2.bf16.msra.mxu0 %v3250
    %3465 = vmatprep.subr.bf16.mxu0 %v3247
    %3466 = vmatpush2.bf16.msra.mxu0 %v3246
    %3467 = vmatprep.subr.bf16.mxu0 %v3243
    %3468 = vmatpush2.bf16.msra.mxu0 %v3242
    %3469 = vmatprep.subr.bf16.mxu0 %v3239
    %3470 = vmatpush2.bf16.msra.mxu0 %v3238
    %3471 = vmatprep.mubr.bf16.mxu0 %v2607
    %3472 = vmatmul.mubr.bf16.gmra.mxu0 %v2606
    %v3473 = vpop.f32.mrf.mxu0
    %v3474 = vadd.f32 %v3433, %v3473
    %v3475 = vpop.f32.mrf.mxu0
    %v3476 = vadd.f32 %v3435, %v3475
    %v3477 = vpop.f32.mrf.mxu0
    %v3478 = vpop.f32.mrf.mxu0
    %3479 = vdwg.mxu0
    %3480 = vmatprep.subr.bf16.mxu0 %v3173
    %3481 = vmatpush1.bf16.msra.mxu0 %v3172
    %3482 = vmatprep.subr.bf16.mxu0 %v3169
    %3483 = vmatpush1.bf16.msra.mxu0 %v3168
    %3484 = vmatprep.subr.bf16.mxu0 %v3165
    %3485 = vmatpush1.bf16.msra.mxu0 %v3164
    %3486 = vmatprep.subr.bf16.mxu0 %v3161
    %3487 = vmatpush1.bf16.msra.mxu0 %v3160
    %3488 = vmatprep.subr.bf16.mxu0 %v3157
    %3489 = vmatpush1.bf16.msra.mxu0 %v3156
    %3490 = vmatprep.subr.bf16.mxu0 %v3153
    %3491 = vmatpush1.bf16.msra.mxu0 %v3152
    %3492 = vmatprep.subr.bf16.mxu0 %v3149
    %3493 = vmatpush1.bf16.msra.mxu0 %v3148
    %3494 = vmatprep.subr.bf16.mxu0 %v3145
    %3495 = vmatpush1.bf16.msra.mxu0 %v3144
    %3496 = vmatprep.subr.bf16.mxu0 %v3205
    %3497 = vmatpush2.bf16.msra.mxu0 %v3204
    %3498 = vmatprep.subr.bf16.mxu0 %v3201
    %3499 = vmatpush2.bf16.msra.mxu0 %v3200
    %3500 = vmatprep.subr.bf16.mxu0 %v3197
    %3501 = vmatpush2.bf16.msra.mxu0 %v3196
    %3502 = vmatprep.subr.bf16.mxu0 %v3193
    %3503 = vmatpush2.bf16.msra.mxu0 %v3192
    %3504 = vmatprep.subr.bf16.mxu0 %v3189
    %3505 = vmatpush2.bf16.msra.mxu0 %v3188
    %3506 = vmatprep.subr.bf16.mxu0 %v3185
    %3507 = vmatpush2.bf16.msra.mxu0 %v3184
    %3508 = vmatprep.subr.bf16.mxu0 %v3181
    %3509 = vmatpush2.bf16.msra.mxu0 %v3180
    %3510 = vmatprep.subr.bf16.mxu0 %v3177
    %3511 = vmatpush2.bf16.msra.mxu0 %v3176
    %3512 = vmatprep.mubr.bf16.mxu0 %v2605
    %3513 = vmatmul.mubr.bf16.gmra.mxu0 %v2604
    %v3514 = vpop.f32.mrf.mxu0
    %v3515 = vadd.f32 %v2749, %v3514
    %v3516 = vpop.f32.mrf.mxu0
    %v3517 = vadd.f32 %v2753, %v3516
    %v3518 = vpop.f32.mrf.mxu0
    %v3519 = vpop.f32.mrf.mxu0
    %3520 = vdwg.mxu0
    %3521 = vmatprep.subr.bf16.mxu0 %v3237
    %3522 = vmatpush1.bf16.msra.mxu0 %v3236
    %3523 = vmatprep.subr.bf16.mxu0 %v3233
    %3524 = vmatpush1.bf16.msra.mxu0 %v3232
    %3525 = vmatprep.subr.bf16.mxu0 %v3229
    %3526 = vmatpush1.bf16.msra.mxu0 %v3228
    %3527 = vmatprep.subr.bf16.mxu0 %v3225
    %3528 = vmatpush1.bf16.msra.mxu0 %v3224
    %3529 = vmatprep.subr.bf16.mxu0 %v3221
    %3530 = vmatpush1.bf16.msra.mxu0 %v3220
    %3531 = vmatprep.subr.bf16.mxu0 %v3217
    %3532 = vmatpush1.bf16.msra.mxu0 %v3216
    %3533 = vmatprep.subr.bf16.mxu0 %v3213
    %3534 = vmatpush1.bf16.msra.mxu0 %v3212
    %3535 = vmatprep.subr.bf16.mxu0 %v3209
    %3536 = vmatpush1.bf16.msra.mxu0 %v3208
    %3537 = vmatprep.subr.bf16.mxu0 %v3269
    %3538 = vmatpush2.bf16.msra.mxu0 %v3268
    %3539 = vmatprep.subr.bf16.mxu0 %v3265
    %3540 = vmatpush2.bf16.msra.mxu0 %v3264
    %3541 = vmatprep.subr.bf16.mxu0 %v3261
    %3542 = vmatpush2.bf16.msra.mxu0 %v3260
    %3543 = vmatprep.subr.bf16.mxu0 %v3257
    %3544 = vmatpush2.bf16.msra.mxu0 %v3256
    %3545 = vmatprep.subr.bf16.mxu0 %v3253
    %3546 = vmatpush2.bf16.msra.mxu0 %v3252
    %3547 = vmatprep.subr.bf16.mxu0 %v3249
    %3548 = vmatpush2.bf16.msra.mxu0 %v3248
    %3549 = vmatprep.subr.bf16.mxu0 %v3245
    %3550 = vmatpush2.bf16.msra.mxu0 %v3244
    %3551 = vmatprep.subr.bf16.mxu0 %v3241
    %3552 = vmatpush2.bf16.msra.mxu0 %v3240
    %3553 = vmatprep.mubr.bf16.mxu0 %v2607
    %3554 = vmatmul.mubr.bf16.gmra.mxu0 %v2606
    %v3555 = vpop.f32.mrf.mxu0
    %v3556 = vadd.f32 %v3515, %v3555
    %v3557 = vpop.f32.mrf.mxu0
    %v3558 = vadd.f32 %v3517, %v3557
    %v3559 = vpop.f32.mrf.mxu0
    %v3560 = vpop.f32.mrf.mxu0
    %3561 = vdwg.mxu0
    %v3562 = vmax.f32 %v3474, 0.0
    %v3563 = vmax.f32 %v3476, 0.0
    %v3564 = vmax.f32 %v3556, 0.0
    %v3565 = vmax.f32 %v3558, 0.0
    %v3566 = vld [vmem:[#allocation4] sm:$0xff]
    %v3567 = vpack.c.bf16 %v3566, %v3566
    %v3568 = vpack.c.bf16 %v3562, %v3562
    %v3569 = vpack.c.bf16 %v3563, %v3563
    %v3570 = vpack.c.bf16 %v3564, %v3564
    %v3571 = vpack.c.bf16 %v3565, %v3565
    %v3572 = vld [vmem:[%s6] sm:$0xf]
    %v3573 = vld [vmem:[%s6 + $0x4] sm:$0xf]
    %v3574 = vld [vmem:[%s6 + $0x8] sm:$0xf]
    %v3575 = vld [vmem:[%s6 + $0xc] sm:$0xf]
    %v3576 = vld [vmem:[%s6 + $0x10] sm:$0xf]
    %v3577 = vld [vmem:[%s6 + $0x14] sm:$0xf]
    %v3578 = vld [vmem:[%s6 + $0x18] sm:$0xf]
    %v3579 = vld [vmem:[%s6 + $0x1c] sm:$0xf]
    %v3580 = vld [vmem:[%s6 + $0x20] sm:$0xf]
    %v3581 = vld [vmem:[%s6 + $0x24] sm:$0xf]
    %v3582 = vld [vmem:[%s6 + $0x28] sm:$0xf]
    %v3583 = vld [vmem:[%s6 + $0x2c] sm:$0xf]
    %v3584 = vld [vmem:[%s6 + $0x30] sm:$0xf]
    %v3585 = vld [vmem:[%s6 + $0x34] sm:$0xf]
    %v3586 = vld [vmem:[%s6 + $0x38] sm:$0xf]
    %v3587 = vld [vmem:[%s6 + $0x3c] sm:$0xf]
    %v3588 = vld [vmem:[%s6 + $0x40] sm:$0xf]
    %v3589 = vld [vmem:[%s6 + $0x44] sm:$0xf]
    %v3590 = vld [vmem:[%s6 + $0x48] sm:$0xf]
    %v3591 = vld [vmem:[%s6 + $0x4c] sm:$0xf]
    %v3592 = vld [vmem:[%s6 + $0x50] sm:$0xf]
    %v3593 = vld [vmem:[%s6 + $0x54] sm:$0xf]
    %v3594 = vld [vmem:[%s6 + $0x58] sm:$0xf]
    %v3595 = vld [vmem:[%s6 + $0x5c] sm:$0xf]
    %v3596 = vld [vmem:[%s6 + $0x60] sm:$0xf]
    %v3597 = vld [vmem:[%s6 + $0x64] sm:$0xf]
    %v3598 = vld [vmem:[%s6 + $0x68] sm:$0xf]
    %v3599 = vld [vmem:[%s6 + $0x6c] sm:$0xf]
    %v3600 = vld [vmem:[%s6 + $0x70] sm:$0xf]
    %v3601 = vld [vmem:[%s6 + $0x74] sm:$0xf]
    %v3602 = vld [vmem:[%s6 + $0x78] sm:$0xf]
    %v3603 = vld [vmem:[%s6 + $0x7c] sm:$0xf]
    %v3604 = vld [vmem:[%s6 + $0x80] sm:$0xf]
    %v3605 = vld [vmem:[%s6 + $0x84] sm:$0xf]
    %v3606 = vld [vmem:[%s6 + $0x88] sm:$0xf]
    %v3607 = vld [vmem:[%s6 + $0x8c] sm:$0xf]
    %v3608 = vld [vmem:[%s6 + $0x90] sm:$0xf]
    %v3609 = vld [vmem:[%s6 + $0x94] sm:$0xf]
    %v3610 = vld [vmem:[%s6 + $0x98] sm:$0xf]
    %v3611 = vld [vmem:[%s6 + $0x9c] sm:$0xf]
    %v3612 = vld [vmem:[%s6 + $0xa0] sm:$0xf]
    %v3613 = vld [vmem:[%s6 + $0xa4] sm:$0xf]
    %v3614 = vld [vmem:[%s6 + $0xa8] sm:$0xf]
    %v3615 = vld [vmem:[%s6 + $0xac] sm:$0xf]
    %v3616 = vld [vmem:[%s6 + $0xb0] sm:$0xf]
    %v3617 = vld [vmem:[%s6 + $0xb4] sm:$0xf]
    %v3618 = vld [vmem:[%s6 + $0xb8] sm:$0xf]
    %v3619 = vld [vmem:[%s6 + $0xbc] sm:$0xf]
    %v3620 = vld [vmem:[%s6 + $0xc0] sm:$0xf]
    %v3621 = vld [vmem:[%s6 + $0xc4] sm:$0xf]
    %v3622 = vld [vmem:[%s6 + $0xc8] sm:$0xf]
    %v3623 = vld [vmem:[%s6 + $0xcc] sm:$0xf]
    %v3624 = vld [vmem:[%s6 + $0xd0] sm:$0xf]
    %v3625 = vld [vmem:[%s6 + $0xd4] sm:$0xf]
    %v3626 = vld [vmem:[%s6 + $0xd8] sm:$0xf]
    %v3627 = vld [vmem:[%s6 + $0xdc] sm:$0xf]
    %v3628 = vld [vmem:[%s6 + $0xe0] sm:$0xf]
    %v3629 = vld [vmem:[%s6 + $0xe4] sm:$0xf]
    %v3630 = vld [vmem:[%s6 + $0xe8] sm:$0xf]
    %v3631 = vld [vmem:[%s6 + $0xec] sm:$0xf]
    %v3632 = vld [vmem:[%s6 + $0xf0] sm:$0xf]
    %v3633 = vld [vmem:[%s6 + $0xf4] sm:$0xf]
    %v3634 = vld [vmem:[%s6 + $0xf8] sm:$0xf]
    %v3635 = vld [vmem:[%s6 + $0xfc] sm:$0xf]
    %v3636 = vld [vmem:[%s7] sm:$0xf]
    %v3637 = vld [vmem:[%s7 + $0x4] sm:$0xf]
    %v3638 = vld [vmem:[%s7 + $0x8] sm:$0xf]
    %v3639 = vld [vmem:[%s7 + $0xc] sm:$0xf]
    %v3640 = vld [vmem:[%s7 + $0x10] sm:$0xf]
    %v3641 = vld [vmem:[%s7 + $0x14] sm:$0xf]
    %v3642 = vld [vmem:[%s7 + $0x18] sm:$0xf]
    %v3643 = vld [vmem:[%s7 + $0x1c] sm:$0xf]
    %v3644 = vld [vmem:[%s7 + $0x20] sm:$0xf]
    %v3645 = vld [vmem:[%s7 + $0x24] sm:$0xf]
    %v3646 = vld [vmem:[%s7 + $0x28] sm:$0xf]
    %v3647 = vld [vmem:[%s7 + $0x2c] sm:$0xf]
    %v3648 = vld [vmem:[%s7 + $0x30] sm:$0xf]
    %v3649 = vld [vmem:[%s7 + $0x34] sm:$0x7]
    %v3664 = vunpack.c.l.b16 %v3636
    %v3665 = vunpack.c.l.b16 %v3637
    %v3666 = vunpack.c.l.b16 %v3638
    %v3667 = vunpack.c.l.b16 %v3639
    %v3668 = vunpack.c.l.b16 %v3640
    %v3669 = vunpack.c.l.b16 %v3641
    %v3670 = vunpack.c.l.b16 %v3642
    %v3671 = vunpack.c.l.b16 %v3643
    %v3672 = vunpack.c.l.b16 %v3644
    %v3673 = vunpack.c.l.b16 %v3645
    %v3674 = vunpack.c.l.b16 %v3646
    %v3675 = vunpack.c.l.b16 %v3647
    %v3676 = vunpack.c.l.b16 %v3648
    %v3677 = vunpack.c.l.b16 %v3649
    %v3678 = vpack.c.b16 %v3665, %v3664
    %v3679 = vpack.c.b16 %v3667, %v3666
    %v3680 = vpack.c.b16 %v3669, %v3668
    %v3681 = vpack.c.b16 %v3671, %v3670
    %v3682 = vpack.c.b16 %v3673, %v3672
    %v3683 = vpack.c.b16 %v3675, %v3674
    %v3684 = vpack.c.b16 %v3677, %v3676
    %vm3691 = vcmask 900096
    %v3693 = vsel %vm3691, %v3567, 0
    %vm3695 = vcmask 1046528
    %v3697 = vsel %vm3695, %v3684, 0
    %3699 = vmatprep.subr.bf16.mxu0 0
    %3700 = vmatpush1.bf16.msra.mxu0 0
    %3701 = vmatprep.subr.bf16.mxu0 0
    %3702 = vmatpush1.bf16.msra.mxu0 %v3697
    %3703 = vmatprep.subr.bf16.mxu0 0
    %3704 = vmatpush1.bf16.msra.mxu0 %v3683
    %3705 = vmatprep.subr.bf16.mxu0 0
    %3706 = vmatpush1.bf16.msra.mxu0 %v3682
    %3707 = vmatprep.subr.bf16.mxu0 0
    %3708 = vmatpush1.bf16.msra.mxu0 %v3681
    %3709 = vmatprep.subr.bf16.mxu0 0
    %3710 = vmatpush1.bf16.msra.mxu0 %v3680
    %3711 = vmatprep.subr.bf16.mxu0 0
    %3712 = vmatpush1.bf16.msra.mxu0 %v3679
    %3713 = vmatprep.subr.bf16.mxu0 0
    %3714 = vmatpush1.bf16.msra.mxu0 %v3678
    %3715 = vmatprep.subr.bf16.mxu0 0
    %3716 = vmatpush2.bf16.msra.mxu0 0
    %3717 = vmatprep.subr.bf16.mxu0 0
    %3718 = vmatpush2.bf16.msra.mxu0 0
    %3719 = vmatprep.subr.bf16.mxu0 0
    %3720 = vmatpush2.bf16.msra.mxu0 0
    %3721 = vmatprep.subr.bf16.mxu0 0
    %3722 = vmatpush2.bf16.msra.mxu0 0
    %3723 = vmatprep.subr.bf16.mxu0 0
    %3724 = vmatpush2.bf16.msra.mxu0 0
    %3725 = vmatprep.subr.bf16.mxu0 0
    %3726 = vmatpush2.bf16.msra.mxu0 0
    %3727 = vmatprep.subr.bf16.mxu0 0
    %3728 = vmatpush2.bf16.msra.mxu0 0
    %3729 = vmatprep.subr.bf16.mxu0 0
    %3730 = vmatpush2.bf16.msra.mxu0 0
    %3731 = vmatprep.mubr.bf16.mxu0 0
    %3732 = vmatmul.mubr.bf16.gmra.mxu0 %v3693
    %v3733 = vpop.f32.mrf.mxu0
    %v3734 = vadd.f32 0.0, %v3733
    %v3735 = vpop.f32.mrf.mxu0
    %v3736 = vpop.f32.mrf.mxu0
    %v3737 = vpop.f32.mrf.mxu0
    %3738 = vdwg.mxu0
    %v3803 = vunpack.c.l.b16 %v3572
    %v3804 = vunpack.c.l.b16 %v3573
    %v3805 = vunpack.c.l.b16 %v3574
    %v3806 = vunpack.c.l.b16 %v3575
    %v3807 = vunpack.c.l.b16 %v3576
    %v3808 = vunpack.c.l.b16 %v3577
    %v3809 = vunpack.c.l.b16 %v3578
    %v3810 = vunpack.c.l.b16 %v3579
    %v3811 = vunpack.c.l.b16 %v3580
    %v3812 = vunpack.c.l.b16 %v3581
    %v3813 = vunpack.c.l.b16 %v3582
    %v3814 = vunpack.c.l.b16 %v3583
    %v3815 = vunpack.c.l.b16 %v3584
    %v3816 = vunpack.c.l.b16 %v3585
    %v3817 = vunpack.c.l.b16 %v3586
    %v3818 = vunpack.c.l.b16 %v3587
    %v3819 = vunpack.c.l.b16 %v3588
    %v3820 = vunpack.c.l.b16 %v3589
    %v3821 = vunpack.c.l.b16 %v3590
    %v3822 = vunpack.c.l.b16 %v3591
    %v3823 = vunpack.c.l.b16 %v3592
    %v3824 = vunpack.c.l.b16 %v3593
    %v3825 = vunpack.c.l.b16 %v3594
    %v3826 = vunpack.c.l.b16 %v3595
    %v3827 = vunpack.c.l.b16 %v3596
    %v3828 = vunpack.c.l.b16 %v3597
    %v3829 = vunpack.c.l.b16 %v3598
    %v3830 = vunpack.c.l.b16 %v3599
    %v3831 = vunpack.c.l.b16 %v3600
    %v3832 = vunpack.c.l.b16 %v3601
    %v3833 = vunpack.c.l.b16 %v3602
    %v3834 = vunpack.c.l.b16 %v3603
    %v3835 = vunpack.c.l.b16 %v3604
    %v3836 = vunpack.c.l.b16 %v3605
    %v3837 = vunpack.c.l.b16 %v3606
    %v3838 = vunpack.c.l.b16 %v3607
    %v3839 = vunpack.c.l.b16 %v3608
    %v3840 = vunpack.c.l.b16 %v3609
    %v3841 = vunpack.c.l.b16 %v3610
    %v3842 = vunpack.c.l.b16 %v3611
    %v3843 = vunpack.c.l.b16 %v3612
    %v3844 = vunpack.c.l.b16 %v3613
    %v3845 = vunpack.c.l.b16 %v3614
    %v3846 = vunpack.c.l.b16 %v3615
    %v3847 = vunpack.c.l.b16 %v3616
    %v3848 = vunpack.c.l.b16 %v3617
    %v3849 = vunpack.c.l.b16 %v3618
    %v3850 = vunpack.c.l.b16 %v3619
    %v3851 = vunpack.c.l.b16 %v3620
    %v3852 = vunpack.c.l.b16 %v3621
    %v3853 = vunpack.c.l.b16 %v3622
    %v3854 = vunpack.c.l.b16 %v3623
    %v3855 = vunpack.c.l.b16 %v3624
    %v3856 = vunpack.c.l.b16 %v3625
    %v3857 = vunpack.c.l.b16 %v3626
    %v3858 = vunpack.c.l.b16 %v3627
    %v3859 = vunpack.c.l.b16 %v3628
    %v3860 = vunpack.c.l.b16 %v3629
    %v3861 = vunpack.c.l.b16 %v3630
    %v3862 = vunpack.c.l.b16 %v3631
    %v3863 = vunpack.c.l.b16 %v3632
    %v3864 = vunpack.c.l.b16 %v3633
    %v3865 = vunpack.c.l.b16 %v3634
    %v3866 = vunpack.c.l.b16 %v3635
    %v3867 = vpack.c.b16 %v3804, %v3803
    %v3868 = vpack.c.b16 %v3806, %v3805
    %v3869 = vpack.c.b16 %v3808, %v3807
    %v3870 = vpack.c.b16 %v3810, %v3809
    %v3871 = vpack.c.b16 %v3812, %v3811
    %v3872 = vpack.c.b16 %v3814, %v3813
    %v3873 = vpack.c.b16 %v3816, %v3815
    %v3874 = vpack.c.b16 %v3818, %v3817
    %v3875 = vpack.c.b16 %v3820, %v3819
    %v3876 = vpack.c.b16 %v3822, %v3821
    %v3877 = vpack.c.b16 %v3824, %v3823
    %v3878 = vpack.c.b16 %v3826, %v3825
    %v3879 = vpack.c.b16 %v3828, %v3827
    %v3880 = vpack.c.b16 %v3830, %v3829
    %v3881 = vpack.c.b16 %v3832, %v3831
    %v3882 = vpack.c.b16 %v3834, %v3833
    %v3883 = vpack.c.b16 %v3836, %v3835
    %v3884 = vpack.c.b16 %v3838, %v3837
    %v3885 = vpack.c.b16 %v3840, %v3839
    %v3886 = vpack.c.b16 %v3842, %v3841
    %v3887 = vpack.c.b16 %v3844, %v3843
    %v3888 = vpack.c.b16 %v3846, %v3845
    %v3889 = vpack.c.b16 %v3848, %v3847
    %v3890 = vpack.c.b16 %v3850, %v3849
    %v3891 = vpack.c.b16 %v3852, %v3851
    %v3892 = vpack.c.b16 %v3854, %v3853
    %v3893 = vpack.c.b16 %v3856, %v3855
    %v3894 = vpack.c.b16 %v3858, %v3857
    %v3895 = vpack.c.b16 %v3860, %v3859
    %v3896 = vpack.c.b16 %v3862, %v3861
    %v3897 = vpack.c.b16 %v3864, %v3863
    %v3898 = vpack.c.b16 %v3866, %v3865
    %3931 = vmatprep.subr.bf16.mxu0 0
    %3932 = vmatpush1.bf16.msra.mxu0 %v3874
    %3933 = vmatprep.subr.bf16.mxu0 0
    %3934 = vmatpush1.bf16.msra.mxu0 %v3873
    %3935 = vmatprep.subr.bf16.mxu0 0
    %3936 = vmatpush1.bf16.msra.mxu0 %v3872
    %3937 = vmatprep.subr.bf16.mxu0 0
    %3938 = vmatpush1.bf16.msra.mxu0 %v3871
    %3939 = vmatprep.subr.bf16.mxu0 0
    %3940 = vmatpush1.bf16.msra.mxu0 %v3870
    %3941 = vmatprep.subr.bf16.mxu0 0
    %3942 = vmatpush1.bf16.msra.mxu0 %v3869
    %3943 = vmatprep.subr.bf16.mxu0 0
    %3944 = vmatpush1.bf16.msra.mxu0 %v3868
    %3945 = vmatprep.subr.bf16.mxu0 0
    %3946 = vmatpush1.bf16.msra.mxu0 %v3867
    %3947 = vmatprep.subr.bf16.mxu0 0
    %3948 = vmatpush2.bf16.msra.mxu0 %v3882
    %3949 = vmatprep.subr.bf16.mxu0 0
    %3950 = vmatpush2.bf16.msra.mxu0 %v3881
    %3951 = vmatprep.subr.bf16.mxu0 0
    %3952 = vmatpush2.bf16.msra.mxu0 %v3880
    %3953 = vmatprep.subr.bf16.mxu0 0
    %3954 = vmatpush2.bf16.msra.mxu0 %v3879
    %3955 = vmatprep.subr.bf16.mxu0 0
    %3956 = vmatpush2.bf16.msra.mxu0 %v3878
    %3957 = vmatprep.subr.bf16.mxu0 0
    %3958 = vmatpush2.bf16.msra.mxu0 %v3877
    %3959 = vmatprep.subr.bf16.mxu0 0
    %3960 = vmatpush2.bf16.msra.mxu0 %v3876
    %3961 = vmatprep.subr.bf16.mxu0 0
    %3962 = vmatpush2.bf16.msra.mxu0 %v3875
    %3963 = vmatprep.mubr.bf16.mxu0 %v3569
    %3964 = vmatmul.mubr.bf16.gmra.mxu0 %v3568
    %v3965 = vpop.f32.mrf.mxu0
    %v3966 = vadd.f32 %v3734, %v3965
    %v3967 = vpop.f32.mrf.mxu0
    %v3968 = vpop.f32.mrf.mxu0
    %v3969 = vpop.f32.mrf.mxu0
    %3970 = vdwg.mxu0
    %3971 = vmatprep.subr.bf16.mxu0 0
    %3972 = vmatpush1.bf16.msra.mxu0 %v3890
    %3973 = vmatprep.subr.bf16.mxu0 0
    %3974 = vmatpush1.bf16.msra.mxu0 %v3889
    %3975 = vmatprep.subr.bf16.mxu0 0
    %3976 = vmatpush1.bf16.msra.mxu0 %v3888
    %3977 = vmatprep.subr.bf16.mxu0 0
    %3978 = vmatpush1.bf16.msra.mxu0 %v3887
    %3979 = vmatprep.subr.bf16.mxu0 0
    %3980 = vmatpush1.bf16.msra.mxu0 %v3886
    %3981 = vmatprep.subr.bf16.mxu0 0
    %3982 = vmatpush1.bf16.msra.mxu0 %v3885
    %3983 = vmatprep.subr.bf16.mxu0 0
    %3984 = vmatpush1.bf16.msra.mxu0 %v3884
    %3985 = vmatprep.subr.bf16.mxu0 0
    %3986 = vmatpush1.bf16.msra.mxu0 %v3883
    %3987 = vmatprep.subr.bf16.mxu0 0
    %3988 = vmatpush2.bf16.msra.mxu0 %v3898
    %3989 = vmatprep.subr.bf16.mxu0 0
    %3990 = vmatpush2.bf16.msra.mxu0 %v3897
    %3991 = vmatprep.subr.bf16.mxu0 0
    %3992 = vmatpush2.bf16.msra.mxu0 %v3896
    %3993 = vmatprep.subr.bf16.mxu0 0
    %3994 = vmatpush2.bf16.msra.mxu0 %v3895
    %3995 = vmatprep.subr.bf16.mxu0 0
    %3996 = vmatpush2.bf16.msra.mxu0 %v3894
    %3997 = vmatprep.subr.bf16.mxu0 0
    %3998 = vmatpush2.bf16.msra.mxu0 %v3893
    %3999 = vmatprep.subr.bf16.mxu0 0
    %4000 = vmatpush2.bf16.msra.mxu0 %v3892
    %4001 = vmatprep.subr.bf16.mxu0 0
    %4002 = vmatpush2.bf16.msra.mxu0 %v3891
    %4003 = vmatprep.mubr.bf16.mxu0 %v3571
    %4004 = vmatmul.mubr.bf16.gmra.mxu0 %v3570
    %v4005 = vpop.f32.mrf.mxu0
    %v4006 = vadd.f32 %v3966, %v4005
    %v4007 = vpop.f32.mrf.mxu0
    %v4008 = vpop.f32.mrf.mxu0
    %v4009 = vpop.f32.mrf.mxu0
    %4010 = vdwg.mxu0
    %v4011 = vld [vmem:[#allocation12] sm:$0x1]
    %v4013 = vlaneseq
    %v4014 = vshrl.u32 %v4013, 7
    %v4015 = vsub.s32 0, %v4014
    %v4016 = vrot.slane %v4011, %v4015
    %v4018 = vadd.f32 %v4006, %v4016
    %v4019 = vlaneseq
    %v4020 = vand.u32 %v4019, 127
    %vm4021 = vcmp.lt.s32.totalorder %v4020, 11
    %v4022 = vsel %vm4021, %v4018, -inf
    %vm4023 = vcmask 105472
    %v4024 = vsel %vm4023, %v4022, -inf
    %4025 = vmax.xlane.f32.xlu0 %v4024
    %v4026 = vpop.xlane.xlu0 %4025
    %v4027 = vsel %vm4021, -inf, %v4018
    %v4028 = vsel %vm4023, %v4027, -inf
    %4029 = vmax.xlane.f32.xlu0 %v4028
    %v4030 = vpop.xlane.xlu0 %4029
    %v4031 = vsel %vm4021, %v4026, %v4030
    %v4032 = vsub.f32 %v4018, %v4031
    %v4033 = vmul.f32 %v4032, 1.442695
    %v4034 = vpow.pop %v4033
    %v4035 = vsel %vm4021, %v4034, 0.0
    %v4036 = vsel %vm4023, %v4035, 0.0
    %4037 = vadd.xlane.f32.xlu0 %v4036
    %v4038 = vpop.xlane.xlu0 %4037
    %v4039 = vsel %vm4021, 0.0, %v4034
    %v4040 = vsel %vm4023, %v4039, 0.0
    %4041 = vadd.xlane.f32.xlu0 %v4040
    %v4042 = vpop.xlane.xlu0 %4041
    %v4043 = vsel %vm4021, %v4038, %v4042
    %v4044 = vrcp.pop %v4043
    %v4045 = vmul.f32 %v4034, %v4044
    %4046 = vst.msk [vmem:[#allocation13] sm:$0xff] %vm4023, %v4045
    // Predicated region
    $region66: #{adnet_enhanced_forward.1} parent=1 // pred_check
      _
    $region67: #{adnet_enhanced_forward.1} parent=1 // pred_check_branch
      %4048 = sbr.rel (0) target = $region69
    $region68: #{adnet_enhanced_forward.1} parent=1 // pred_region
      // Predicated region
      $region70: #{adnet_enhanced_forward.1} parent=68 // pred_check
        _
      $region71: #{adnet_enhanced_forward.1} parent=68 // pred_check_branch
        %4050 = sbr.rel (0) target = $region73
      $region72: #{adnet_enhanced_forward.1} parent=68 // pred_region
        // Predicated region
        $region74: #{adnet_enhanced_forward.1} parent=72 // pred_check
          _
        $region75: #{adnet_enhanced_forward.1} parent=72 // pred_check_branch
          %4052 = sbr.rel target = $region77
        $region76: #{adnet_enhanced_forward.1} parent=72 // pred_region
          // Predicated region
          $region89: #{adnet_enhanced_forward.1} parent=76 // pred_check
            _
          $region90: #{adnet_enhanced_forward.1} parent=76 // pred_check_branch
            %4068 = sbr.rel (0) target = $region92
          $region91: #{adnet_enhanced_forward.1} parent=76 // pred_region
            %s4070 = ssub.s32 4, 1
            loop: start=0, step=1, limit=1
            $region93: #{adnet_enhanced_forward.1} parent=91 // loop_pre_header
              _
            $region94: #{adnet_enhanced_forward.1} parent=91 // loop_header
              %s4072 = sphi 0, %s4076
              %p4073 = scmp.ge.s32.totalorder %s4072, 1
              %s4077 = sphi [#allocation13], [#allocation13]
              %s4078 = sphi %s9, %s9
            $region95: #{adnet_enhanced_forward.1} parent=91 // loop_header_branch
              %4075 = sbr.rel (%p4073) target = $region99
            $region96: #{adnet_enhanced_forward.1} parent=91 // loop_body
              %v4079 = vld [vmem:[%s4077] sm:%s4070]
              %4080 = vst [vmem:[%s4078] sm:%s4070] %v4079
            $region97: #{adnet_enhanced_forward.1} parent=91 // loop_footer
              %s4076 = sadd.s32 1, %s4072
            $region98: #{adnet_enhanced_forward.1} parent=91 // loop_footer_branch
              %4071 = sbr.rel target = $region94
            $region99: #{adnet_enhanced_forward.1} parent=91 // loop_exit
              _
          $region92: #{adnet_enhanced_forward.1} parent=76 // pred_fallthru
            _
        $region77: #{adnet_enhanced_forward.1} parent=72 // pred_fallthru
          _
        // Predicated region
        $region78: #{adnet_enhanced_forward.1} parent=72 // pred_check
          _
        $region79: #{adnet_enhanced_forward.1} parent=72 // pred_check_branch
          %4054 = sbr.rel (0) target = $region81
        $region80: #{adnet_enhanced_forward.1} parent=72 // pred_region
          %s4056 = ssub.s32 4, 1
          loop: start=0, step=1, limit=1
          $region82: #{adnet_enhanced_forward.1} parent=80 // loop_pre_header
            _
          $region83: #{adnet_enhanced_forward.1} parent=80 // loop_header
            %s4058 = sphi 0, %s4062
            %p4059 = scmp.ge.s32.totalorder %s4058, 1
            %s4063 = sphi [#allocation13], [#allocation13]
            %s4064 = sphi %s9, %s9
          $region84: #{adnet_enhanced_forward.1} parent=80 // loop_header_branch
            %4061 = sbr.rel (%p4059) target = $region88
          $region85: #{adnet_enhanced_forward.1} parent=80 // loop_body
            %v4065 = vld [vmem:[%s4063] sm:%s4056]
            %4066 = vst [vmem:[%s4064] sm:%s4056] %v4065
          $region86: #{adnet_enhanced_forward.1} parent=80 // loop_footer
            %s4062 = sadd.s32 1, %s4058
          $region87: #{adnet_enhanced_forward.1} parent=80 // loop_footer_branch
            %4057 = sbr.rel target = $region83
          $region88: #{adnet_enhanced_forward.1} parent=80 // loop_exit
            _
        $region81: #{adnet_enhanced_forward.1} parent=72 // pred_fallthru
          _
      $region73: #{adnet_enhanced_forward.1} parent=68 // pred_fallthru
        _
      %4081 = vnop
    $region69: #{adnet_enhanced_forward.1} parent=1 // pred_fallthru
      _
    // Predicated region
    $region100: #{adnet_enhanced_forward.1} parent=1 // pred_check
      _
    $region101: #{adnet_enhanced_forward.1} parent=1 // pred_check_branch
      %4083 = sbr.rel (0) target = $region103
    $region102: #{adnet_enhanced_forward.1} parent=1 // pred_region
      _
    $region103: #{adnet_enhanced_forward.1} parent=1 // pred_fallthru
      _
    %4084 = vsyncpa [#allocation3], 1
    %4085 = vsyncpa [#allocation5], 1
    %4086 = vsyncpa [#allocation8], 1
    %4087 = vsyncpa [#allocation11], 1

</llo_original>
